<compile_context>
chip_gen: v6e
topology: v6e:2x2x1
jax: 0.10.0
libtpu: 0.0.40
codegen_flags: <defaults>
</compile_context>

<pallas_src>
import jax
import jax.numpy as jnp
from jax import lax
from jax.experimental import pallas as pl
from jax.experimental.pallas import tpu as pltpu

N_HEADS = 8
LN_EPS = 1e-5
COS_EPS = 1e-8


def _softmax_last(x):
    """Softmax over the last axis; denominator reciprocal runs on the EUP."""
    m = jnp.max(x, axis=-1, keepdims=True)
    e = jnp.exp(x - m)
    return e * pl.reciprocal(jnp.sum(e, axis=-1, keepdims=True), approx=True)


def multi_head_att_kernel(b_ref, a_ref,
                          wq_ref, bq_ref,          # (D, D) bf16, (1, D) f32
                          wkv_ref, bkv_ref,        # (D, 2D) bf16, (1, 2D) f32
                          wao_v_ref, wao_q_ref,    # (D, 2D) bf16 each
                          bao_ref,                 # (1, 2D) f32
                          gamma_ref, beta_ref,     # (1, D) f32
                          o_ref):
    f32, bf16 = jnp.float32, jnp.bfloat16
    BN, L, D = b_ref.shape
    dh = D // N_HEADS
    M = BN * L

    # Token-major 2-D views for the position-wise linears (free leading reshape).
    x_b = b_ref[...].reshape(M, D)
    x_a = a_ref[...].reshape(M, D)

    # --- projections: bf16 operands, f32 accumulation, weights pre-transposed ---
    Q2 = jnp.dot(x_b.astype(bf16), wq_ref[...], preferred_element_type=f32) + bq_ref[...]
    KV = jnp.dot(x_a.astype(bf16), wkv_ref[...], preferred_element_type=f32) + bkv_ref[...]
    K2 = KV[:, :D]
    V2 = KV[:, D:]

    # --- 8-head attention as one batched contraction over (head, sample) ---
    def split_heads(t):   # (M, D) f32 -> (N_HEADS*BN, L, dh), batch = h*BN + b
        chunks = [t[:, h * dh:(h + 1) * dh] for h in range(N_HEADS)]
        return jnp.stack(chunks, axis=0).reshape(N_HEADS * BN, L, dh)

    Qh = split_heads(Q2).astype(bf16)
    Kh = split_heads(K2).astype(bf16)
    Vh = split_heads(V2).astype(bf16)

    s = jnp.einsum('bqd,bkd->bqk', Qh, Kh, preferred_element_type=f32) * 0.125
    p = _softmax_last(s)                                              # f32
    f = jnp.einsum('bqk,bkd->bqd', p.astype(bf16), Vh, preferred_element_type=f32)
    f = f.reshape(N_HEADS, M, dh)
    f_mh = jnp.concatenate([f[h] for h in range(N_HEADS)], axis=-1)   # (M, D)

    # --- AOAttention: cosine-similarity attention, double normalization ---
    Q3 = Q2.reshape(BN, L, D)
    F3 = f_mh.reshape(BN, L, D)
    n2q = jnp.sum(Q3 * Q3, axis=-1, keepdims=True)                    # (BN, L, 1)
    n2k = jnp.sum(F3 * F3, axis=-1, keepdims=True)                    # (BN, L, 1)
    Qb = Q3.astype(bf16)
    Fb = F3.astype(bf16)
    dots = jnp.einsum('bld,bmd->blm', Qb, Fb, preferred_element_type=f32)   # (BN, L, L)
    # |q|^2 |k|^2 outer product (f32), then 1/max(|q||k|, eps) via EUP rsqrt.
    denom2 = jnp.einsum('bli,bmi->blm', n2q, n2k)
    cos = dots * lax.rsqrt(jnp.maximum(denom2, COS_EPS * COS_EPS))
    score = cos * pl.reciprocal(jnp.sum(cos, axis=-1, keepdims=True), approx=True)
    alpha = _softmax_last(score)
    V_ = jnp.einsum('blm,bmd->bld', alpha.astype(bf16), Fb, preferred_element_type=f32)

    # gated output: sigmoid(W_v([V_, Q])) * W_q([V_, Q]); concat avoided by
    # using the pre-split fused weight (V_-rows and Q-rows handled separately).
    pre = (jnp.dot(V_.reshape(M, D).astype(bf16), wao_v_ref[...], preferred_element_type=f32)
           + jnp.dot(Q2.astype(bf16), wao_q_ref[...], preferred_element_type=f32)
           + bao_ref[...])                                            # (M, 2D)
    aoa = jax.nn.sigmoid(pre[:, :D]) * pre[:, D:]                     # (M, D)

    # --- residual + LayerNorm over the feature dim (f32) ---
    x = aoa + x_a
    mu = jnp.mean(x, axis=-1, keepdims=True)
    xc = x - mu
    var = jnp.mean(xc * xc, axis=-1, keepdims=True)
    y = xc * lax.rsqrt(var + LN_EPS)
    y = y * gamma_ref[...] + beta_ref[...]
    o_ref[...] = y.reshape(BN, L, D)


def multi_head_att(B, A, params, *, block_n=None):
    N, L, D = B.shape
    assert D % N_HEADS == 0, "D must be divisible by 8 heads"
    f32, bf16 = jnp.float32, jnp.bfloat16

    # Batch block: biggest divisor of N whose (BN, L, D) tile is <= ~1 MiB,
    # capped so the grid keeps >= 2 steps (v7x has 2 TensorCores to shard over).
    if block_n is None:
        per_sample = L * D * 4
        cap = max(1, min(N, (1 << 20) // max(1, per_sample)))
        if N >= 2:
            cap = min(cap, max(1, (N + 1) // 2))
        block_n = 1
        for cand in range(cap, 0, -1):
            if N % cand == 0:
                block_n = cand
                break
    grid = (N // block_n,)

    # Pre-pack weights once outside the kernel: transposed to (in, out),
    # K/V stacked, AOA gate/value stacked and split into V_/Q input halves,
    # matmul weights cast to bf16 (f32 accumulation happens inside the kernel).
    WQ_T = params["WQ"].T.astype(bf16)                                        # (D, D)
    WKV_T = jnp.concatenate([params["WK"].T, params["WV"].T], 1).astype(bf16)  # (D, 2D)
    bKV = jnp.concatenate([params["bK"], params["bV"]], 1).astype(f32)         # (1, 2D)
    WvT = params["Wv_ao"].T        # (2D, D) -> gate
    WqT = params["Wq_ao"].T        # (2D, D) -> value
    Wao_v = jnp.concatenate([WvT[:D], WqT[:D]], 1).astype(bf16)                # (D, 2D)
    Wao_q = jnp.concatenate([WvT[D:], WqT[D:]], 1).astype(bf16)                # (D, 2D)
    b_ao = jnp.concatenate([params["bv_ao"], params["bq_ao"]], 1).astype(f32)  # (1, 2D)

    def full(shape):
        return pl.BlockSpec(shape, lambda n: (0,) * len(shape))

    batch_spec = pl.BlockSpec((block_n, L, D), lambda n: (n, 0, 0))

    in_specs = [
        batch_spec, batch_spec,
        full((D, D)), full((1, D)),              # W_Q^T, b_Q
        full((D, 2 * D)), full((1, 2 * D)),      # [W_K^T | W_V^T], [b_K | b_V]
        full((D, 2 * D)), full((D, 2 * D)),      # AOA weight, V_-half and Q-half
        full((1, 2 * D)),                        # [b_v | b_q]
        full((1, D)), full((1, D)),              # LayerNorm gamma, beta
    ]

    return pl.pallas_call(
        multi_head_att_kernel,
        out_shape=jax.ShapeDtypeStruct((N, L, D), jnp.float32),
        grid=grid,
        in_specs=in_specs,
        out_specs=batch_spec,
        compiler_params=pltpu.CompilerParams(
            dimension_semantics=("parallel",),
            vmem_limit_bytes=32 * 1024 * 1024,
        ),
    )(B, A,
      WQ_T, params["bQ"].astype(f32),
      WKV_T, bKV,
      Wao_v, Wao_q, b_ao,
      params["gamma"].astype(f32), params["beta"].astype(f32))


def reference(B, A, p):
    """Pure-JAX f32 reference of the PyTorch forward (vectorized over its Python loops)."""
    lin = lambda x, w, b: x @ w.T + b
    Q = lin(B, p["WQ"], p["bQ"])
    K = lin(A, p["WK"], p["bK"])
    V = lin(A, p["WV"], p["bV"])
    D = Q.shape[-1]
    d = D // N_HEADS
    heads = []
    for h in range(N_HEADS):
        qh, kh, vh = (t[..., h * d:(h + 1) * d] for t in (Q, K, V))
        s = jnp.einsum("nld,nmd->nlm", qh, kh) / 8.0
        heads.append(jnp.einsum("nlm,nmd->nld", jax.nn.softmax(s, axis=-1), vh))
    f_mh = jnp.concatenate(heads, axis=-1)
    qn = jnp.linalg.norm(Q, axis=-1, keepdims=True)
    kn = jnp.linalg.norm(f_mh, axis=-1, keepdims=True)
    dots = jnp.einsum("nld,nmd->nlm", Q, f_mh)
    cos = dots / jnp.maximum(qn * jnp.swapaxes(kn, -1, -2), COS_EPS)
    score = cos / jnp.sum(cos, axis=-1, keepdims=True)
    alpha = jax.nn.softmax(score, axis=-1)
    V_ = jnp.einsum("nlm,nmd->nld", alpha, f_mh)
    s2 = jnp.concatenate([V_, Q], axis=-1)
    aoa = jax.nn.sigmoid(lin(s2, p["Wv_ao"], p["bv_ao"])) * lin(s2, p["Wq_ao"], p["bq_ao"])
    x = aoa + A
    mu = jnp.mean(x, -1, keepdims=True)
    var = jnp.mean((x - mu) ** 2, -1, keepdims=True)
    return (x - mu) / jnp.sqrt(var + LN_EPS) * p["gamma"] + p["beta"]


if __name__ == "__main__":
    N, L, D = 8, 8, 32            # D must be divisible by 8 heads
    key = jax.random.PRNGKey(0)
    ks = jax.random.split(key, 12)

    # deterministic synthetic parameters (mildly positive so the cosine-sum
    # normalization in AOAttention stays well-conditioned)
    def w(k, shape):
        return (0.05 * jax.random.normal(k, shape) + 0.05).astype(jnp.float32)

    params = {
        "WQ": w(ks[0], (D, D)), "bQ": w(ks[1], (1, D)),
        "WK": w(ks[2], (D, D)), "bK": w(ks[3], (1, D)),
        "WV": w(ks[4], (D, D)), "bV": w(ks[5], (1, D)),
        "Wv_ao": w(ks[6], (D, 2 * D)), "bv_ao": w(ks[7], (1, D)),
        "Wq_ao": w(ks[8], (D, 2 * D)), "bq_ao": w(ks[9], (1, D)),
        "gamma": jnp.ones((1, D), jnp.float32),
        "beta": jnp.zeros((1, D), jnp.float32),
    }

    B = (0.5 * jax.random.normal(ks[10], (N, L, D)) + 1.0).astype(jnp.float32)
    A = (0.5 * jax.random.normal(ks[11], (N, L, D)) + 1.0).astype(jnp.float32)

    out = jax.block_until_ready(multi_head_att(B, A, params))
    ref = reference(B, A, params)

    assert out.shape == (N, L, D)
    assert bool(jnp.all(jnp.isfinite(out)))
    # bf16 MXU operands with f32 accumulation -> compare at bf16-level tolerance
    err = float(jnp.max(jnp.abs(out - ref)))
    assert bool(jnp.allclose(out, ref, atol=3e-2, rtol=3e-2)), f"max abs err {err}"

    print("KERNEL_OK")
</pallas_src>

<mosaic_0001>
module attributes {stable_mosaic.version = 11 : i64} {
  func.func @multi_head_att_kernel(%arg0: i32, %arg1: memref<4x8x32xf32, #tpu.memory_space<vmem>>, %arg2: memref<4x8x32xf32, #tpu.memory_space<vmem>>, %arg3: memref<32x32xbf16, #tpu.memory_space<vmem>>, %arg4: memref<1x32xf32, #tpu.memory_space<vmem>>, %arg5: memref<32x64xbf16, #tpu.memory_space<vmem>>, %arg6: memref<1x64xf32, #tpu.memory_space<vmem>>, %arg7: memref<32x64xbf16, #tpu.memory_space<vmem>>, %arg8: memref<32x64xbf16, #tpu.memory_space<vmem>>, %arg9: memref<1x64xf32, #tpu.memory_space<vmem>>, %arg10: memref<1x32xf32, #tpu.memory_space<vmem>>, %arg11: memref<1x32xf32, #tpu.memory_space<vmem>>, %arg12: memref<4x8x32xf32, #tpu.memory_space<vmem>>) attributes {dimension_semantics = [#tpu.dimension_semantics<parallel>], iteration_bounds = array<i64: 2>, scalar_prefetch = 0 : i64, scratch_operands = 0 : i64, tpu.core_type = #tpu.core_type<tc>, window_params = [{transform_indices = @transform_0, window_bounds = array<i64: 4, 8, 32>}, {transform_indices = @transform_1, window_bounds = array<i64: 4, 8, 32>}, {pipeline_mode = #tpu.pipeline_mode<synchronous>, transform_indices = @transform_2, window_bounds = array<i64: 32, 32>}, {pipeline_mode = #tpu.pipeline_mode<synchronous>, transform_indices = @transform_3, window_bounds = array<i64: 1, 32>}, {pipeline_mode = #tpu.pipeline_mode<synchronous>, transform_indices = @transform_4, window_bounds = array<i64: 32, 64>}, {pipeline_mode = #tpu.pipeline_mode<synchronous>, transform_indices = @transform_5, window_bounds = array<i64: 1, 64>}, {pipeline_mode = #tpu.pipeline_mode<synchronous>, transform_indices = @transform_6, window_bounds = array<i64: 32, 64>}, {pipeline_mode = #tpu.pipeline_mode<synchronous>, transform_indices = @transform_7, window_bounds = array<i64: 32, 64>}, {pipeline_mode = #tpu.pipeline_mode<synchronous>, transform_indices = @transform_8, window_bounds = array<i64: 1, 64>}, {pipeline_mode = #tpu.pipeline_mode<synchronous>, transform_indices = @transform_9, window_bounds = array<i64: 1, 32>}, {pipeline_mode = #tpu.pipeline_mode<synchronous>, transform_indices = @transform_10, window_bounds = array<i64: 1, 32>}, {transform_indices = @transform_11, window_bounds = array<i64: 4, 8, 32>}]} {
    %c0 = arith.constant 0 : index
    %c0_0 = arith.constant 0 : index
    %c0_1 = arith.constant 0 : index
    %0 = vector.load %arg1[%c0, %c0_0, %c0_1] : memref<4x8x32xf32, #tpu.memory_space<vmem>>, vector<4x8x32xf32>
    %1 = vector.shape_cast %0 : vector<4x8x32xf32> to vector<32x32xf32>
    %c0_2 = arith.constant 0 : index
    %c0_3 = arith.constant 0 : index
    %c0_4 = arith.constant 0 : index
    %2 = vector.load %arg2[%c0_2, %c0_3, %c0_4] : memref<4x8x32xf32, #tpu.memory_space<vmem>>, vector<4x8x32xf32>
    %3 = vector.shape_cast %2 : vector<4x8x32xf32> to vector<32x32xf32>
    %4 = arith.truncf %1 : vector<32x32xf32> to vector<32x32xbf16>
    %c0_5 = arith.constant 0 : index
    %c0_6 = arith.constant 0 : index
    %5 = vector.load %arg3[%c0_5, %c0_6] : memref<32x32xbf16, #tpu.memory_space<vmem>>, vector<32x32xbf16>
    %cst = arith.constant dense<0.000000e+00> : vector<32x32xf32>
    %6 = tpu.matmul %4, %5, %cst {dimension_numbers = #tpu.dot_dimension_numbers<[1], [0], [0], [1], [0, 0, 1, 1], [], []>} : vector<32x32xbf16>, vector<32x32xbf16>, vector<32x32xf32> -> vector<32x32xf32>
    %c0_7 = arith.constant 0 : index
    %c0_8 = arith.constant 0 : index
    %7 = vector.load %arg4[%c0_7, %c0_8] : memref<1x32xf32, #tpu.memory_space<vmem>>, vector<1x32xf32>
    %8 = vector.broadcast %7 : vector<1x32xf32> to vector<32x32xf32>
    %9 = arith.addf %6, %8 : vector<32x32xf32>
    %10 = arith.truncf %3 : vector<32x32xf32> to vector<32x32xbf16>
    %c0_9 = arith.constant 0 : index
    %c0_10 = arith.constant 0 : index
    %11 = vector.load %arg5[%c0_9, %c0_10] : memref<32x64xbf16, #tpu.memory_space<vmem>>, vector<32x64xbf16>
    %cst_11 = arith.constant dense<0.000000e+00> : vector<32x64xf32>
    %12 = tpu.matmul %10, %11, %cst_11 {dimension_numbers = #tpu.dot_dimension_numbers<[1], [0], [0], [1], [0, 0, 1, 1], [], []>} : vector<32x32xbf16>, vector<32x64xbf16>, vector<32x64xf32> -> vector<32x64xf32>
    %c0_12 = arith.constant 0 : index
    %c0_13 = arith.constant 0 : index
    %13 = vector.load %arg6[%c0_12, %c0_13] : memref<1x64xf32, #tpu.memory_space<vmem>>, vector<1x64xf32>
    %14 = vector.broadcast %13 : vector<1x64xf32> to vector<32x64xf32>
    %15 = arith.addf %12, %14 : vector<32x64xf32>
    %16 = vector.extract_strided_slice %15 {offsets = [0, 0], sizes = [32, 32], strides = [1, 1]} : vector<32x64xf32> to vector<32x32xf32>
    %17 = vector.extract_strided_slice %15 {offsets = [0, 32], sizes = [32, 32], strides = [1, 1]} : vector<32x64xf32> to vector<32x32xf32>
    %18 = vector.extract_strided_slice %9 {offsets = [0, 0], sizes = [32, 4], strides = [1, 1]} : vector<32x32xf32> to vector<32x4xf32>
    %19 = vector.extract_strided_slice %9 {offsets = [0, 4], sizes = [32, 4], strides = [1, 1]} : vector<32x32xf32> to vector<32x4xf32>
    %20 = vector.extract_strided_slice %9 {offsets = [0, 8], sizes = [32, 4], strides = [1, 1]} : vector<32x32xf32> to vector<32x4xf32>
    %21 = vector.extract_strided_slice %9 {offsets = [0, 12], sizes = [32, 4], strides = [1, 1]} : vector<32x32xf32> to vector<32x4xf32>
    %22 = vector.extract_strided_slice %9 {offsets = [0, 16], sizes = [32, 4], strides = [1, 1]} : vector<32x32xf32> to vector<32x4xf32>
    %23 = vector.extract_strided_slice %9 {offsets = [0, 20], sizes = [32, 4], strides = [1, 1]} : vector<32x32xf32> to vector<32x4xf32>
    %24 = vector.extract_strided_slice %9 {offsets = [0, 24], sizes = [32, 4], strides = [1, 1]} : vector<32x32xf32> to vector<32x4xf32>
    %25 = vector.extract_strided_slice %9 {offsets = [0, 28], sizes = [32, 4], strides = [1, 1]} : vector<32x32xf32> to vector<32x4xf32>
    %26 = vector.shape_cast %18 : vector<32x4xf32> to vector<1x32x4xf32>
    %27 = vector.shape_cast %19 : vector<32x4xf32> to vector<1x32x4xf32>
    %28 = vector.shape_cast %20 : vector<32x4xf32> to vector<1x32x4xf32>
    %29 = vector.shape_cast %21 : vector<32x4xf32> to vector<1x32x4xf32>
    %30 = vector.shape_cast %22 : vector<32x4xf32> to vector<1x32x4xf32>
    %31 = vector.shape_cast %23 : vector<32x4xf32> to vector<1x32x4xf32>
    %32 = vector.shape_cast %24 : vector<32x4xf32> to vector<1x32x4xf32>
    %33 = vector.shape_cast %25 : vector<32x4xf32> to vector<1x32x4xf32>
    %34 = tpu.concatenate %26, %27, %28, %29, %30, %31, %32, %33 in 0 : vector<1x32x4xf32>, vector<1x32x4xf32>, vector<1x32x4xf32>, vector<1x32x4xf32>, vector<1x32x4xf32>, vector<1x32x4xf32>, vector<1x32x4xf32>, vector<1x32x4xf32> -> vector<8x32x4xf32>
    %35 = vector.shape_cast %34 : vector<8x32x4xf32> to vector<32x8x4xf32>
    %36 = arith.truncf %35 : vector<32x8x4xf32> to vector<32x8x4xbf16>
    %37 = vector.extract_strided_slice %16 {offsets = [0, 0], sizes = [32, 4], strides = [1, 1]} : vector<32x32xf32> to vector<32x4xf32>
    %38 = vector.extract_strided_slice %16 {offsets = [0, 4], sizes = [32, 4], strides = [1, 1]} : vector<32x32xf32> to vector<32x4xf32>
    %39 = vector.extract_strided_slice %16 {offsets = [0, 8], sizes = [32, 4], strides = [1, 1]} : vector<32x32xf32> to vector<32x4xf32>
    %40 = vector.extract_strided_slice %16 {offsets = [0, 12], sizes = [32, 4], strides = [1, 1]} : vector<32x32xf32> to vector<32x4xf32>
    %41 = vector.extract_strided_slice %16 {offsets = [0, 16], sizes = [32, 4], strides = [1, 1]} : vector<32x32xf32> to vector<32x4xf32>
    %42 = vector.extract_strided_slice %16 {offsets = [0, 20], sizes = [32, 4], strides = [1, 1]} : vector<32x32xf32> to vector<32x4xf32>
    %43 = vector.extract_strided_slice %16 {offsets = [0, 24], sizes = [32, 4], strides = [1, 1]} : vector<32x32xf32> to vector<32x4xf32>
    %44 = vector.extract_strided_slice %16 {offsets = [0, 28], sizes = [32, 4], strides = [1, 1]} : vector<32x32xf32> to vector<32x4xf32>
    %45 = vector.shape_cast %37 : vector<32x4xf32> to vector<1x32x4xf32>
    %46 = vector.shape_cast %38 : vector<32x4xf32> to vector<1x32x4xf32>
    %47 = vector.shape_cast %39 : vector<32x4xf32> to vector<1x32x4xf32>
    %48 = vector.shape_cast %40 : vector<32x4xf32> to vector<1x32x4xf32>
    %49 = vector.shape_cast %41 : vector<32x4xf32> to vector<1x32x4xf32>
    %50 = vector.shape_cast %42 : vector<32x4xf32> to vector<1x32x4xf32>
    %51 = vector.shape_cast %43 : vector<32x4xf32> to vector<1x32x4xf32>
    %52 = vector.shape_cast %44 : vector<32x4xf32> to vector<1x32x4xf32>
    %53 = tpu.concatenate %45, %46, %47, %48, %49, %50, %51, %52 in 0 : vector<1x32x4xf32>, vector<1x32x4xf32>, vector<1x32x4xf32>, vector<1x32x4xf32>, vector<1x32x4xf32>, vector<1x32x4xf32>, vector<1x32x4xf32>, vector<1x32x4xf32> -> vector<8x32x4xf32>
    %54 = vector.shape_cast %53 : vector<8x32x4xf32> to vector<32x8x4xf32>
    %55 = arith.truncf %54 : vector<32x8x4xf32> to vector<32x8x4xbf16>
    %56 = vector.extract_strided_slice %17 {offsets = [0, 0], sizes = [32, 4], strides = [1, 1]} : vector<32x32xf32> to vector<32x4xf32>
    %57 = vector.extract_strided_slice %17 {offsets = [0, 4], sizes = [32, 4], strides = [1, 1]} : vector<32x32xf32> to vector<32x4xf32>
    %58 = vector.extract_strided_slice %17 {offsets = [0, 8], sizes = [32, 4], strides = [1, 1]} : vector<32x32xf32> to vector<32x4xf32>
    %59 = vector.extract_strided_slice %17 {offsets = [0, 12], sizes = [32, 4], strides = [1, 1]} : vector<32x32xf32> to vector<32x4xf32>
    %60 = vector.extract_strided_slice %17 {offsets = [0, 16], sizes = [32, 4], strides = [1, 1]} : vector<32x32xf32> to vector<32x4xf32>
    %61 = vector.extract_strided_slice %17 {offsets = [0, 20], sizes = [32, 4], strides = [1, 1]} : vector<32x32xf32> to vector<32x4xf32>
    %62 = vector.extract_strided_slice %17 {offsets = [0, 24], sizes = [32, 4], strides = [1, 1]} : vector<32x32xf32> to vector<32x4xf32>
    %63 = vector.extract_strided_slice %17 {offsets = [0, 28], sizes = [32, 4], strides = [1, 1]} : vector<32x32xf32> to vector<32x4xf32>
    %64 = vector.shape_cast %56 : vector<32x4xf32> to vector<1x32x4xf32>
    %65 = vector.shape_cast %57 : vector<32x4xf32> to vector<1x32x4xf32>
    %66 = vector.shape_cast %58 : vector<32x4xf32> to vector<1x32x4xf32>
    %67 = vector.shape_cast %59 : vector<32x4xf32> to vector<1x32x4xf32>
    %68 = vector.shape_cast %60 : vector<32x4xf32> to vector<1x32x4xf32>
    %69 = vector.shape_cast %61 : vector<32x4xf32> to vector<1x32x4xf32>
    %70 = vector.shape_cast %62 : vector<32x4xf32> to vector<1x32x4xf32>
    %71 = vector.shape_cast %63 : vector<32x4xf32> to vector<1x32x4xf32>
    %72 = tpu.concatenate %64, %65, %66, %67, %68, %69, %70, %71 in 0 : vector<1x32x4xf32>, vector<1x32x4xf32>, vector<1x32x4xf32>, vector<1x32x4xf32>, vector<1x32x4xf32>, vector<1x32x4xf32>, vector<1x32x4xf32>, vector<1x32x4xf32> -> vector<8x32x4xf32>
    %73 = vector.shape_cast %72 : vector<8x32x4xf32> to vector<32x8x4xf32>
    %74 = arith.truncf %73 : vector<32x8x4xf32> to vector<32x8x4xbf16>
    "tpu.trace_start"() <{level = 10 : i32, message = "bqd,bkd->bqk"}> : () -> ()
    %cst_14 = arith.constant dense<0.000000e+00> : vector<32x8x8xf32>
    %75 = tpu.matmul %36, %55, %cst_14 {dimension_numbers = #tpu.dot_dimension_numbers<[2], [2], [1], [1], [0, 0, 0, 1, 1, 1], [0], [0]>} : vector<32x8x4xbf16>, vector<32x8x4xbf16>, vector<32x8x8xf32> -> vector<32x8x8xf32>
    "tpu.trace_stop"() : () -> ()
    %cst_15 = arith.constant 1.250000e-01 : f32
    %76 = vector.broadcast %cst_15 : f32 to vector<32x8x8xf32>
    %77 = arith.mulf %75, %76 : vector<32x8x8xf32>
    %cst_16 = arith.constant dense<0xFF800000> : vector<32x8xf32>
    %78 = vector.multi_reduction <maximumf>, %77, %cst_16 [2] : vector<32x8x8xf32> to vector<32x8xf32>
    %79 = vector.shape_cast %78 : vector<32x8xf32> to vector<32x8x1xf32>
    %80 = vector.broadcast %79 : vector<32x8x1xf32> to vector<32x8x8xf32>
    %81 = arith.subf %77, %80 : vector<32x8x8xf32>
    %82 = math.exp %81 : vector<32x8x8xf32>
    %cst_17 = arith.constant dense<0.000000e+00> : vector<32x8xf32>
    %83 = vector.multi_reduction <add>, %82, %cst_17 [2] : vector<32x8x8xf32> to vector<32x8xf32>
    %84 = vector.shape_cast %83 : vector<32x8xf32> to vector<32x8x1xf32>
    %85 = tpu.reciprocal %84 {approx = true} : vector<32x8x1xf32> -> vector<32x8x1xf32>
    %86 = vector.broadcast %85 : vector<32x8x1xf32> to vector<32x8x8xf32>
    %87 = arith.mulf %82, %86 : vector<32x8x8xf32>
    %88 = arith.truncf %87 : vector<32x8x8xf32> to vector<32x8x8xbf16>
    "tpu.trace_start"() <{level = 10 : i32, message = "bqk,bkd->bqd"}> : () -> ()
    %cst_18 = arith.constant dense<0.000000e+00> : vector<32x8x4xf32>
    %89 = tpu.matmul %88, %74, %cst_18 {dimension_numbers = #tpu.dot_dimension_numbers<[2], [1], [1], [2], [0, 0, 0, 1, 1, 2], [0], [0]>} : vector<32x8x8xbf16>, vector<32x8x4xbf16>, vector<32x8x4xf32> -> vector<32x8x4xf32>
    "tpu.trace_stop"() : () -> ()
    %90 = vector.shape_cast %89 : vector<32x8x4xf32> to vector<8x32x4xf32>
    %91 = vector.extract_strided_slice %90 {offsets = [0, 0, 0], sizes = [1, 32, 4], strides = [1, 1, 1]} : vector<8x32x4xf32> to vector<1x32x4xf32>
    %92 = vector.shape_cast %91 : vector<1x32x4xf32> to vector<32x4xf32>
    %93 = vector.extract_strided_slice %90 {offsets = [1, 0, 0], sizes = [1, 32, 4], strides = [1, 1, 1]} : vector<8x32x4xf32> to vector<1x32x4xf32>
    %94 = vector.shape_cast %93 : vector<1x32x4xf32> to vector<32x4xf32>
    %95 = vector.extract_strided_slice %90 {offsets = [2, 0, 0], sizes = [1, 32, 4], strides = [1, 1, 1]} : vector<8x32x4xf32> to vector<1x32x4xf32>
    %96 = vector.shape_cast %95 : vector<1x32x4xf32> to vector<32x4xf32>
    %97 = vector.extract_strided_slice %90 {offsets = [3, 0, 0], sizes = [1, 32, 4], strides = [1, 1, 1]} : vector<8x32x4xf32> to vector<1x32x4xf32>
    %98 = vector.shape_cast %97 : vector<1x32x4xf32> to vector<32x4xf32>
    %99 = vector.extract_strided_slice %90 {offsets = [4, 0, 0], sizes = [1, 32, 4], strides = [1, 1, 1]} : vector<8x32x4xf32> to vector<1x32x4xf32>
    %100 = vector.shape_cast %99 : vector<1x32x4xf32> to vector<32x4xf32>
    %101 = vector.extract_strided_slice %90 {offsets = [5, 0, 0], sizes = [1, 32, 4], strides = [1, 1, 1]} : vector<8x32x4xf32> to vector<1x32x4xf32>
    %102 = vector.shape_cast %101 : vector<1x32x4xf32> to vector<32x4xf32>
    %103 = vector.extract_strided_slice %90 {offsets = [6, 0, 0], sizes = [1, 32, 4], strides = [1, 1, 1]} : vector<8x32x4xf32> to vector<1x32x4xf32>
    %104 = vector.shape_cast %103 : vector<1x32x4xf32> to vector<32x4xf32>
    %105 = vector.extract_strided_slice %90 {offsets = [7, 0, 0], sizes = [1, 32, 4], strides = [1, 1, 1]} : vector<8x32x4xf32> to vector<1x32x4xf32>
    %106 = vector.shape_cast %105 : vector<1x32x4xf32> to vector<32x4xf32>
    %107 = tpu.concatenate %92, %94, %96, %98, %100, %102, %104, %106 in 1 : vector<32x4xf32>, vector<32x4xf32>, vector<32x4xf32>, vector<32x4xf32>, vector<32x4xf32>, vector<32x4xf32>, vector<32x4xf32>, vector<32x4xf32> -> vector<32x32xf32>
    %108 = vector.shape_cast %9 : vector<32x32xf32> to vector<4x8x32xf32>
    %109 = vector.shape_cast %107 : vector<32x32xf32> to vector<4x8x32xf32>
    %110 = arith.mulf %108, %108 : vector<4x8x32xf32>
    %cst_19 = arith.constant dense<0.000000e+00> : vector<4x8xf32>
    %111 = vector.multi_reduction <add>, %110, %cst_19 [2] : vector<4x8x32xf32> to vector<4x8xf32>
    %112 = vector.shape_cast %111 : vector<4x8xf32> to vector<4x8x1xf32>
    %113 = arith.mulf %109, %109 : vector<4x8x32xf32>
    %cst_20 = arith.constant dense<0.000000e+00> : vector<4x8xf32>
    %114 = vector.multi_reduction <add>, %113, %cst_20 [2] : vector<4x8x32xf32> to vector<4x8xf32>
    %115 = vector.shape_cast %114 : vector<4x8xf32> to vector<4x8x1xf32>
    %116 = arith.truncf %108 : vector<4x8x32xf32> to vector<4x8x32xbf16>
    %117 = arith.truncf %109 : vector<4x8x32xf32> to vector<4x8x32xbf16>
    "tpu.trace_start"() <{level = 10 : i32, message = "bld,bmd->blm"}> : () -> ()
    %cst_21 = arith.constant dense<0.000000e+00> : vector<4x8x8xf32>
    %118 = tpu.matmul %116, %117, %cst_21 {dimension_numbers = #tpu.dot_dimension_numbers<[2], [2], [1], [1], [0, 0, 0, 1, 1, 1], [0], [0]>} : vector<4x8x32xbf16>, vector<4x8x32xbf16>, vector<4x8x8xf32> -> vector<4x8x8xf32>
    "tpu.trace_stop"() : () -> ()
    "tpu.trace_start"() <{level = 10 : i32, message = "bli,bmi->blm"}> : () -> ()
    %cst_22 = arith.constant dense<0.000000e+00> : vector<4x8x8xf32>
    %119 = tpu.matmul %112, %115, %cst_22 {dimension_numbers = #tpu.dot_dimension_numbers<[2], [2], [1], [1], [0, 0, 0, 1, 1, 1], [0], [0]>} : vector<4x8x1xf32>, vector<4x8x1xf32>, vector<4x8x8xf32> -> vector<4x8x8xf32>
    "tpu.trace_stop"() : () -> ()
    %cst_23 = arith.constant 1.000000e-16 : f32
    %120 = vector.broadcast %cst_23 : f32 to vector<4x8x8xf32>
    %121 = arith.maximumf %119, %120 : vector<4x8x8xf32>
    %122 = math.rsqrt %121 : vector<4x8x8xf32>
    %123 = arith.mulf %118, %122 : vector<4x8x8xf32>
    %cst_24 = arith.constant dense<0.000000e+00> : vector<4x8xf32>
    %124 = vector.multi_reduction <add>, %123, %cst_24 [2] : vector<4x8x8xf32> to vector<4x8xf32>
    %125 = vector.shape_cast %124 : vector<4x8xf32> to vector<4x8x1xf32>
    %126 = tpu.reciprocal %125 {approx = true} : vector<4x8x1xf32> -> vector<4x8x1xf32>
    %127 = vector.broadcast %126 : vector<4x8x1xf32> to vector<4x8x8xf32>
    %128 = arith.mulf %123, %127 : vector<4x8x8xf32>
    %cst_25 = arith.constant dense<0xFF800000> : vector<4x8xf32>
    %129 = vector.multi_reduction <maximumf>, %128, %cst_25 [2] : vector<4x8x8xf32> to vector<4x8xf32>
    %130 = vector.shape_cast %129 : vector<4x8xf32> to vector<4x8x1xf32>
    %131 = vector.broadcast %130 : vector<4x8x1xf32> to vector<4x8x8xf32>
    %132 = arith.subf %128, %131 : vector<4x8x8xf32>
    %133 = math.exp %132 : vector<4x8x8xf32>
    %cst_26 = arith.constant dense<0.000000e+00> : vector<4x8xf32>
    %134 = vector.multi_reduction <add>, %133, %cst_26 [2] : vector<4x8x8xf32> to vector<4x8xf32>
    %135 = vector.shape_cast %134 : vector<4x8xf32> to vector<4x8x1xf32>
    %136 = tpu.reciprocal %135 {approx = true} : vector<4x8x1xf32> -> vector<4x8x1xf32>
    %137 = vector.broadcast %136 : vector<4x8x1xf32> to vector<4x8x8xf32>
    %138 = arith.mulf %133, %137 : vector<4x8x8xf32>
    %139 = arith.truncf %138 : vector<4x8x8xf32> to vector<4x8x8xbf16>
    "tpu.trace_start"() <{level = 10 : i32, message = "blm,bmd->bld"}> : () -> ()
    %cst_27 = arith.constant dense<0.000000e+00> : vector<4x8x32xf32>
    %140 = tpu.matmul %139, %117, %cst_27 {dimension_numbers = #tpu.dot_dimension_numbers<[2], [1], [1], [2], [0, 0, 0, 1, 1, 2], [0], [0]>} : vector<4x8x8xbf16>, vector<4x8x32xbf16>, vector<4x8x32xf32> -> vector<4x8x32xf32>
    "tpu.trace_stop"() : () -> ()
    %141 = vector.shape_cast %140 : vector<4x8x32xf32> to vector<32x32xf32>
    %142 = arith.truncf %141 : vector<32x32xf32> to vector<32x32xbf16>
    %c0_28 = arith.constant 0 : index
    %c0_29 = arith.constant 0 : index
    %143 = vector.load %arg7[%c0_28, %c0_29] : memref<32x64xbf16, #tpu.memory_space<vmem>>, vector<32x64xbf16>
    %cst_30 = arith.constant dense<0.000000e+00> : vector<32x64xf32>
    %144 = tpu.matmul %142, %143, %cst_30 {dimension_numbers = #tpu.dot_dimension_numbers<[1], [0], [0], [1], [0, 0, 1, 1], [], []>} : vector<32x32xbf16>, vector<32x64xbf16>, vector<32x64xf32> -> vector<32x64xf32>
    %145 = arith.truncf %9 : vector<32x32xf32> to vector<32x32xbf16>
    %c0_31 = arith.constant 0 : index
    %c0_32 = arith.constant 0 : index
    %146 = vector.load %arg8[%c0_31, %c0_32] : memref<32x64xbf16, #tpu.memory_space<vmem>>, vector<32x64xbf16>
    %cst_33 = arith.constant dense<0.000000e+00> : vector<32x64xf32>
    %147 = tpu.matmul %145, %146, %cst_33 {dimension_numbers = #tpu.dot_dimension_numbers<[1], [0], [0], [1], [0, 0, 1, 1], [], []>} : vector<32x32xbf16>, vector<32x64xbf16>, vector<32x64xf32> -> vector<32x64xf32>
    %148 = arith.addf %144, %147 : vector<32x64xf32>
    %c0_34 = arith.constant 0 : index
    %c0_35 = arith.constant 0 : index
    %149 = vector.load %arg9[%c0_34, %c0_35] : memref<1x64xf32, #tpu.memory_space<vmem>>, vector<1x64xf32>
    %150 = vector.broadcast %149 : vector<1x64xf32> to vector<32x64xf32>
    %151 = arith.addf %148, %150 : vector<32x64xf32>
    %152 = vector.extract_strided_slice %151 {offsets = [0, 0], sizes = [32, 32], strides = [1, 1]} : vector<32x64xf32> to vector<32x32xf32>
    %153 = arith.negf %152 : vector<32x32xf32>
    %154 = math.exp %153 : vector<32x32xf32>
    %cst_36 = arith.constant 1.000000e+00 : f32
    %155 = vector.broadcast %cst_36 : f32 to vector<32x32xf32>
    %156 = arith.addf %155, %154 : vector<32x32xf32>
    %157 = arith.divf %155, %156 : vector<32x32xf32>
    %158 = vector.extract_strided_slice %151 {offsets = [0, 32], sizes = [32, 32], strides = [1, 1]} : vector<32x64xf32> to vector<32x32xf32>
    %159 = arith.mulf %157, %158 : vector<32x32xf32>
    %160 = arith.addf %159, %3 : vector<32x32xf32>
    %cst_37 = arith.constant dense<0.000000e+00> : vector<32xf32>
    %161 = vector.multi_reduction <add>, %160, %cst_37 [1] : vector<32x32xf32> to vector<32xf32>
    %162 = vector.shape_cast %161 : vector<32xf32> to vector<32x1xf32>
    %cst_38 = arith.constant 3.200000e+01 : f32
    %163 = vector.broadcast %cst_38 : f32 to vector<32x1xf32>
    %164 = arith.divf %162, %163 : vector<32x1xf32>
    %165 = vector.broadcast %164 : vector<32x1xf32> to vector<32x32xf32>
    %166 = arith.subf %160, %165 : vector<32x32xf32>
    %167 = arith.mulf %166, %166 : vector<32x32xf32>
    %cst_39 = arith.constant dense<0.000000e+00> : vector<32xf32>
    %168 = vector.multi_reduction <add>, %167, %cst_39 [1] : vector<32x32xf32> to vector<32xf32>
    %169 = vector.shape_cast %168 : vector<32xf32> to vector<32x1xf32>
    %cst_40 = arith.constant 3.200000e+01 : f32
    %170 = vector.broadcast %cst_40 : f32 to vector<32x1xf32>
    %171 = arith.divf %169, %170 : vector<32x1xf32>
    %cst_41 = arith.constant 9.99999974E-6 : f32
    %172 = vector.broadcast %cst_41 : f32 to vector<32x1xf32>
    %173 = arith.addf %171, %172 : vector<32x1xf32>
    %174 = math.rsqrt %173 : vector<32x1xf32>
    %175 = vector.broadcast %174 : vector<32x1xf32> to vector<32x32xf32>
    %176 = arith.mulf %166, %175 : vector<32x32xf32>
    %c0_42 = arith.constant 0 : index
    %c0_43 = arith.constant 0 : index
    %177 = vector.load %arg10[%c0_42, %c0_43] : memref<1x32xf32, #tpu.memory_space<vmem>>, vector<1x32xf32>
    %178 = vector.broadcast %177 : vector<1x32xf32> to vector<32x32xf32>
    %179 = arith.mulf %176, %178 : vector<32x32xf32>
    %c0_44 = arith.constant 0 : index
    %c0_45 = arith.constant 0 : index
    %180 = vector.load %arg11[%c0_44, %c0_45] : memref<1x32xf32, #tpu.memory_space<vmem>>, vector<1x32xf32>
    %181 = vector.broadcast %180 : vector<1x32xf32> to vector<32x32xf32>
    %182 = arith.addf %179, %181 : vector<32x32xf32>
    %183 = vector.shape_cast %182 : vector<32x32xf32> to vector<4x8x32xf32>
    %c0_46 = arith.constant 0 : index
    %c0_47 = arith.constant 0 : index
    %c0_48 = arith.constant 0 : index
    %184 = vector.load %arg12[%c0_46, %c0_47, %c0_48] : memref<4x8x32xf32, #tpu.memory_space<vmem>>, vector<4x8x32xf32>
    tpu.vector_store %arg12[%c0_46, %c0_47, %c0_48], %183 {strides = array<i32>} : memref<4x8x32xf32, #tpu.memory_space<vmem>>, vector<4x8x32xf32>,
    return
  }
  func.func @transform_0(%arg0: i32) -> (i32, i32, i32) {
    %c0_i32 = arith.constant 0 : i32
    %c0_i32_0 = arith.constant 0 : i32
    %c0_i32_1 = arith.constant 0 : i32
    return %arg0, %c0_i32, %c0_i32_0 : i32, i32, i32
  }
  func.func @transform_1(%arg0: i32) -> (i32, i32, i32) {
    %c0_i32 = arith.constant 0 : i32
    %c0_i32_0 = arith.constant 0 : i32
    %c0_i32_1 = arith.constant 0 : i32
    return %arg0, %c0_i32, %c0_i32_0 : i32, i32, i32
  }
  func.func @transform_2(%arg0: i32) -> (i32, i32) {
    %c0_i32 = arith.constant 0 : i32
    %c0_i32_0 = arith.constant 0 : i32
    %c0_i32_1 = arith.constant 0 : i32
    return %c0_i32, %c0_i32_0 : i32, i32
  }
  func.func @transform_3(%arg0: i32) -> (i32, i32) {
    %c0_i32 = arith.constant 0 : i32
    %c0_i32_0 = arith.constant 0 : i32
    %c0_i32_1 = arith.constant 0 : i32
    return %c0_i32, %c0_i32_0 : i32, i32
  }
  func.func @transform_4(%arg0: i32) -> (i32, i32) {
    %c0_i32 = arith.constant 0 : i32
    %c0_i32_0 = arith.constant 0 : i32
    %c0_i32_1 = arith.constant 0 : i32
    return %c0_i32, %c0_i32_0 : i32, i32
  }
  func.func @transform_5(%arg0: i32) -> (i32, i32) {
    %c0_i32 = arith.constant 0 : i32
    %c0_i32_0 = arith.constant 0 : i32
    %c0_i32_1 = arith.constant 0 : i32
    return %c0_i32, %c0_i32_0 : i32, i32
  }
  func.func @transform_6(%arg0: i32) -> (i32, i32) {
    %c0_i32 = arith.constant 0 : i32
    %c0_i32_0 = arith.constant 0 : i32
    %c0_i32_1 = arith.constant 0 : i32
    return %c0_i32, %c0_i32_0 : i32, i32
  }
  func.func @transform_7(%arg0: i32) -> (i32, i32) {
    %c0_i32 = arith.constant 0 : i32
    %c0_i32_0 = arith.constant 0 : i32
    %c0_i32_1 = arith.constant 0 : i32
    return %c0_i32, %c0_i32_0 : i32, i32
  }
  func.func @transform_8(%arg0: i32) -> (i32, i32) {
    %c0_i32 = arith.constant 0 : i32
    %c0_i32_0 = arith.constant 0 : i32
    %c0_i32_1 = arith.constant 0 : i32
    return %c0_i32, %c0_i32_0 : i32, i32
  }
  func.func @transform_9(%arg0: i32) -> (i32, i32) {
    %c0_i32 = arith.constant 0 : i32
    %c0_i32_0 = arith.constant 0 : i32
    %c0_i32_1 = arith.constant 0 : i32
    return %c0_i32, %c0_i32_0 : i32, i32
  }
  func.func @transform_10(%arg0: i32) -> (i32, i32) {
    %c0_i32 = arith.constant 0 : i32
    %c0_i32_0 = arith.constant 0 : i32
    %c0_i32_1 = arith.constant 0 : i32
    return %c0_i32, %c0_i32_0 : i32, i32
  }
  func.func @transform_11(%arg0: i32) -> (i32, i32, i32) {
    %c0_i32 = arith.constant 0 : i32
    %c0_i32_0 = arith.constant 0 : i32
    %c0_i32_1 = arith.constant 0 : i32
    return %arg0, %c0_i32, %c0_i32_0 : i32, i32, i32
  }
}

</mosaic_0001>

<llo_original>
// kernel: tpu_custom_call.1
$region0: #{tpu_custom_call.1}
  #allocation0 [shape = 'u32[]', space=smem, size = 0x4, offset = 0x4, fixed_abs, tag = 'smem constant byte address 0x4 - core index']
  #allocation1 [shape = 'u32[144,128]{1,0:T(1,128)}', space=vmem, size = 0x12000, scoped, tag = 'internal scratch']
  %s0 = inlined_call_operand.hbm [shape: f32[8,8,32], index: 0, kind: input, shape index: {}]
  %s1 = inlined_call_operand.hbm [shape: f32[8,8,32], index: 1, kind: input, shape index: {}]
  %s2 = inlined_call_operand.hbm [shape: bf16[32,32], index: 2, kind: input, shape index: {}]
  %s3 = inlined_call_operand.vmem [shape: f32[1,32], index: 3, kind: input, shape index: {}]
  %s4 = inlined_call_operand.hbm [shape: bf16[32,64], index: 4, kind: input, shape index: {}]
  %s5 = inlined_call_operand.vmem [shape: f32[1,64], index: 5, kind: input, shape index: {}]
  %s6 = inlined_call_operand.hbm [shape: bf16[32,64], index: 6, kind: input, shape index: {}]
  %s7 = inlined_call_operand.hbm [shape: bf16[32,64], index: 7, kind: input, shape index: {}]
  %s8 = inlined_call_operand.vmem [shape: f32[1,64], index: 8, kind: input, shape index: {}]
  %s9 = inlined_call_operand.vmem [shape: f32[1,32], index: 9, kind: input, shape index: {}]
  %s10 = inlined_call_operand.vmem [shape: f32[1,32], index: 10, kind: input, shape index: {}]
  %s11 = inlined_call_operand.hbm [shape: f32[8,8,32], index: 11, kind: output, shape index: {}]
  %s12 = sld [smem:[#allocation0]]
  $region101: #{tpu_custom_call.1} parent=0
    _
  %s14 = ssub.s32 1, %s12
  %s15 = scalar_select 0, %s14, %s12
  $region1: #{tpu_custom_call.1} parent=0
    #allocation2 [shape = 'u8[32768]{0}', space=vmem, size = 0x8000, scoped, tag = 'input window, operand 0']
    #allocation3 [shape = 's32[2]{0}', space=sflag, size = 0x8, scoped, tag = 'scoped memory for tpu_custom_call.1']
    #allocation4 [shape = 's32[2]{0}', space=sflag, size = 0x8, scoped, tag = 'scoped memory for tpu_custom_call.1']
    #allocation5 [shape = 'u8[32768]{0}', space=vmem, size = 0x8000, scoped, tag = 'input window, operand 1']
    #allocation6 [shape = 's32[2]{0}', space=sflag, size = 0x8, scoped, tag = 'scoped memory for tpu_custom_call.1']
    #allocation7 [shape = 'u8[8192]{0}', space=vmem, size = 0x2000, scoped, tag = 'input window, operand 2, single buffered']
    #allocation8 [shape = 'u8[8192]{0}', space=vmem, size = 0x2000, scoped, tag = 'input window, operand 4, single buffered']
    #allocation9 [shape = 's32[1]{0}', space=sflag, size = 0x4, scoped, tag = 'scoped memory for tpu_custom_call.1']
    #allocation10 [shape = 'u8[8192]{0}', space=vmem, size = 0x2000, scoped, tag = 'input window, operand 6, single buffered']
    #allocation11 [shape = 'u8[8192]{0}', space=vmem, size = 0x2000, scoped, tag = 'input window, operand 7, single buffered']
    #allocation12 [shape = 's32[1]{0}', space=sflag, size = 0x4, scoped, tag = 'scoped memory for tpu_custom_call.1']
    #allocation13 [shape = 'u8[32768]{0}', space=vmem, size = 0x8000, scoped, tag = 'output window, operand 0']
    %16 = vsyncpa [#allocation3], 0
    %s17 = scalar_lea.sflag [#allocation3], 1
    %18 = vsyncpa %s17, 0
    %19 = vsyncpa [#allocation6], 0
    %s20 = scalar_lea.sflag [#allocation6], 1
    %21 = vsyncpa %s20, 0
    %22 = vsyncpa [#allocation9], 0
    %23 = vsyncpa [#allocation12], 0
    %24 = vsyncpa [#allocation4], 0
    %s25 = scalar_lea.sflag [#allocation4], 1
    %26 = vsyncpa %s25, 0
    loop: start=0, step=1, limit=4
    $region2: #{tpu_custom_call.1} parent=1 // loop_pre_header
      _
    $region3: #{tpu_custom_call.1} parent=1 // loop_header
      %s28 = sphi 0, %s32
      %p29 = scmp.ge.s32.totalorder %s28, 4
      %s38 = sphi 0, %s40
      %s41 = sphi 0, %s38
      %s42 = sphi 0, %s41
      %s58 = sphi 0, %s42
      %s64 = sphi 0, %s66
      %s67 = sphi 0, %s64
      %s68 = sphi 0, %s67
      %s84 = sphi 0, %s68
      %s88 = sphi 0, %s88
      %s90 = sphi 0, %s88
      %s91 = sphi 0, %s90
      %s105 = sphi 0, %s91
      %s109 = sphi 0, %s109
      %s111 = sphi 0, %s109
      %s112 = sphi 0, %s111
      %s126 = sphi 0, %s112
      %s130 = sphi 0, %s130
      %s132 = sphi 0, %s130
      %s133 = sphi 0, %s132
      %s147 = sphi 0, %s133
      %s151 = sphi 0, %s151
      %s153 = sphi 0, %s151
      %s154 = sphi 0, %s153
      %s168 = sphi 0, %s154
      %s172 = sphi 0, %s172
      %s174 = sphi 0, %s172
      %s175 = sphi 0, %s174
      %s189 = sphi 0, %s175
      %s193 = sphi 0, %s193
      %s195 = sphi 0, %s193
      %s196 = sphi 0, %s195
      %s210 = sphi 0, %s196
      %s214 = sphi 0, %s214
      %s216 = sphi 0, %s214
      %s217 = sphi 0, %s216
      %s231 = sphi 0, %s217
      %s235 = sphi 0, %s235
      %s237 = sphi 0, %s235
      %s238 = sphi 0, %s237
      %s252 = sphi 0, %s238
      %s256 = sphi 0, %s256
      %s258 = sphi 0, %s256
      %s259 = sphi 0, %s258
      %s273 = sphi 0, %s259
      %s279 = sphi 0, %s281
      %s282 = sphi 0, %s279
      %s283 = sphi 0, %s282
      %s299 = sphi 0, %s283
    $region4: #{tpu_custom_call.1} parent=1 // loop_header_branch
      %31 = sbr.rel (%p29) target = $region8
    $region5: #{tpu_custom_call.1} parent=1 // loop_body
      %s33 = ssub.s32 %s28, 1
      %s34 = ssub.s32 %s28, 2
      %s35 = sadd.s32 %s28, 1
      %s36 = ssub.s32 %s28, %s35
      %p37 = scmp.eq.s32.totalorder %s36, 0
      %s39 = sadd.s32 %s38, 1
      %s40 = scalar_select %p37, %s38, %s39
      %p43 = pneg %p37
      %p44 = scmp.eq.s32.totalorder %s28, 1
      %p45 = por %p43, %p44
      %p46 = scmp.ne.s32.totalorder %s38, %s41
      %p47 = scmp.eq.s32.totalorder %s28, 0
      %p48 = por %p46, %p47
      %p49 = scmp.ne.s32.totalorder %s38, %s41
      %p50 = scmp.eq.s32.totalorder %s33, 1
      %p51 = por %p49, %p50
      %p52 = scmp.ne.s32.totalorder %s41, %s42
      %p53 = scmp.eq.s32.totalorder %s33, 0
      %p54 = por %p52, %p53
      %p55 = scmp.ne.s32.totalorder %s41, %s42
      %p56 = scmp.eq.s32.totalorder %s34, 1
      %p57 = por %p55, %p56
      %p59 = scmp.ne.s32.totalorder %s42, %s58
      %p60 = scmp.eq.s32.totalorder %s34, 0
      %p61 = por %p59, %p60
      %s62 = ssub.s32 %s28, %s35
      %p63 = scmp.eq.s32.totalorder %s62, 0
      %s65 = sadd.s32 %s64, 1
      %s66 = scalar_select %p63, %s64, %s65
      %p69 = pneg %p63
      %p70 = scmp.eq.s32.totalorder %s28, 1
      %p71 = por %p69, %p70
      %p72 = scmp.ne.s32.totalorder %s64, %s67
      %p73 = scmp.eq.s32.totalorder %s28, 0
      %p74 = por %p72, %p73
      %p75 = scmp.ne.s32.totalorder %s64, %s67
      %p76 = scmp.eq.s32.totalorder %s33, 1
      %p77 = por %p75, %p76
      %p78 = scmp.ne.s32.totalorder %s67, %s68
      %p79 = scmp.eq.s32.totalorder %s33, 0
      %p80 = por %p78, %p79
      %p81 = scmp.ne.s32.totalorder %s67, %s68
      %p82 = scmp.eq.s32.totalorder %s34, 1
      %p83 = por %p81, %p82
      %p85 = scmp.ne.s32.totalorder %s68, %s84
      %p86 = scmp.eq.s32.totalorder %s34, 0
      %p87 = por %p85, %p86
      %s89 = sadd.s32 %s88, 1
      %p92 = scmp.eq.s32.totalorder %s28, 1
      %p93 = scmp.ne.s32.totalorder %s88, %s90
      %p94 = scmp.eq.s32.totalorder %s28, 0
      %p95 = por %p93, %p94
      %p96 = scmp.ne.s32.totalorder %s88, %s90
      %p97 = scmp.eq.s32.totalorder %s33, 1
      %p98 = por %p96, %p97
      %p99 = scmp.ne.s32.totalorder %s90, %s91
      %p100 = scmp.eq.s32.totalorder %s33, 0
      %p101 = por %p99, %p100
      %p102 = scmp.ne.s32.totalorder %s90, %s91
      %p103 = scmp.eq.s32.totalorder %s34, 1
      %p104 = por %p102, %p103
      %p106 = scmp.ne.s32.totalorder %s91, %s105
      %p107 = scmp.eq.s32.totalorder %s34, 0
      %p108 = por %p106, %p107
      %s110 = sadd.s32 %s109, 1
      %p113 = scmp.eq.s32.totalorder %s28, 1
      %p114 = scmp.ne.s32.totalorder %s109, %s111
      %p115 = scmp.eq.s32.totalorder %s28, 0
      %p116 = por %p114, %p115
      %p117 = scmp.ne.s32.totalorder %s109, %s111
      %p118 = scmp.eq.s32.totalorder %s33, 1
      %p119 = por %p117, %p118
      %p120 = scmp.ne.s32.totalorder %s111, %s112
      %p121 = scmp.eq.s32.totalorder %s33, 0
      %p122 = por %p120, %p121
      %p123 = scmp.ne.s32.totalorder %s111, %s112
      %p124 = scmp.eq.s32.totalorder %s34, 1
      %p125 = por %p123, %p124
      %p127 = scmp.ne.s32.totalorder %s112, %s126
      %p128 = scmp.eq.s32.totalorder %s34, 0
      %p129 = por %p127, %p128
      %s131 = sadd.s32 %s130, 1
      %p134 = scmp.eq.s32.totalorder %s28, 1
      %p135 = scmp.ne.s32.totalorder %s130, %s132
      %p136 = scmp.eq.s32.totalorder %s28, 0
      %p137 = por %p135, %p136
      %p138 = scmp.ne.s32.totalorder %s130, %s132
      %p139 = scmp.eq.s32.totalorder %s33, 1
      %p140 = por %p138, %p139
      %p141 = scmp.ne.s32.totalorder %s132, %s133
      %p142 = scmp.eq.s32.totalorder %s33, 0
      %p143 = por %p141, %p142
      %p144 = scmp.ne.s32.totalorder %s132, %s133
      %p145 = scmp.eq.s32.totalorder %s34, 1
      %p146 = por %p144, %p145
      %p148 = scmp.ne.s32.totalorder %s133, %s147
      %p149 = scmp.eq.s32.totalorder %s34, 0
      %p150 = por %p148, %p149
      %s152 = sadd.s32 %s151, 1
      %p155 = scmp.eq.s32.totalorder %s28, 1
      %p156 = scmp.ne.s32.totalorder %s151, %s153
      %p157 = scmp.eq.s32.totalorder %s28, 0
      %p158 = por %p156, %p157
      %p159 = scmp.ne.s32.totalorder %s151, %s153
      %p160 = scmp.eq.s32.totalorder %s33, 1
      %p161 = por %p159, %p160
      %p162 = scmp.ne.s32.totalorder %s153, %s154
      %p163 = scmp.eq.s32.totalorder %s33, 0
      %p164 = por %p162, %p163
      %p165 = scmp.ne.s32.totalorder %s153, %s154
      %p166 = scmp.eq.s32.totalorder %s34, 1
      %p167 = por %p165, %p166
      %p169 = scmp.ne.s32.totalorder %s154, %s168
      %p170 = scmp.eq.s32.totalorder %s34, 0
      %p171 = por %p169, %p170
      %s173 = sadd.s32 %s172, 1
      %p176 = scmp.eq.s32.totalorder %s28, 1
      %p177 = scmp.ne.s32.totalorder %s172, %s174
      %p178 = scmp.eq.s32.totalorder %s28, 0
      %p179 = por %p177, %p178
      %p180 = scmp.ne.s32.totalorder %s172, %s174
      %p181 = scmp.eq.s32.totalorder %s33, 1
      %p182 = por %p180, %p181
      %p183 = scmp.ne.s32.totalorder %s174, %s175
      %p184 = scmp.eq.s32.totalorder %s33, 0
      %p185 = por %p183, %p184
      %p186 = scmp.ne.s32.totalorder %s174, %s175
      %p187 = scmp.eq.s32.totalorder %s34, 1
      %p188 = por %p186, %p187
      %p190 = scmp.ne.s32.totalorder %s175, %s189
      %p191 = scmp.eq.s32.totalorder %s34, 0
      %p192 = por %p190, %p191
      %s194 = sadd.s32 %s193, 1
      %p197 = scmp.eq.s32.totalorder %s28, 1
      %p198 = scmp.ne.s32.totalorder %s193, %s195
      %p199 = scmp.eq.s32.totalorder %s28, 0
      %p200 = por %p198, %p199
      %p201 = scmp.ne.s32.totalorder %s193, %s195
      %p202 = scmp.eq.s32.totalorder %s33, 1
      %p203 = por %p201, %p202
      %p204 = scmp.ne.s32.totalorder %s195, %s196
      %p205 = scmp.eq.s32.totalorder %s33, 0
      %p206 = por %p204, %p205
      %p207 = scmp.ne.s32.totalorder %s195, %s196
      %p208 = scmp.eq.s32.totalorder %s34, 1
      %p209 = por %p207, %p208
      %p211 = scmp.ne.s32.totalorder %s196, %s210
      %p212 = scmp.eq.s32.totalorder %s34, 0
      %p213 = por %p211, %p212
      %s215 = sadd.s32 %s214, 1
      %p218 = scmp.eq.s32.totalorder %s28, 1
      %p219 = scmp.ne.s32.totalorder %s214, %s216
      %p220 = scmp.eq.s32.totalorder %s28, 0
      %p221 = por %p219, %p220
      %p222 = scmp.ne.s32.totalorder %s214, %s216
      %p223 = scmp.eq.s32.totalorder %s33, 1
      %p224 = por %p222, %p223
      %p225 = scmp.ne.s32.totalorder %s216, %s217
      %p226 = scmp.eq.s32.totalorder %s33, 0
      %p227 = por %p225, %p226
      %p228 = scmp.ne.s32.totalorder %s216, %s217
      %p229 = scmp.eq.s32.totalorder %s34, 1
      %p230 = por %p228, %p229
      %p232 = scmp.ne.s32.totalorder %s217, %s231
      %p233 = scmp.eq.s32.totalorder %s34, 0
      %p234 = por %p232, %p233
      %s236 = sadd.s32 %s235, 1
      %p239 = scmp.eq.s32.totalorder %s28, 1
      %p240 = scmp.ne.s32.totalorder %s235, %s237
      %p241 = scmp.eq.s32.totalorder %s28, 0
      %p242 = por %p240, %p241
      %p243 = scmp.ne.s32.totalorder %s235, %s237
      %p244 = scmp.eq.s32.totalorder %s33, 1
      %p245 = por %p243, %p244
      %p246 = scmp.ne.s32.totalorder %s237, %s238
      %p247 = scmp.eq.s32.totalorder %s33, 0
      %p248 = por %p246, %p247
      %p249 = scmp.ne.s32.totalorder %s237, %s238
      %p250 = scmp.eq.s32.totalorder %s34, 1
      %p251 = por %p249, %p250
      %p253 = scmp.ne.s32.totalorder %s238, %s252
      %p254 = scmp.eq.s32.totalorder %s34, 0
      %p255 = por %p253, %p254
      %s257 = sadd.s32 %s256, 1
      %p260 = scmp.eq.s32.totalorder %s28, 1
      %p261 = scmp.ne.s32.totalorder %s256, %s258
      %p262 = scmp.eq.s32.totalorder %s28, 0
      %p263 = por %p261, %p262
      %p264 = scmp.ne.s32.totalorder %s256, %s258
      %p265 = scmp.eq.s32.totalorder %s33, 1
      %p266 = por %p264, %p265
      %p267 = scmp.ne.s32.totalorder %s258, %s259
      %p268 = scmp.eq.s32.totalorder %s33, 0
      %p269 = por %p267, %p268
      %p270 = scmp.ne.s32.totalorder %s258, %s259
      %p271 = scmp.eq.s32.totalorder %s34, 1
      %p272 = por %p270, %p271
      %p274 = scmp.ne.s32.totalorder %s259, %s273
      %p275 = scmp.eq.s32.totalorder %s34, 0
      %p276 = por %p274, %p275
      %s277 = ssub.s32 %s28, %s35
      %p278 = scmp.eq.s32.totalorder %s277, 0
      %s280 = sadd.s32 %s279, 1
      %s281 = scalar_select %p278, %s279, %s280
      %p284 = pneg %p278
      %p285 = scmp.eq.s32.totalorder %s28, 1
      %p286 = por %p284, %p285
      %p287 = scmp.ne.s32.totalorder %s279, %s282
      %p288 = scmp.eq.s32.totalorder %s28, 0
      %p289 = por %p287, %p288
      %p290 = scmp.ne.s32.totalorder %s279, %s282
      %p291 = scmp.eq.s32.totalorder %s33, 1
      %p292 = por %p290, %p291
      %p293 = scmp.ne.s32.totalorder %s282, %s283
      %p294 = scmp.eq.s32.totalorder %s33, 0
      %p295 = por %p293, %p294
      %p296 = scmp.ne.s32.totalorder %s282, %s283
      %p297 = scmp.eq.s32.totalorder %s34, 1
      %p298 = por %p296, %p297
      %p300 = scmp.ne.s32.totalorder %s283, %s299
      %p301 = scmp.eq.s32.totalorder %s34, 0
      %p302 = por %p300, %p301
      %p303 = scmp.le.s32.totalorder 1, %s28
      %p304 = scmp.lt.s32.totalorder %s28, 3
      %p305 = pnand %p303, %p304
      %p306 = pneg %p305
      // Predicated region
      $region9: #{tpu_custom_call.1} parent=5 // pred_check
        _
      $region10: #{tpu_custom_call.1} parent=5 // pred_check_branch
        %308 = sbr.rel (%p305) target = $region12
      $region11: #{tpu_custom_call.1} parent=5 // pred_region
        %s309 = ssub.s32 %s28, 1
        // Predicated region
        $region13: #{tpu_custom_call.1} parent=11 // pred_check
          %p310 = pneg %p101
        $region14: #{tpu_custom_call.1} parent=11 // pred_check_branch
          %312 = sbr.rel (%p310) target = $region16
        $region15: #{tpu_custom_call.1} parent=11 // pred_region
          %s314 = ssub.s32 256, 256
          %315 = vsyncadd [#allocation6], %s314
          %s316 = sshll.u32 [#allocation7], 4
          %s317 = int_to_ptr.vmem [resolvable:$true] %s316
          %322 = dma.hbm_to_vmem [thread:$0]  %s2, 256, %s317, [#allocation6], 64, 64, 4
        $region16: #{tpu_custom_call.1} parent=11 // pred_fallthru
          _
        // Predicated region
        $region17: #{tpu_custom_call.1} parent=11 // pred_check
          %p323 = pneg %p122
        $region18: #{tpu_custom_call.1} parent=11 // pred_check_branch
          %325 = sbr.rel (%p323) target = $region20
        $region19: #{tpu_custom_call.1} parent=11 // pred_region
          _
        $region20: #{tpu_custom_call.1} parent=11 // pred_fallthru
          _
        // Predicated region
        $region21: #{tpu_custom_call.1} parent=11 // pred_check
          %p326 = pneg %p143
        $region22: #{tpu_custom_call.1} parent=11 // pred_check_branch
          %328 = sbr.rel (%p326) target = $region24
        $region23: #{tpu_custom_call.1} parent=11 // pred_region
          %s330 = ssub.s32 256, 256
          %331 = vsyncadd [#allocation9], %s330
          %s332 = sshll.u32 [#allocation8], 4
          %s333 = int_to_ptr.vmem [resolvable:$true] %s332
          %338 = dma.hbm_to_vmem [thread:$0]  %s4, 256, %s333, [#allocation9], 64, 64, 4
        $region24: #{tpu_custom_call.1} parent=11 // pred_fallthru
          _
        // Predicated region
        $region25: #{tpu_custom_call.1} parent=11 // pred_check
          %p339 = pneg %p164
        $region26: #{tpu_custom_call.1} parent=11 // pred_check_branch
          %341 = sbr.rel (%p339) target = $region28
        $region27: #{tpu_custom_call.1} parent=11 // pred_region
          _
        $region28: #{tpu_custom_call.1} parent=11 // pred_fallthru
          _
        // Predicated region
        $region29: #{tpu_custom_call.1} parent=11 // pred_check
          %p342 = pneg %p185
        $region30: #{tpu_custom_call.1} parent=11 // pred_check_branch
          %344 = sbr.rel (%p342) target = $region32
        $region31: #{tpu_custom_call.1} parent=11 // pred_region
          %s346 = ssub.s32 256, 256
          %347 = vsyncadd [#allocation9], %s346
          %s348 = sshll.u32 [#allocation10], 4
          %s349 = int_to_ptr.vmem [resolvable:$true] %s348
          %354 = dma.hbm_to_vmem [thread:$0]  %s6, 256, %s349, [#allocation9], 64, 64, 4
        $region32: #{tpu_custom_call.1} parent=11 // pred_fallthru
          _
        // Predicated region
        $region33: #{tpu_custom_call.1} parent=11 // pred_check
          %p355 = pneg %p206
        $region34: #{tpu_custom_call.1} parent=11 // pred_check_branch
          %357 = sbr.rel (%p355) target = $region36
        $region35: #{tpu_custom_call.1} parent=11 // pred_region
          %s359 = ssub.s32 256, 256
          %360 = vsyncadd [#allocation12], %s359
          %s361 = sshll.u32 [#allocation11], 4
          %s362 = int_to_ptr.vmem [resolvable:$true] %s361
          %367 = dma.hbm_to_vmem [thread:$0]  %s7, 256, %s362, [#allocation12], 64, 64, 4
        $region36: #{tpu_custom_call.1} parent=11 // pred_fallthru
          _
        // Predicated region
        $region37: #{tpu_custom_call.1} parent=11 // pred_check
          %p368 = pneg %p227
        $region38: #{tpu_custom_call.1} parent=11 // pred_check_branch
          %370 = sbr.rel (%p368) target = $region40
        $region39: #{tpu_custom_call.1} parent=11 // pred_region
          _
        $region40: #{tpu_custom_call.1} parent=11 // pred_fallthru
          _
        // Predicated region
        $region41: #{tpu_custom_call.1} parent=11 // pred_check
          %p371 = pneg %p248
        $region42: #{tpu_custom_call.1} parent=11 // pred_check_branch
          %373 = sbr.rel (%p371) target = $region44
        $region43: #{tpu_custom_call.1} parent=11 // pred_region
          _
        $region44: #{tpu_custom_call.1} parent=11 // pred_fallthru
          _
        // Predicated region
        $region45: #{tpu_custom_call.1} parent=11 // pred_check
          %p374 = pneg %p269
        $region46: #{tpu_custom_call.1} parent=11 // pred_check_branch
          %376 = sbr.rel (%p374) target = $region48
        $region47: #{tpu_custom_call.1} parent=11 // pred_region
          _
        $region48: #{tpu_custom_call.1} parent=11 // pred_fallthru
          _
      $region12: #{tpu_custom_call.1} parent=5 // pred_fallthru
        _
      %p377 = scmp.lt.s32.totalorder %s28, 2
      // Predicated region
      $region49: #{tpu_custom_call.1} parent=5 // pred_check
        %p378 = pneg %p377
      $region50: #{tpu_custom_call.1} parent=5 // pred_check_branch
        %380 = sbr.rel (%p378) target = $region52
      $region51: #{tpu_custom_call.1} parent=5 // pred_region
        // Predicated region
        $region53: #{tpu_custom_call.1} parent=51 // pred_check
          %p381 = pneg %p48
        $region54: #{tpu_custom_call.1} parent=51 // pred_check_branch
          %383 = sbr.rel (%p381) target = $region56
        $region55: #{tpu_custom_call.1} parent=51 // pred_region
          %s384 = sand.u32 %s38, 1
          %s385 = scalar_lea.sflag [#allocation3], %s384
          %s386 = sand.u32 %s38, 1
          %s387 = smul.addr %s386, 32
          %s388 = scalar_lea.vmem [#allocation2], %s387
          %s389 = smul.u32 4, %s28
          %s391 = ssub.s32 512, 512
          %392 = vsyncadd %s385, %s391
          %s393 = smul.addr %s389, 128
          %s394 = scalar_lea.hbm %s0, %s393
          %s395 = sshll.u32 %s388, 4
          %s396 = int_to_ptr.vmem [resolvable:$true] %s395
          %401 = dma.hbm_to_vmem [thread:$0]  %s394, 512, %s396, %s385, 128, 128, 8
        $region56: #{tpu_custom_call.1} parent=51 // pred_fallthru
          _
        // Predicated region
        $region57: #{tpu_custom_call.1} parent=51 // pred_check
          %p402 = pneg %p74
        $region58: #{tpu_custom_call.1} parent=51 // pred_check_branch
          %404 = sbr.rel (%p402) target = $region60
        $region59: #{tpu_custom_call.1} parent=51 // pred_region
          %s405 = sand.u32 %s28, 1
          %s406 = scalar_lea.sflag [#allocation6], %s405
          %s407 = sand.u32 %s64, 1
          %s408 = smul.addr %s407, 32
          %s409 = scalar_lea.vmem [#allocation5], %s408
          %s410 = smul.u32 4, %s28
          %s412 = ssub.s32 512, 512
          %413 = vsyncadd %s406, %s412
          %s414 = smul.addr %s410, 128
          %s415 = scalar_lea.hbm %s1, %s414
          %s416 = sshll.u32 %s409, 4
          %s417 = int_to_ptr.vmem [resolvable:$true] %s416
          %422 = dma.hbm_to_vmem [thread:$0]  %s415, 512, %s417, %s406, 128, 128, 8
        $region60: #{tpu_custom_call.1} parent=51 // pred_fallthru
          _
      $region52: #{tpu_custom_call.1} parent=5 // pred_fallthru
        _
      %p423 = scmp.le.s32.totalorder 1, %s28
      %p424 = scmp.lt.s32.totalorder %s28, 3
      %p425 = pnand %p423, %p424
      %p426 = pneg %p425
      // Predicated region
      $region61: #{tpu_custom_call.1} parent=5 // pred_check
        _
      $region62: #{tpu_custom_call.1} parent=5 // pred_check_branch
        %428 = sbr.rel (%p425) target = $region64
      $region63: #{tpu_custom_call.1} parent=5 // pred_region
        %s429 = ssub.s32 %s28, 1
        %s430 = sand.u32 %s41, 1
        %s431 = scalar_lea.sflag [#allocation3], %s430
        %s432 = sand.u32 %s41, 1
        %s433 = smul.addr %s432, 32
        %s434 = scalar_lea.vmem [#allocation2], %s433
        // Predicated region
        $region65: #{tpu_custom_call.1} parent=63 // pred_check
          %p435 = pneg %p54
        $region66: #{tpu_custom_call.1} parent=63 // pred_check_branch
          %437 = sbr.rel (%p435) target = $region68
        $region67: #{tpu_custom_call.1} parent=63 // pred_region
          %438 = dma.done %s431, 512
        $region68: #{tpu_custom_call.1} parent=63 // pred_fallthru
          _
        %s439 = sand.u32 %s33, 1
        %s440 = scalar_lea.sflag [#allocation6], %s439
        %s441 = sand.u32 %s67, 1
        %s442 = smul.addr %s441, 32
        %s443 = scalar_lea.vmem [#allocation5], %s442
        // Predicated region
        $region69: #{tpu_custom_call.1} parent=63 // pred_check
          %p444 = pneg %p80
        $region70: #{tpu_custom_call.1} parent=63 // pred_check_branch
          %446 = sbr.rel (%p444) target = $region72
        $region71: #{tpu_custom_call.1} parent=63 // pred_region
          %447 = dma.done %s440, 512
        $region72: #{tpu_custom_call.1} parent=63 // pred_fallthru
          _
        // Predicated region
        $region73: #{tpu_custom_call.1} parent=63 // pred_check
          %p448 = pneg %p101
        $region74: #{tpu_custom_call.1} parent=63 // pred_check_branch
          %450 = sbr.rel (%p448) target = $region76
        $region75: #{tpu_custom_call.1} parent=63 // pred_region
          %451 = dma.done [#allocation6], 256
        $region76: #{tpu_custom_call.1} parent=63 // pred_fallthru
          _
        // Predicated region
        $region77: #{tpu_custom_call.1} parent=63 // pred_check
          %p452 = pneg %p143
        $region78: #{tpu_custom_call.1} parent=63 // pred_check_branch
          %454 = sbr.rel (%p452) target = $region80
        $region79: #{tpu_custom_call.1} parent=63 // pred_region
          %455 = dma.done [#allocation9], 256
        $region80: #{tpu_custom_call.1} parent=63 // pred_fallthru
          _
        // Predicated region
        $region81: #{tpu_custom_call.1} parent=63 // pred_check
          %p456 = pneg %p185
        $region82: #{tpu_custom_call.1} parent=63 // pred_check_branch
          %458 = sbr.rel (%p456) target = $region84
        $region83: #{tpu_custom_call.1} parent=63 // pred_region
          %459 = dma.done [#allocation9], 256
        $region84: #{tpu_custom_call.1} parent=63 // pred_fallthru
          _
        // Predicated region
        $region85: #{tpu_custom_call.1} parent=63 // pred_check
          %p460 = pneg %p206
        $region86: #{tpu_custom_call.1} parent=63 // pred_check_branch
          %462 = sbr.rel (%p460) target = $region88
        $region87: #{tpu_custom_call.1} parent=63 // pred_region
          %463 = dma.done [#allocation12], 256
        $region88: #{tpu_custom_call.1} parent=63 // pred_fallthru
          _
        %s464 = sand.u32 %s41, 1
        %s465 = scalar_lea.sflag [#allocation3], %s464
        %s466 = sand.u32 %s41, 1
        %s467 = smul.addr %s466, 32
        %s468 = scalar_lea.vmem [#allocation2], %s467
        %p469 = pneg %p54
        %p470 = pneg %p51
        %s471 = sand.u32 %s33, 1
        %s472 = scalar_lea.sflag [#allocation6], %s471
        %s473 = sand.u32 %s67, 1
        %s474 = smul.addr %s473, 32
        %s475 = scalar_lea.vmem [#allocation5], %s474
        %p476 = pneg %p80
        %p477 = pneg %p77
        %p478 = pneg %p101
        %p479 = pneg %p98
        %p480 = pneg %p122
        %p481 = pneg %p119
        %p482 = pneg %p143
        %p483 = pneg %p140
        %p484 = pneg %p164
        %p485 = pneg %p161
        %p486 = pneg %p185
        %p487 = pneg %p182
        %p488 = pneg %p206
        %p489 = pneg %p203
        %p490 = pneg %p227
        %p491 = pneg %p224
        %p492 = pneg %p248
        %p493 = pneg %p245
        %p494 = pneg %p269
        %p495 = pneg %p266
        %p496 = pneg %p295
        %p497 = pneg %p292
        %s498 = sand.u32 %s282, 1
        %s499 = scalar_lea.sflag [#allocation4], %s498
        %s500 = sand.u32 %s282, 1
        %s501 = smul.addr %s500, 32
        %s502 = scalar_lea.vmem [#allocation13], %s501
        %s503 = smul.u32 4, %s33
        %s504 = smul.u32 4, %s33
        %s505 = smul.u32 4, %s33
        %v507 = vld [vmem:[%s434] sm:$0xff]
        %v508 = vld [vmem:[%s434 + $0x8] sm:$0xff]
        %v509 = vld [vmem:[%s434 + $0x10] sm:$0xff]
        %v510 = vld [vmem:[%s434 + $0x18] sm:$0xff]
        %v511 = vld [vmem:[%s443] sm:$0xff]
        %v512 = vld [vmem:[%s443 + $0x8] sm:$0xff]
        %v513 = vld [vmem:[%s443 + $0x10] sm:$0xff]
        %v514 = vld [vmem:[%s443 + $0x18] sm:$0xff]
        %v515 = vpack.c.bf16 %v508, %v507
        %v516 = vpack.c.bf16 %v510, %v509
        %v517 = vld [vmem:[#allocation7] sm:$0xf]
        %v518 = vld [vmem:[#allocation7 + $0x4] sm:$0xf]
        %v519 = vld [vmem:[#allocation7 + $0x8] sm:$0xf]
        %v520 = vld [vmem:[#allocation7 + $0xc] sm:$0xf]
        %v521 = vld [vmem:[%s3] sm:$0x1]
        %v523 = vlaneseq
        %v524 = vshrl.u32 %v523, 7
        %v525 = vsub.s32 0, %v524
        %v526 = vrot.slane %v521, %v525
        %v532 = vunpack.c.l.b16 %v517
        %v533 = vunpack.c.l.b16 %v518
        %v534 = vunpack.c.l.b16 %v519
        %v535 = vunpack.c.l.b16 %v520
        %v536 = vpack.c.b16 %v533, %v532
        %v537 = vpack.c.b16 %v535, %v534
        %vm540 = vcmask 261120
        %v542 = vsel %vm540, %v515, 0
        %v545 = vsel %vm540, %v516, 0
        %547 = vmatprep.subr.bf16.mxu0 0
        %548 = vmatpush1.bf16.msra.mxu0 0
        %549 = vmatprep.subr.bf16.mxu0 0
        %550 = vmatpush1.bf16.msra.mxu0 0
        %551 = vmatprep.subr.bf16.mxu0 0
        %552 = vmatpush1.bf16.msra.mxu0 0
        %553 = vmatprep.subr.bf16.mxu0 0
        %554 = vmatpush1.bf16.msra.mxu0 0
        %555 = vmatprep.subr.bf16.mxu0 0
        %556 = vmatpush1.bf16.msra.mxu0 0
        %557 = vmatprep.subr.bf16.mxu0 0
        %558 = vmatpush1.bf16.msra.mxu0 0
        %559 = vmatprep.subr.bf16.mxu0 0
        %560 = vmatpush1.bf16.msra.mxu0 %v537
        %561 = vmatprep.subr.bf16.mxu0 0
        %562 = vmatpush1.bf16.msra.mxu0 %v536
        %563 = vmatprep.subr.bf16.mxu0 0
        %564 = vmatpush2.bf16.msra.mxu0 0
        %565 = vmatprep.subr.bf16.mxu0 0
        %566 = vmatpush2.bf16.msra.mxu0 0
        %567 = vmatprep.subr.bf16.mxu0 0
        %568 = vmatpush2.bf16.msra.mxu0 0
        %569 = vmatprep.subr.bf16.mxu0 0
        %570 = vmatpush2.bf16.msra.mxu0 0
        %571 = vmatprep.subr.bf16.mxu0 0
        %572 = vmatpush2.bf16.msra.mxu0 0
        %573 = vmatprep.subr.bf16.mxu0 0
        %574 = vmatpush2.bf16.msra.mxu0 0
        %575 = vmatprep.subr.bf16.mxu0 0
        %576 = vmatpush2.bf16.msra.mxu0 0
        %577 = vmatprep.subr.bf16.mxu0 0
        %578 = vmatpush2.bf16.msra.mxu0 0
        %579 = vmatprep.mubr.bf16.mxu0 0
        %580 = vmatmul.mubr.bf16.gmra.mxu0 %v542
        %v581 = vpop.f32.mrf.mxu0
        %v582 = vadd.f32 %v526, %v581
        %v583 = vpop.f32.mrf.mxu0
        %v584 = vpop.f32.mrf.mxu0
        %v585 = vadd.f32 %v526, %v584
        %v586 = vpop.f32.mrf.mxu0
        %587 = vmatprep.mubr.bf16.mxu0 0
        %588 = vmatmul.mubr.bf16.gmra.mxu0 %v545
        %v589 = vpop.f32.mrf.mxu0
        %v590 = vadd.f32 %v526, %v589
        %v591 = vpop.f32.mrf.mxu0
        %v592 = vpop.f32.mrf.mxu0
        %v593 = vadd.f32 %v526, %v592
        %v594 = vpop.f32.mrf.mxu0
        %595 = vdwg.mxu0
        %v596 = vpack.c.bf16 %v512, %v511
        %v597 = vpack.c.bf16 %v514, %v513
        %v598 = vld [vmem:[#allocation8] sm:$0xf]
        %v599 = vld [vmem:[#allocation8 + $0x4] sm:$0xf]
        %v600 = vld [vmem:[#allocation8 + $0x8] sm:$0xf]
        %v601 = vld [vmem:[#allocation8 + $0xc] sm:$0xf]
        %v602 = vld [vmem:[%s5] sm:$0x1]
        %v604 = vlaneseq
        %v605 = vshrl.u32 %v604, 7
        %v606 = vsub.s32 0, %v605
        %v607 = vrot.slane %v602, %v606
        %v613 = vunpack.c.l.b16 %v598
        %v614 = vunpack.c.l.b16 %v599
        %v615 = vunpack.c.l.b16 %v600
        %v616 = vunpack.c.l.b16 %v601
        %v617 = vpack.c.b16 %v614, %v613
        %v618 = vpack.c.b16 %v616, %v615
        %v622 = vsel %vm540, %v596, 0
        %v625 = vsel %vm540, %v597, 0
        %627 = vmatprep.subr.bf16.mxu0 0
        %628 = vmatpush1.bf16.msra.mxu0 0
        %629 = vmatprep.subr.bf16.mxu0 0
        %630 = vmatpush1.bf16.msra.mxu0 0
        %631 = vmatprep.subr.bf16.mxu0 0
        %632 = vmatpush1.bf16.msra.mxu0 0
        %633 = vmatprep.subr.bf16.mxu0 0
        %634 = vmatpush1.bf16.msra.mxu0 0
        %635 = vmatprep.subr.bf16.mxu0 0
        %636 = vmatpush1.bf16.msra.mxu0 0
        %637 = vmatprep.subr.bf16.mxu0 0
        %638 = vmatpush1.bf16.msra.mxu0 0
        %639 = vmatprep.subr.bf16.mxu0 0
        %640 = vmatpush1.bf16.msra.mxu0 %v618
        %641 = vmatprep.subr.bf16.mxu0 0
        %642 = vmatpush1.bf16.msra.mxu0 %v617
        %643 = vmatprep.subr.bf16.mxu0 0
        %644 = vmatpush2.bf16.msra.mxu0 0
        %645 = vmatprep.subr.bf16.mxu0 0
        %646 = vmatpush2.bf16.msra.mxu0 0
        %647 = vmatprep.subr.bf16.mxu0 0
        %648 = vmatpush2.bf16.msra.mxu0 0
        %649 = vmatprep.subr.bf16.mxu0 0
        %650 = vmatpush2.bf16.msra.mxu0 0
        %651 = vmatprep.subr.bf16.mxu0 0
        %652 = vmatpush2.bf16.msra.mxu0 0
        %653 = vmatprep.subr.bf16.mxu0 0
        %654 = vmatpush2.bf16.msra.mxu0 0
        %655 = vmatprep.subr.bf16.mxu0 0
        %656 = vmatpush2.bf16.msra.mxu0 0
        %657 = vmatprep.subr.bf16.mxu0 0
        %658 = vmatpush2.bf16.msra.mxu0 0
        %659 = vmatprep.mubr.bf16.mxu0 0
        %660 = vmatmul.mubr.bf16.gmra.mxu0 %v622
        %v661 = vpop.f32.mrf.mxu0
        %v662 = vadd.f32 %v607, %v661
        %v663 = vpop.f32.mrf.mxu0
        %v664 = vpop.f32.mrf.mxu0
        %v665 = vadd.f32 %v607, %v664
        %v666 = vpop.f32.mrf.mxu0
        %667 = vmatprep.mubr.bf16.mxu0 0
        %668 = vmatmul.mubr.bf16.gmra.mxu0 %v625
        %v669 = vpop.f32.mrf.mxu0
        %v670 = vadd.f32 %v607, %v669
        %v671 = vpop.f32.mrf.mxu0
        %v672 = vpop.f32.mrf.mxu0
        %v673 = vadd.f32 %v607, %v672
        %v674 = vpop.f32.mrf.mxu0
        %675 = vdwg.mxu0
        %680 = vrot.lane.b32.xlu0 %v582, 124
        %v681 = vpop.permute.xlu0 %680
        %682 = vrot.lane.b32.xlu0 %v585, 124
        %v683 = vpop.permute.xlu0 %682
        %684 = vrot.lane.b32.xlu0 %v590, 124
        %v685 = vpop.permute.xlu0 %684
        %686 = vrot.lane.b32.xlu0 %v593, 124
        %v687 = vpop.permute.xlu0 %686
        %692 = vrot.lane.b32.xlu0 %v582, 120
        %v693 = vpop.permute.xlu0 %692
        %694 = vrot.lane.b32.xlu0 %v585, 120
        %v695 = vpop.permute.xlu0 %694
        %696 = vrot.lane.b32.xlu0 %v590, 120
        %v697 = vpop.permute.xlu0 %696
        %698 = vrot.lane.b32.xlu0 %v593, 120
        %v699 = vpop.permute.xlu0 %698
        %704 = vrot.lane.b32.xlu0 %v582, 116
        %v705 = vpop.permute.xlu0 %704
        %706 = vrot.lane.b32.xlu0 %v585, 116
        %v707 = vpop.permute.xlu0 %706
        %708 = vrot.lane.b32.xlu0 %v590, 116
        %v709 = vpop.permute.xlu0 %708
        %710 = vrot.lane.b32.xlu0 %v593, 116
        %v711 = vpop.permute.xlu0 %710
        %716 = vrot.lane.b32.xlu0 %v582, 112
        %v717 = vpop.permute.xlu0 %716
        %718 = vrot.lane.b32.xlu0 %v585, 112
        %v719 = vpop.permute.xlu0 %718
        %720 = vrot.lane.b32.xlu0 %v590, 112
        %v721 = vpop.permute.xlu0 %720
        %722 = vrot.lane.b32.xlu0 %v593, 112
        %v723 = vpop.permute.xlu0 %722
        %728 = vrot.lane.b32.xlu0 %v582, 108
        %v729 = vpop.permute.xlu0 %728
        %730 = vrot.lane.b32.xlu0 %v585, 108
        %v731 = vpop.permute.xlu0 %730
        %732 = vrot.lane.b32.xlu0 %v590, 108
        %v733 = vpop.permute.xlu0 %732
        %734 = vrot.lane.b32.xlu0 %v593, 108
        %v735 = vpop.permute.xlu0 %734
        %740 = vrot.lane.b32.xlu0 %v582, 104
        %v741 = vpop.permute.xlu0 %740
        %742 = vrot.lane.b32.xlu0 %v585, 104
        %v743 = vpop.permute.xlu0 %742
        %744 = vrot.lane.b32.xlu0 %v590, 104
        %v745 = vpop.permute.xlu0 %744
        %746 = vrot.lane.b32.xlu0 %v593, 104
        %v747 = vpop.permute.xlu0 %746
        %752 = vrot.lane.b32.xlu0 %v582, 100
        %v753 = vpop.permute.xlu0 %752
        %754 = vrot.lane.b32.xlu0 %v585, 100
        %v755 = vpop.permute.xlu0 %754
        %756 = vrot.lane.b32.xlu0 %v590, 100
        %v757 = vpop.permute.xlu0 %756
        %758 = vrot.lane.b32.xlu0 %v593, 100
        %v759 = vpop.permute.xlu0 %758
        %v764 = vpack.c.bf16 %v582, %v582
        %v765 = vpack.c.bf16 %v585, %v585
        %v766 = vpack.c.bf16 %v590, %v590
        %v767 = vpack.c.bf16 %v593, %v593
        %v768 = vpack.c.bf16 %v681, %v681
        %v769 = vpack.c.bf16 %v683, %v683
        %v770 = vpack.c.bf16 %v685, %v685
        %v771 = vpack.c.bf16 %v687, %v687
        %v772 = vpack.c.bf16 %v693, %v693
        %v773 = vpack.c.bf16 %v695, %v695
        %v774 = vpack.c.bf16 %v697, %v697
        %v775 = vpack.c.bf16 %v699, %v699
        %v776 = vpack.c.bf16 %v705, %v705
        %v777 = vpack.c.bf16 %v707, %v707
        %v778 = vpack.c.bf16 %v709, %v709
        %v779 = vpack.c.bf16 %v711, %v711
        %v780 = vpack.c.bf16 %v717, %v717
        %v781 = vpack.c.bf16 %v719, %v719
        %v782 = vpack.c.bf16 %v721, %v721
        %v783 = vpack.c.bf16 %v723, %v723
        %v784 = vpack.c.bf16 %v729, %v729
        %v785 = vpack.c.bf16 %v731, %v731
        %v786 = vpack.c.bf16 %v733, %v733
        %v787 = vpack.c.bf16 %v735, %v735
        %v788 = vpack.c.bf16 %v741, %v741
        %v789 = vpack.c.bf16 %v743, %v743
        %v790 = vpack.c.bf16 %v745, %v745
        %v791 = vpack.c.bf16 %v747, %v747
        %v792 = vpack.c.bf16 %v753, %v753
        %v793 = vpack.c.bf16 %v755, %v755
        %v794 = vpack.c.bf16 %v757, %v757
        %v795 = vpack.c.bf16 %v759, %v759
        %800 = vrot.lane.b32.xlu0 %v662, 124
        %v801 = vpop.permute.xlu0 %800
        %802 = vrot.lane.b32.xlu0 %v665, 124
        %v803 = vpop.permute.xlu0 %802
        %804 = vrot.lane.b32.xlu0 %v670, 124
        %v805 = vpop.permute.xlu0 %804
        %806 = vrot.lane.b32.xlu0 %v673, 124
        %v807 = vpop.permute.xlu0 %806
        %812 = vrot.lane.b32.xlu0 %v662, 120
        %v813 = vpop.permute.xlu0 %812
        %814 = vrot.lane.b32.xlu0 %v665, 120
        %v815 = vpop.permute.xlu0 %814
        %816 = vrot.lane.b32.xlu0 %v670, 120
        %v817 = vpop.permute.xlu0 %816
        %818 = vrot.lane.b32.xlu0 %v673, 120
        %v819 = vpop.permute.xlu0 %818
        %824 = vrot.lane.b32.xlu0 %v662, 116
        %v825 = vpop.permute.xlu0 %824
        %826 = vrot.lane.b32.xlu0 %v665, 116
        %v827 = vpop.permute.xlu0 %826
        %828 = vrot.lane.b32.xlu0 %v670, 116
        %v829 = vpop.permute.xlu0 %828
        %830 = vrot.lane.b32.xlu0 %v673, 116
        %v831 = vpop.permute.xlu0 %830
        %836 = vrot.lane.b32.xlu0 %v662, 112
        %v837 = vpop.permute.xlu0 %836
        %838 = vrot.lane.b32.xlu0 %v665, 112
        %v839 = vpop.permute.xlu0 %838
        %840 = vrot.lane.b32.xlu0 %v670, 112
        %v841 = vpop.permute.xlu0 %840
        %842 = vrot.lane.b32.xlu0 %v673, 112
        %v843 = vpop.permute.xlu0 %842
        %848 = vrot.lane.b32.xlu0 %v662, 108
        %v849 = vpop.permute.xlu0 %848
        %850 = vrot.lane.b32.xlu0 %v665, 108
        %v851 = vpop.permute.xlu0 %850
        %852 = vrot.lane.b32.xlu0 %v670, 108
        %v853 = vpop.permute.xlu0 %852
        %854 = vrot.lane.b32.xlu0 %v673, 108
        %v855 = vpop.permute.xlu0 %854
        %860 = vrot.lane.b32.xlu0 %v662, 104
        %v861 = vpop.permute.xlu0 %860
        %862 = vrot.lane.b32.xlu0 %v665, 104
        %v863 = vpop.permute.xlu0 %862
        %864 = vrot.lane.b32.xlu0 %v670, 104
        %v865 = vpop.permute.xlu0 %864
        %866 = vrot.lane.b32.xlu0 %v673, 104
        %v867 = vpop.permute.xlu0 %866
        %872 = vrot.lane.b32.xlu0 %v662, 100
        %v873 = vpop.permute.xlu0 %872
        %874 = vrot.lane.b32.xlu0 %v665, 100
        %v875 = vpop.permute.xlu0 %874
        %876 = vrot.lane.b32.xlu0 %v670, 100
        %v877 = vpop.permute.xlu0 %876
        %878 = vrot.lane.b32.xlu0 %v673, 100
        %v879 = vpop.permute.xlu0 %878
        %v884 = vpack.c.bf16 %v662, %v662
        %v885 = vpack.c.bf16 %v665, %v665
        %v886 = vpack.c.bf16 %v670, %v670
        %v887 = vpack.c.bf16 %v673, %v673
        %v888 = vpack.c.bf16 %v801, %v801
        %v889 = vpack.c.bf16 %v803, %v803
        %v890 = vpack.c.bf16 %v805, %v805
        %v891 = vpack.c.bf16 %v807, %v807
        %v892 = vpack.c.bf16 %v813, %v813
        %v893 = vpack.c.bf16 %v815, %v815
        %v894 = vpack.c.bf16 %v817, %v817
        %v895 = vpack.c.bf16 %v819, %v819
        %v896 = vpack.c.bf16 %v825, %v825
        %v897 = vpack.c.bf16 %v827, %v827
        %v898 = vpack.c.bf16 %v829, %v829
        %v899 = vpack.c.bf16 %v831, %v831
        %v900 = vpack.c.bf16 %v837, %v837
        %v901 = vpack.c.bf16 %v839, %v839
        %v902 = vpack.c.bf16 %v841, %v841
        %v903 = vpack.c.bf16 %v843, %v843
        %v904 = vpack.c.bf16 %v849, %v849
        %v905 = vpack.c.bf16 %v851, %v851
        %v906 = vpack.c.bf16 %v853, %v853
        %v907 = vpack.c.bf16 %v855, %v855
        %v908 = vpack.c.bf16 %v861, %v861
        %v909 = vpack.c.bf16 %v863, %v863
        %v910 = vpack.c.bf16 %v865, %v865
        %v911 = vpack.c.bf16 %v867, %v867
        %v912 = vpack.c.bf16 %v873, %v873
        %v913 = vpack.c.bf16 %v875, %v875
        %v914 = vpack.c.bf16 %v877, %v877
        %v915 = vpack.c.bf16 %v879, %v879
        %vm916 = vcmask 31744
        %v918 = vsel %vm916, %v764, 0
        %v921 = vsel %vm916, %v884, 0
        %923 = vmatprep.subr.bf16.mxu0 0
        %924 = vmatpush1.bf16.xpose.msra.mxu0 0
        %925 = vmatprep.subr.bf16.mxu0 0
        %926 = vmatpush1.bf16.xpose.msra.mxu0 0
        %927 = vmatprep.subr.bf16.mxu0 0
        %928 = vmatpush1.bf16.xpose.msra.mxu0 0
        %929 = vmatprep.subr.bf16.mxu0 0
        %930 = vmatpush1.bf16.xpose.msra.mxu0 0
        %931 = vmatprep.subr.bf16.mxu0 0
        %932 = vmatpush1.bf16.xpose.msra.mxu0 0
        %933 = vmatprep.subr.bf16.mxu0 0
        %934 = vmatpush1.bf16.xpose.msra.mxu0 0
        %935 = vmatprep.subr.bf16.mxu0 0
        %936 = vmatpush1.bf16.xpose.msra.mxu0 0
        %937 = vmatprep.subr.bf16.mxu0 0
        %938 = vmatpush1.bf16.xpose.msra.mxu0 %v921
        %939 = vmatprep.subr.bf16.mxu0 0
        %940 = vmatpush2.bf16.xpose.msra.mxu0 0
        %941 = vmatprep.subr.bf16.mxu0 0
        %942 = vmatpush2.bf16.xpose.msra.mxu0 0
        %943 = vmatprep.subr.bf16.mxu0 0
        %944 = vmatpush2.bf16.xpose.msra.mxu0 0
        %945 = vmatprep.subr.bf16.mxu0 0
        %946 = vmatpush2.bf16.xpose.msra.mxu0 0
        %947 = vmatprep.subr.bf16.mxu0 0
        %948 = vmatpush2.bf16.xpose.msra.mxu0 0
        %949 = vmatprep.subr.bf16.mxu0 0
        %950 = vmatpush2.bf16.xpose.msra.mxu0 0
        %951 = vmatprep.subr.bf16.mxu0 0
        %952 = vmatpush2.bf16.xpose.msra.mxu0 0
        %953 = vmatprep.subr.bf16.mxu0 0
        %954 = vmatpush2.bf16.xpose.msra.mxu0 0
        %955 = vmatprep.mubr.bf16.mxu0 0
        %956 = vmatmul.mubr.bf16.gmra.mxu0 %v918
        %v957 = vpop.f32.mrf.mxu0
        %v958 = vadd.f32 0.0, %v957
        %v959 = vpop.f32.mrf.mxu0
        %v960 = vpop.f32.mrf.mxu0
        %v961 = vpop.f32.mrf.mxu0
        %962 = vdwg.mxu0
        %v964 = vsel %vm916, %v765, 0
        %v967 = vsel %vm916, %v885, 0
        %969 = vmatprep.subr.bf16.mxu0 0
        %970 = vmatpush1.bf16.xpose.msra.mxu0 0
        %971 = vmatprep.subr.bf16.mxu0 0
        %972 = vmatpush1.bf16.xpose.msra.mxu0 0
        %973 = vmatprep.subr.bf16.mxu0 0
        %974 = vmatpush1.bf16.xpose.msra.mxu0 0
        %975 = vmatprep.subr.bf16.mxu0 0
        %976 = vmatpush1.bf16.xpose.msra.mxu0 0
        %977 = vmatprep.subr.bf16.mxu0 0
        %978 = vmatpush1.bf16.xpose.msra.mxu0 0
        %979 = vmatprep.subr.bf16.mxu0 0
        %980 = vmatpush1.bf16.xpose.msra.mxu0 0
        %981 = vmatprep.subr.bf16.mxu0 0
        %982 = vmatpush1.bf16.xpose.msra.mxu0 0
        %983 = vmatprep.subr.bf16.mxu0 0
        %984 = vmatpush1.bf16.xpose.msra.mxu0 %v967
        %985 = vmatprep.subr.bf16.mxu0 0
        %986 = vmatpush2.bf16.xpose.msra.mxu0 0
        %987 = vmatprep.subr.bf16.mxu0 0
        %988 = vmatpush2.bf16.xpose.msra.mxu0 0
        %989 = vmatprep.subr.bf16.mxu0 0
        %990 = vmatpush2.bf16.xpose.msra.mxu0 0
        %991 = vmatprep.subr.bf16.mxu0 0
        %992 = vmatpush2.bf16.xpose.msra.mxu0 0
        %993 = vmatprep.subr.bf16.mxu0 0
        %994 = vmatpush2.bf16.xpose.msra.mxu0 0
        %995 = vmatprep.subr.bf16.mxu0 0
        %996 = vmatpush2.bf16.xpose.msra.mxu0 0
        %997 = vmatprep.subr.bf16.mxu0 0
        %998 = vmatpush2.bf16.xpose.msra.mxu0 0
        %999 = vmatprep.subr.bf16.mxu0 0
        %1000 = vmatpush2.bf16.xpose.msra.mxu0 0
        %1001 = vmatprep.mubr.bf16.mxu0 0
        %1002 = vmatmul.mubr.bf16.gmra.mxu0 %v964
        %v1003 = vpop.f32.mrf.mxu0
        %v1004 = vadd.f32 0.0, %v1003
        %v1005 = vpop.f32.mrf.mxu0
        %v1006 = vpop.f32.mrf.mxu0
        %v1007 = vpop.f32.mrf.mxu0
        %1008 = vdwg.mxu0
        %v1010 = vsel %vm916, %v766, 0
        %v1013 = vsel %vm916, %v886, 0
        %1015 = vmatprep.subr.bf16.mxu0 0
        %1016 = vmatpush1.bf16.xpose.msra.mxu0 0
        %1017 = vmatprep.subr.bf16.mxu0 0
        %1018 = vmatpush1.bf16.xpose.msra.mxu0 0
        %1019 = vmatprep.subr.bf16.mxu0 0
        %1020 = vmatpush1.bf16.xpose.msra.mxu0 0
        %1021 = vmatprep.subr.bf16.mxu0 0
        %1022 = vmatpush1.bf16.xpose.msra.mxu0 0
        %1023 = vmatprep.subr.bf16.mxu0 0
        %1024 = vmatpush1.bf16.xpose.msra.mxu0 0
        %1025 = vmatprep.subr.bf16.mxu0 0
        %1026 = vmatpush1.bf16.xpose.msra.mxu0 0
        %1027 = vmatprep.subr.bf16.mxu0 0
        %1028 = vmatpush1.bf16.xpose.msra.mxu0 0
        %1029 = vmatprep.subr.bf16.mxu0 0
        %1030 = vmatpush1.bf16.xpose.msra.mxu0 %v1013
        %1031 = vmatprep.subr.bf16.mxu0 0
        %1032 = vmatpush2.bf16.xpose.msra.mxu0 0
        %1033 = vmatprep.subr.bf16.mxu0 0
        %1034 = vmatpush2.bf16.xpose.msra.mxu0 0
        %1035 = vmatprep.subr.bf16.mxu0 0
        %1036 = vmatpush2.bf16.xpose.msra.mxu0 0
        %1037 = vmatprep.subr.bf16.mxu0 0
        %1038 = vmatpush2.bf16.xpose.msra.mxu0 0
        %1039 = vmatprep.subr.bf16.mxu0 0
        %1040 = vmatpush2.bf16.xpose.msra.mxu0 0
        %1041 = vmatprep.subr.bf16.mxu0 0
        %1042 = vmatpush2.bf16.xpose.msra.mxu0 0
        %1043 = vmatprep.subr.bf16.mxu0 0
        %1044 = vmatpush2.bf16.xpose.msra.mxu0 0
        %1045 = vmatprep.subr.bf16.mxu0 0
        %1046 = vmatpush2.bf16.xpose.msra.mxu0 0
        %1047 = vmatprep.mubr.bf16.mxu0 0
        %1048 = vmatmul.mubr.bf16.gmra.mxu0 %v1010
        %v1049 = vpop.f32.mrf.mxu0
        %v1050 = vadd.f32 0.0, %v1049
        %v1051 = vpop.f32.mrf.mxu0
        %v1052 = vpop.f32.mrf.mxu0
        %v1053 = vpop.f32.mrf.mxu0
        %1054 = vdwg.mxu0
        %v1056 = vsel %vm916, %v767, 0
        %v1059 = vsel %vm916, %v887, 0
        %1061 = vmatprep.subr.bf16.mxu0 0
        %1062 = vmatpush1.bf16.xpose.msra.mxu0 0
        %1063 = vmatprep.subr.bf16.mxu0 0
        %1064 = vmatpush1.bf16.xpose.msra.mxu0 0
        %1065 = vmatprep.subr.bf16.mxu0 0
        %1066 = vmatpush1.bf16.xpose.msra.mxu0 0
        %1067 = vmatprep.subr.bf16.mxu0 0
        %1068 = vmatpush1.bf16.xpose.msra.mxu0 0
        %1069 = vmatprep.subr.bf16.mxu0 0
        %1070 = vmatpush1.bf16.xpose.msra.mxu0 0
        %1071 = vmatprep.subr.bf16.mxu0 0
        %1072 = vmatpush1.bf16.xpose.msra.mxu0 0
        %1073 = vmatprep.subr.bf16.mxu0 0
        %1074 = vmatpush1.bf16.xpose.msra.mxu0 0
        %1075 = vmatprep.subr.bf16.mxu0 0
        %1076 = vmatpush1.bf16.xpose.msra.mxu0 %v1059
        %1077 = vmatprep.subr.bf16.mxu0 0
        %1078 = vmatpush2.bf16.xpose.msra.mxu0 0
        %1079 = vmatprep.subr.bf16.mxu0 0
        %1080 = vmatpush2.bf16.xpose.msra.mxu0 0
        %1081 = vmatprep.subr.bf16.mxu0 0
        %1082 = vmatpush2.bf16.xpose.msra.mxu0 0
        %1083 = vmatprep.subr.bf16.mxu0 0
        %1084 = vmatpush2.bf16.xpose.msra.mxu0 0
        %1085 = vmatprep.subr.bf16.mxu0 0
        %1086 = vmatpush2.bf16.xpose.msra.mxu0 0
        %1087 = vmatprep.subr.bf16.mxu0 0
        %1088 = vmatpush2.bf16.xpose.msra.mxu0 0
        %1089 = vmatprep.subr.bf16.mxu0 0
        %1090 = vmatpush2.bf16.xpose.msra.mxu0 0
        %1091 = vmatprep.subr.bf16.mxu0 0
        %1092 = vmatpush2.bf16.xpose.msra.mxu0 0
        %1093 = vmatprep.mubr.bf16.mxu0 0
        %1094 = vmatmul.mubr.bf16.gmra.mxu0 %v1056
        %v1095 = vpop.f32.mrf.mxu0
        %v1096 = vadd.f32 0.0, %v1095
        %v1097 = vpop.f32.mrf.mxu0
        %v1098 = vpop.f32.mrf.mxu0
        %v1099 = vpop.f32.mrf.mxu0
        %1100 = vdwg.mxu0
        %v1102 = vsel %vm916, %v768, 0
        %v1105 = vsel %vm916, %v888, 0
        %1107 = vmatprep.subr.bf16.mxu0 0
        %1108 = vmatpush1.bf16.xpose.msra.mxu0 0
        %1109 = vmatprep.subr.bf16.mxu0 0
        %1110 = vmatpush1.bf16.xpose.msra.mxu0 0
        %1111 = vmatprep.subr.bf16.mxu0 0
        %1112 = vmatpush1.bf16.xpose.msra.mxu0 0
        %1113 = vmatprep.subr.bf16.mxu0 0
        %1114 = vmatpush1.bf16.xpose.msra.mxu0 0
        %1115 = vmatprep.subr.bf16.mxu0 0
        %1116 = vmatpush1.bf16.xpose.msra.mxu0 0
        %1117 = vmatprep.subr.bf16.mxu0 0
        %1118 = vmatpush1.bf16.xpose.msra.mxu0 0
        %1119 = vmatprep.subr.bf16.mxu0 0
        %1120 = vmatpush1.bf16.xpose.msra.mxu0 0
        %1121 = vmatprep.subr.bf16.mxu0 0
        %1122 = vmatpush1.bf16.xpose.msra.mxu0 %v1105
        %1123 = vmatprep.subr.bf16.mxu0 0
        %1124 = vmatpush2.bf16.xpose.msra.mxu0 0
        %1125 = vmatprep.subr.bf16.mxu0 0
        %1126 = vmatpush2.bf16.xpose.msra.mxu0 0
        %1127 = vmatprep.subr.bf16.mxu0 0
        %1128 = vmatpush2.bf16.xpose.msra.mxu0 0
        %1129 = vmatprep.subr.bf16.mxu0 0
        %1130 = vmatpush2.bf16.xpose.msra.mxu0 0
        %1131 = vmatprep.subr.bf16.mxu0 0
        %1132 = vmatpush2.bf16.xpose.msra.mxu0 0
        %1133 = vmatprep.subr.bf16.mxu0 0
        %1134 = vmatpush2.bf16.xpose.msra.mxu0 0
        %1135 = vmatprep.subr.bf16.mxu0 0
        %1136 = vmatpush2.bf16.xpose.msra.mxu0 0
        %1137 = vmatprep.subr.bf16.mxu0 0
        %1138 = vmatpush2.bf16.xpose.msra.mxu0 0
        %1139 = vmatprep.mubr.bf16.mxu0 0
        %1140 = vmatmul.mubr.bf16.gmra.mxu0 %v1102
        %v1141 = vpop.f32.mrf.mxu0
        %v1142 = vadd.f32 0.0, %v1141
        %v1143 = vpop.f32.mrf.mxu0
        %v1144 = vpop.f32.mrf.mxu0
        %v1145 = vpop.f32.mrf.mxu0
        %1146 = vdwg.mxu0
        %v1148 = vsel %vm916, %v769, 0
        %v1151 = vsel %vm916, %v889, 0
        %1153 = vmatprep.subr.bf16.mxu0 0
        %1154 = vmatpush1.bf16.xpose.msra.mxu0 0
        %1155 = vmatprep.subr.bf16.mxu0 0
        %1156 = vmatpush1.bf16.xpose.msra.mxu0 0
        %1157 = vmatprep.subr.bf16.mxu0 0
        %1158 = vmatpush1.bf16.xpose.msra.mxu0 0
        %1159 = vmatprep.subr.bf16.mxu0 0
        %1160 = vmatpush1.bf16.xpose.msra.mxu0 0
        %1161 = vmatprep.subr.bf16.mxu0 0
        %1162 = vmatpush1.bf16.xpose.msra.mxu0 0
        %1163 = vmatprep.subr.bf16.mxu0 0
        %1164 = vmatpush1.bf16.xpose.msra.mxu0 0
        %1165 = vmatprep.subr.bf16.mxu0 0
        %1166 = vmatpush1.bf16.xpose.msra.mxu0 0
        %1167 = vmatprep.subr.bf16.mxu0 0
        %1168 = vmatpush1.bf16.xpose.msra.mxu0 %v1151
        %1169 = vmatprep.subr.bf16.mxu0 0
        %1170 = vmatpush2.bf16.xpose.msra.mxu0 0
        %1171 = vmatprep.subr.bf16.mxu0 0
        %1172 = vmatpush2.bf16.xpose.msra.mxu0 0
        %1173 = vmatprep.subr.bf16.mxu0 0
        %1174 = vmatpush2.bf16.xpose.msra.mxu0 0
        %1175 = vmatprep.subr.bf16.mxu0 0
        %1176 = vmatpush2.bf16.xpose.msra.mxu0 0
        %1177 = vmatprep.subr.bf16.mxu0 0
        %1178 = vmatpush2.bf16.xpose.msra.mxu0 0
        %1179 = vmatprep.subr.bf16.mxu0 0
        %1180 = vmatpush2.bf16.xpose.msra.mxu0 0
        %1181 = vmatprep.subr.bf16.mxu0 0
        %1182 = vmatpush2.bf16.xpose.msra.mxu0 0
        %1183 = vmatprep.subr.bf16.mxu0 0
        %1184 = vmatpush2.bf16.xpose.msra.mxu0 0
        %1185 = vmatprep.mubr.bf16.mxu0 0
        %1186 = vmatmul.mubr.bf16.gmra.mxu0 %v1148
        %v1187 = vpop.f32.mrf.mxu0
        %v1188 = vadd.f32 0.0, %v1187
        %v1189 = vpop.f32.mrf.mxu0
        %v1190 = vpop.f32.mrf.mxu0
        %v1191 = vpop.f32.mrf.mxu0
        %1192 = vdwg.mxu0
        %v1194 = vsel %vm916, %v770, 0
        %v1197 = vsel %vm916, %v890, 0
        %1199 = vmatprep.subr.bf16.mxu0 0
        %1200 = vmatpush1.bf16.xpose.msra.mxu0 0
        %1201 = vmatprep.subr.bf16.mxu0 0
        %1202 = vmatpush1.bf16.xpose.msra.mxu0 0
        %1203 = vmatprep.subr.bf16.mxu0 0
        %1204 = vmatpush1.bf16.xpose.msra.mxu0 0
        %1205 = vmatprep.subr.bf16.mxu0 0
        %1206 = vmatpush1.bf16.xpose.msra.mxu0 0
        %1207 = vmatprep.subr.bf16.mxu0 0
        %1208 = vmatpush1.bf16.xpose.msra.mxu0 0
        %1209 = vmatprep.subr.bf16.mxu0 0
        %1210 = vmatpush1.bf16.xpose.msra.mxu0 0
        %1211 = vmatprep.subr.bf16.mxu0 0
        %1212 = vmatpush1.bf16.xpose.msra.mxu0 0
        %1213 = vmatprep.subr.bf16.mxu0 0
        %1214 = vmatpush1.bf16.xpose.msra.mxu0 %v1197
        %1215 = vmatprep.subr.bf16.mxu0 0
        %1216 = vmatpush2.bf16.xpose.msra.mxu0 0
        %1217 = vmatprep.subr.bf16.mxu0 0
        %1218 = vmatpush2.bf16.xpose.msra.mxu0 0
        %1219 = vmatprep.subr.bf16.mxu0 0
        %1220 = vmatpush2.bf16.xpose.msra.mxu0 0
        %1221 = vmatprep.subr.bf16.mxu0 0
        %1222 = vmatpush2.bf16.xpose.msra.mxu0 0
        %1223 = vmatprep.subr.bf16.mxu0 0
        %1224 = vmatpush2.bf16.xpose.msra.mxu0 0
        %1225 = vmatprep.subr.bf16.mxu0 0
        %1226 = vmatpush2.bf16.xpose.msra.mxu0 0
        %1227 = vmatprep.subr.bf16.mxu0 0
        %1228 = vmatpush2.bf16.xpose.msra.mxu0 0
        %1229 = vmatprep.subr.bf16.mxu0 0
        %1230 = vmatpush2.bf16.xpose.msra.mxu0 0
        %1231 = vmatprep.mubr.bf16.mxu0 0
        %1232 = vmatmul.mubr.bf16.gmra.mxu0 %v1194
        %v1233 = vpop.f32.mrf.mxu0
        %v1234 = vadd.f32 0.0, %v1233
        %v1235 = vpop.f32.mrf.mxu0
        %v1236 = vpop.f32.mrf.mxu0
        %v1237 = vpop.f32.mrf.mxu0
        %1238 = vdwg.mxu0
        %v1240 = vsel %vm916, %v771, 0
        %v1243 = vsel %vm916, %v891, 0
        %1245 = vmatprep.subr.bf16.mxu0 0
        %1246 = vmatpush1.bf16.xpose.msra.mxu0 0
        %1247 = vmatprep.subr.bf16.mxu0 0
        %1248 = vmatpush1.bf16.xpose.msra.mxu0 0
        %1249 = vmatprep.subr.bf16.mxu0 0
        %1250 = vmatpush1.bf16.xpose.msra.mxu0 0
        %1251 = vmatprep.subr.bf16.mxu0 0
        %1252 = vmatpush1.bf16.xpose.msra.mxu0 0
        %1253 = vmatprep.subr.bf16.mxu0 0
        %1254 = vmatpush1.bf16.xpose.msra.mxu0 0
        %1255 = vmatprep.subr.bf16.mxu0 0
        %1256 = vmatpush1.bf16.xpose.msra.mxu0 0
        %1257 = vmatprep.subr.bf16.mxu0 0
        %1258 = vmatpush1.bf16.xpose.msra.mxu0 0
        %1259 = vmatprep.subr.bf16.mxu0 0
        %1260 = vmatpush1.bf16.xpose.msra.mxu0 %v1243
        %1261 = vmatprep.subr.bf16.mxu0 0
        %1262 = vmatpush2.bf16.xpose.msra.mxu0 0
        %1263 = vmatprep.subr.bf16.mxu0 0
        %1264 = vmatpush2.bf16.xpose.msra.mxu0 0
        %1265 = vmatprep.subr.bf16.mxu0 0
        %1266 = vmatpush2.bf16.xpose.msra.mxu0 0
        %1267 = vmatprep.subr.bf16.mxu0 0
        %1268 = vmatpush2.bf16.xpose.msra.mxu0 0
        %1269 = vmatprep.subr.bf16.mxu0 0
        %1270 = vmatpush2.bf16.xpose.msra.mxu0 0
        %1271 = vmatprep.subr.bf16.mxu0 0
        %1272 = vmatpush2.bf16.xpose.msra.mxu0 0
        %1273 = vmatprep.subr.bf16.mxu0 0
        %1274 = vmatpush2.bf16.xpose.msra.mxu0 0
        %1275 = vmatprep.subr.bf16.mxu0 0
        %1276 = vmatpush2.bf16.xpose.msra.mxu0 0
        %1277 = vmatprep.mubr.bf16.mxu0 0
        %1278 = vmatmul.mubr.bf16.gmra.mxu0 %v1240
        %v1279 = vpop.f32.mrf.mxu0
        %v1280 = vadd.f32 0.0, %v1279
        %v1281 = vpop.f32.mrf.mxu0
        %v1282 = vpop.f32.mrf.mxu0
        %v1283 = vpop.f32.mrf.mxu0
        %1284 = vdwg.mxu0
        %v1286 = vsel %vm916, %v772, 0
        %v1289 = vsel %vm916, %v892, 0
        %1291 = vmatprep.subr.bf16.mxu0 0
        %1292 = vmatpush1.bf16.xpose.msra.mxu0 0
        %1293 = vmatprep.subr.bf16.mxu0 0
        %1294 = vmatpush1.bf16.xpose.msra.mxu0 0
        %1295 = vmatprep.subr.bf16.mxu0 0
        %1296 = vmatpush1.bf16.xpose.msra.mxu0 0
        %1297 = vmatprep.subr.bf16.mxu0 0
        %1298 = vmatpush1.bf16.xpose.msra.mxu0 0
        %1299 = vmatprep.subr.bf16.mxu0 0
        %1300 = vmatpush1.bf16.xpose.msra.mxu0 0
        %1301 = vmatprep.subr.bf16.mxu0 0
        %1302 = vmatpush1.bf16.xpose.msra.mxu0 0
        %1303 = vmatprep.subr.bf16.mxu0 0
        %1304 = vmatpush1.bf16.xpose.msra.mxu0 0
        %1305 = vmatprep.subr.bf16.mxu0 0
        %1306 = vmatpush1.bf16.xpose.msra.mxu0 %v1289
        %1307 = vmatprep.subr.bf16.mxu0 0
        %1308 = vmatpush2.bf16.xpose.msra.mxu0 0
        %1309 = vmatprep.subr.bf16.mxu0 0
        %1310 = vmatpush2.bf16.xpose.msra.mxu0 0
        %1311 = vmatprep.subr.bf16.mxu0 0
        %1312 = vmatpush2.bf16.xpose.msra.mxu0 0
        %1313 = vmatprep.subr.bf16.mxu0 0
        %1314 = vmatpush2.bf16.xpose.msra.mxu0 0
        %1315 = vmatprep.subr.bf16.mxu0 0
        %1316 = vmatpush2.bf16.xpose.msra.mxu0 0
        %1317 = vmatprep.subr.bf16.mxu0 0
        %1318 = vmatpush2.bf16.xpose.msra.mxu0 0
        %1319 = vmatprep.subr.bf16.mxu0 0
        %1320 = vmatpush2.bf16.xpose.msra.mxu0 0
        %1321 = vmatprep.subr.bf16.mxu0 0
        %1322 = vmatpush2.bf16.xpose.msra.mxu0 0
        %1323 = vmatprep.mubr.bf16.mxu0 0
        %1324 = vmatmul.mubr.bf16.gmra.mxu0 %v1286
        %v1325 = vpop.f32.mrf.mxu0
        %v1326 = vadd.f32 0.0, %v1325
        %v1327 = vpop.f32.mrf.mxu0
        %v1328 = vpop.f32.mrf.mxu0
        %v1329 = vpop.f32.mrf.mxu0
        %1330 = vdwg.mxu0
        %v1332 = vsel %vm916, %v773, 0
        %v1335 = vsel %vm916, %v893, 0
        %1337 = vmatprep.subr.bf16.mxu0 0
        %1338 = vmatpush1.bf16.xpose.msra.mxu0 0
        %1339 = vmatprep.subr.bf16.mxu0 0
        %1340 = vmatpush1.bf16.xpose.msra.mxu0 0
        %1341 = vmatprep.subr.bf16.mxu0 0
        %1342 = vmatpush1.bf16.xpose.msra.mxu0 0
        %1343 = vmatprep.subr.bf16.mxu0 0
        %1344 = vmatpush1.bf16.xpose.msra.mxu0 0
        %1345 = vmatprep.subr.bf16.mxu0 0
        %1346 = vmatpush1.bf16.xpose.msra.mxu0 0
        %1347 = vmatprep.subr.bf16.mxu0 0
        %1348 = vmatpush1.bf16.xpose.msra.mxu0 0
        %1349 = vmatprep.subr.bf16.mxu0 0
        %1350 = vmatpush1.bf16.xpose.msra.mxu0 0
        %1351 = vmatprep.subr.bf16.mxu0 0
        %1352 = vmatpush1.bf16.xpose.msra.mxu0 %v1335
        %1353 = vmatprep.subr.bf16.mxu0 0
        %1354 = vmatpush2.bf16.xpose.msra.mxu0 0
        %1355 = vmatprep.subr.bf16.mxu0 0
        %1356 = vmatpush2.bf16.xpose.msra.mxu0 0
        %1357 = vmatprep.subr.bf16.mxu0 0
        %1358 = vmatpush2.bf16.xpose.msra.mxu0 0
        %1359 = vmatprep.subr.bf16.mxu0 0
        %1360 = vmatpush2.bf16.xpose.msra.mxu0 0
        %1361 = vmatprep.subr.bf16.mxu0 0
        %1362 = vmatpush2.bf16.xpose.msra.mxu0 0
        %1363 = vmatprep.subr.bf16.mxu0 0
        %1364 = vmatpush2.bf16.xpose.msra.mxu0 0
        %1365 = vmatprep.subr.bf16.mxu0 0
        %1366 = vmatpush2.bf16.xpose.msra.mxu0 0
        %1367 = vmatprep.subr.bf16.mxu0 0
        %1368 = vmatpush2.bf16.xpose.msra.mxu0 0
        %1369 = vmatprep.mubr.bf16.mxu0 0
        %1370 = vmatmul.mubr.bf16.gmra.mxu0 %v1332
        %v1371 = vpop.f32.mrf.mxu0
        %v1372 = vadd.f32 0.0, %v1371
        %v1373 = vpop.f32.mrf.mxu0
        %v1374 = vpop.f32.mrf.mxu0
        %v1375 = vpop.f32.mrf.mxu0
        %1376 = vdwg.mxu0
        %v1378 = vsel %vm916, %v774, 0
        %v1381 = vsel %vm916, %v894, 0
        %1383 = vmatprep.subr.bf16.mxu0 0
        %1384 = vmatpush1.bf16.xpose.msra.mxu0 0
        %1385 = vmatprep.subr.bf16.mxu0 0
        %1386 = vmatpush1.bf16.xpose.msra.mxu0 0
        %1387 = vmatprep.subr.bf16.mxu0 0
        %1388 = vmatpush1.bf16.xpose.msra.mxu0 0
        %1389 = vmatprep.subr.bf16.mxu0 0
        %1390 = vmatpush1.bf16.xpose.msra.mxu0 0
        %1391 = vmatprep.subr.bf16.mxu0 0
        %1392 = vmatpush1.bf16.xpose.msra.mxu0 0
        %1393 = vmatprep.subr.bf16.mxu0 0
        %1394 = vmatpush1.bf16.xpose.msra.mxu0 0
        %1395 = vmatprep.subr.bf16.mxu0 0
        %1396 = vmatpush1.bf16.xpose.msra.mxu0 0
        %1397 = vmatprep.subr.bf16.mxu0 0
        %1398 = vmatpush1.bf16.xpose.msra.mxu0 %v1381
        %1399 = vmatprep.subr.bf16.mxu0 0
        %1400 = vmatpush2.bf16.xpose.msra.mxu0 0
        %1401 = vmatprep.subr.bf16.mxu0 0
        %1402 = vmatpush2.bf16.xpose.msra.mxu0 0
        %1403 = vmatprep.subr.bf16.mxu0 0
        %1404 = vmatpush2.bf16.xpose.msra.mxu0 0
        %1405 = vmatprep.subr.bf16.mxu0 0
        %1406 = vmatpush2.bf16.xpose.msra.mxu0 0
        %1407 = vmatprep.subr.bf16.mxu0 0
        %1408 = vmatpush2.bf16.xpose.msra.mxu0 0
        %1409 = vmatprep.subr.bf16.mxu0 0
        %1410 = vmatpush2.bf16.xpose.msra.mxu0 0
        %1411 = vmatprep.subr.bf16.mxu0 0
        %1412 = vmatpush2.bf16.xpose.msra.mxu0 0
        %1413 = vmatprep.subr.bf16.mxu0 0
        %1414 = vmatpush2.bf16.xpose.msra.mxu0 0
        %1415 = vmatprep.mubr.bf16.mxu0 0
        %1416 = vmatmul.mubr.bf16.gmra.mxu0 %v1378
        %v1417 = vpop.f32.mrf.mxu0
        %v1418 = vadd.f32 0.0, %v1417
        %v1419 = vpop.f32.mrf.mxu0
        %v1420 = vpop.f32.mrf.mxu0
        %v1421 = vpop.f32.mrf.mxu0
        %1422 = vdwg.mxu0
        %v1424 = vsel %vm916, %v775, 0
        %v1427 = vsel %vm916, %v895, 0
        %1429 = vmatprep.subr.bf16.mxu0 0
        %1430 = vmatpush1.bf16.xpose.msra.mxu0 0
        %1431 = vmatprep.subr.bf16.mxu0 0
        %1432 = vmatpush1.bf16.xpose.msra.mxu0 0
        %1433 = vmatprep.subr.bf16.mxu0 0
        %1434 = vmatpush1.bf16.xpose.msra.mxu0 0
        %1435 = vmatprep.subr.bf16.mxu0 0
        %1436 = vmatpush1.bf16.xpose.msra.mxu0 0
        %1437 = vmatprep.subr.bf16.mxu0 0
        %1438 = vmatpush1.bf16.xpose.msra.mxu0 0
        %1439 = vmatprep.subr.bf16.mxu0 0
        %1440 = vmatpush1.bf16.xpose.msra.mxu0 0
        %1441 = vmatprep.subr.bf16.mxu0 0
        %1442 = vmatpush1.bf16.xpose.msra.mxu0 0
        %1443 = vmatprep.subr.bf16.mxu0 0
        %1444 = vmatpush1.bf16.xpose.msra.mxu0 %v1427
        %1445 = vmatprep.subr.bf16.mxu0 0
        %1446 = vmatpush2.bf16.xpose.msra.mxu0 0
        %1447 = vmatprep.subr.bf16.mxu0 0
        %1448 = vmatpush2.bf16.xpose.msra.mxu0 0
        %1449 = vmatprep.subr.bf16.mxu0 0
        %1450 = vmatpush2.bf16.xpose.msra.mxu0 0
        %1451 = vmatprep.subr.bf16.mxu0 0
        %1452 = vmatpush2.bf16.xpose.msra.mxu0 0
        %1453 = vmatprep.subr.bf16.mxu0 0
        %1454 = vmatpush2.bf16.xpose.msra.mxu0 0
        %1455 = vmatprep.subr.bf16.mxu0 0
        %1456 = vmatpush2.bf16.xpose.msra.mxu0 0
        %1457 = vmatprep.subr.bf16.mxu0 0
        %1458 = vmatpush2.bf16.xpose.msra.mxu0 0
        %1459 = vmatprep.subr.bf16.mxu0 0
        %1460 = vmatpush2.bf16.xpose.msra.mxu0 0
        %1461 = vmatprep.mubr.bf16.mxu0 0
        %1462 = vmatmul.mubr.bf16.gmra.mxu0 %v1424
        %v1463 = vpop.f32.mrf.mxu0
        %v1464 = vadd.f32 0.0, %v1463
        %v1465 = vpop.f32.mrf.mxu0
        %v1466 = vpop.f32.mrf.mxu0
        %v1467 = vpop.f32.mrf.mxu0
        %1468 = vdwg.mxu0
        %v1470 = vsel %vm916, %v776, 0
        %v1473 = vsel %vm916, %v896, 0
        %1475 = vmatprep.subr.bf16.mxu0 0
        %1476 = vmatpush1.bf16.xpose.msra.mxu0 0
        %1477 = vmatprep.subr.bf16.mxu0 0
        %1478 = vmatpush1.bf16.xpose.msra.mxu0 0
        %1479 = vmatprep.subr.bf16.mxu0 0
        %1480 = vmatpush1.bf16.xpose.msra.mxu0 0
        %1481 = vmatprep.subr.bf16.mxu0 0
        %1482 = vmatpush1.bf16.xpose.msra.mxu0 0
        %1483 = vmatprep.subr.bf16.mxu0 0
        %1484 = vmatpush1.bf16.xpose.msra.mxu0 0
        %1485 = vmatprep.subr.bf16.mxu0 0
        %1486 = vmatpush1.bf16.xpose.msra.mxu0 0
        %1487 = vmatprep.subr.bf16.mxu0 0
        %1488 = vmatpush1.bf16.xpose.msra.mxu0 0
        %1489 = vmatprep.subr.bf16.mxu0 0
        %1490 = vmatpush1.bf16.xpose.msra.mxu0 %v1473
        %1491 = vmatprep.subr.bf16.mxu0 0
        %1492 = vmatpush2.bf16.xpose.msra.mxu0 0
        %1493 = vmatprep.subr.bf16.mxu0 0
        %1494 = vmatpush2.bf16.xpose.msra.mxu0 0
        %1495 = vmatprep.subr.bf16.mxu0 0
        %1496 = vmatpush2.bf16.xpose.msra.mxu0 0
        %1497 = vmatprep.subr.bf16.mxu0 0
        %1498 = vmatpush2.bf16.xpose.msra.mxu0 0
        %1499 = vmatprep.subr.bf16.mxu0 0
        %1500 = vmatpush2.bf16.xpose.msra.mxu0 0
        %1501 = vmatprep.subr.bf16.mxu0 0
        %1502 = vmatpush2.bf16.xpose.msra.mxu0 0
        %1503 = vmatprep.subr.bf16.mxu0 0
        %1504 = vmatpush2.bf16.xpose.msra.mxu0 0
        %1505 = vmatprep.subr.bf16.mxu0 0
        %1506 = vmatpush2.bf16.xpose.msra.mxu0 0
        %1507 = vmatprep.mubr.bf16.mxu0 0
        %1508 = vmatmul.mubr.bf16.gmra.mxu0 %v1470
        %v1509 = vpop.f32.mrf.mxu0
        %v1510 = vadd.f32 0.0, %v1509
        %v1511 = vpop.f32.mrf.mxu0
        %v1512 = vpop.f32.mrf.mxu0
        %v1513 = vpop.f32.mrf.mxu0
        %1514 = vdwg.mxu0
        %v1516 = vsel %vm916, %v777, 0
        %v1519 = vsel %vm916, %v897, 0
        %1521 = vmatprep.subr.bf16.mxu0 0
        %1522 = vmatpush1.bf16.xpose.msra.mxu0 0
        %1523 = vmatprep.subr.bf16.mxu0 0
        %1524 = vmatpush1.bf16.xpose.msra.mxu0 0
        %1525 = vmatprep.subr.bf16.mxu0 0
        %1526 = vmatpush1.bf16.xpose.msra.mxu0 0
        %1527 = vmatprep.subr.bf16.mxu0 0
        %1528 = vmatpush1.bf16.xpose.msra.mxu0 0
        %1529 = vmatprep.subr.bf16.mxu0 0
        %1530 = vmatpush1.bf16.xpose.msra.mxu0 0
        %1531 = vmatprep.subr.bf16.mxu0 0
        %1532 = vmatpush1.bf16.xpose.msra.mxu0 0
        %1533 = vmatprep.subr.bf16.mxu0 0
        %1534 = vmatpush1.bf16.xpose.msra.mxu0 0
        %1535 = vmatprep.subr.bf16.mxu0 0
        %1536 = vmatpush1.bf16.xpose.msra.mxu0 %v1519
        %1537 = vmatprep.subr.bf16.mxu0 0
        %1538 = vmatpush2.bf16.xpose.msra.mxu0 0
        %1539 = vmatprep.subr.bf16.mxu0 0
        %1540 = vmatpush2.bf16.xpose.msra.mxu0 0
        %1541 = vmatprep.subr.bf16.mxu0 0
        %1542 = vmatpush2.bf16.xpose.msra.mxu0 0
        %1543 = vmatprep.subr.bf16.mxu0 0
        %1544 = vmatpush2.bf16.xpose.msra.mxu0 0
        %1545 = vmatprep.subr.bf16.mxu0 0
        %1546 = vmatpush2.bf16.xpose.msra.mxu0 0
        %1547 = vmatprep.subr.bf16.mxu0 0
        %1548 = vmatpush2.bf16.xpose.msra.mxu0 0
        %1549 = vmatprep.subr.bf16.mxu0 0
        %1550 = vmatpush2.bf16.xpose.msra.mxu0 0
        %1551 = vmatprep.subr.bf16.mxu0 0
        %1552 = vmatpush2.bf16.xpose.msra.mxu0 0
        %1553 = vmatprep.mubr.bf16.mxu0 0
        %1554 = vmatmul.mubr.bf16.gmra.mxu0 %v1516
        %v1555 = vpop.f32.mrf.mxu0
        %v1556 = vadd.f32 0.0, %v1555
        %v1557 = vpop.f32.mrf.mxu0
        %v1558 = vpop.f32.mrf.mxu0
        %v1559 = vpop.f32.mrf.mxu0
        %1560 = vdwg.mxu0
        %v1562 = vsel %vm916, %v778, 0
        %v1565 = vsel %vm916, %v898, 0
        %1567 = vmatprep.subr.bf16.mxu0 0
        %1568 = vmatpush1.bf16.xpose.msra.mxu0 0
        %1569 = vmatprep.subr.bf16.mxu0 0
        %1570 = vmatpush1.bf16.xpose.msra.mxu0 0
        %1571 = vmatprep.subr.bf16.mxu0 0
        %1572 = vmatpush1.bf16.xpose.msra.mxu0 0
        %1573 = vmatprep.subr.bf16.mxu0 0
        %1574 = vmatpush1.bf16.xpose.msra.mxu0 0
        %1575 = vmatprep.subr.bf16.mxu0 0
        %1576 = vmatpush1.bf16.xpose.msra.mxu0 0
        %1577 = vmatprep.subr.bf16.mxu0 0
        %1578 = vmatpush1.bf16.xpose.msra.mxu0 0
        %1579 = vmatprep.subr.bf16.mxu0 0
        %1580 = vmatpush1.bf16.xpose.msra.mxu0 0
        %1581 = vmatprep.subr.bf16.mxu0 0
        %1582 = vmatpush1.bf16.xpose.msra.mxu0 %v1565
        %1583 = vmatprep.subr.bf16.mxu0 0
        %1584 = vmatpush2.bf16.xpose.msra.mxu0 0
        %1585 = vmatprep.subr.bf16.mxu0 0
        %1586 = vmatpush2.bf16.xpose.msra.mxu0 0
        %1587 = vmatprep.subr.bf16.mxu0 0
        %1588 = vmatpush2.bf16.xpose.msra.mxu0 0
        %1589 = vmatprep.subr.bf16.mxu0 0
        %1590 = vmatpush2.bf16.xpose.msra.mxu0 0
        %1591 = vmatprep.subr.bf16.mxu0 0
        %1592 = vmatpush2.bf16.xpose.msra.mxu0 0
        %1593 = vmatprep.subr.bf16.mxu0 0
        %1594 = vmatpush2.bf16.xpose.msra.mxu0 0
        %1595 = vmatprep.subr.bf16.mxu0 0
        %1596 = vmatpush2.bf16.xpose.msra.mxu0 0
        %1597 = vmatprep.subr.bf16.mxu0 0
        %1598 = vmatpush2.bf16.xpose.msra.mxu0 0
        %1599 = vmatprep.mubr.bf16.mxu0 0
        %1600 = vmatmul.mubr.bf16.gmra.mxu0 %v1562
        %v1601 = vpop.f32.mrf.mxu0
        %v1602 = vadd.f32 0.0, %v1601
        %v1603 = vpop.f32.mrf.mxu0
        %v1604 = vpop.f32.mrf.mxu0
        %v1605 = vpop.f32.mrf.mxu0
        %1606 = vdwg.mxu0
        %v1608 = vsel %vm916, %v779, 0
        %v1611 = vsel %vm916, %v899, 0
        %1613 = vmatprep.subr.bf16.mxu0 0
        %1614 = vmatpush1.bf16.xpose.msra.mxu0 0
        %1615 = vmatprep.subr.bf16.mxu0 0
        %1616 = vmatpush1.bf16.xpose.msra.mxu0 0
        %1617 = vmatprep.subr.bf16.mxu0 0
        %1618 = vmatpush1.bf16.xpose.msra.mxu0 0
        %1619 = vmatprep.subr.bf16.mxu0 0
        %1620 = vmatpush1.bf16.xpose.msra.mxu0 0
        %1621 = vmatprep.subr.bf16.mxu0 0
        %1622 = vmatpush1.bf16.xpose.msra.mxu0 0
        %1623 = vmatprep.subr.bf16.mxu0 0
        %1624 = vmatpush1.bf16.xpose.msra.mxu0 0
        %1625 = vmatprep.subr.bf16.mxu0 0
        %1626 = vmatpush1.bf16.xpose.msra.mxu0 0
        %1627 = vmatprep.subr.bf16.mxu0 0
        %1628 = vmatpush1.bf16.xpose.msra.mxu0 %v1611
        %1629 = vmatprep.subr.bf16.mxu0 0
        %1630 = vmatpush2.bf16.xpose.msra.mxu0 0
        %1631 = vmatprep.subr.bf16.mxu0 0
        %1632 = vmatpush2.bf16.xpose.msra.mxu0 0
        %1633 = vmatprep.subr.bf16.mxu0 0
        %1634 = vmatpush2.bf16.xpose.msra.mxu0 0
        %1635 = vmatprep.subr.bf16.mxu0 0
        %1636 = vmatpush2.bf16.xpose.msra.mxu0 0
        %1637 = vmatprep.subr.bf16.mxu0 0
        %1638 = vmatpush2.bf16.xpose.msra.mxu0 0
        %1639 = vmatprep.subr.bf16.mxu0 0
        %1640 = vmatpush2.bf16.xpose.msra.mxu0 0
        %1641 = vmatprep.subr.bf16.mxu0 0
        %1642 = vmatpush2.bf16.xpose.msra.mxu0 0
        %1643 = vmatprep.subr.bf16.mxu0 0
        %1644 = vmatpush2.bf16.xpose.msra.mxu0 0
        %1645 = vmatprep.mubr.bf16.mxu0 0
        %1646 = vmatmul.mubr.bf16.gmra.mxu0 %v1608
        %v1647 = vpop.f32.mrf.mxu0
        %v1648 = vadd.f32 0.0, %v1647
        %v1649 = vpop.f32.mrf.mxu0
        %v1650 = vpop.f32.mrf.mxu0
        %v1651 = vpop.f32.mrf.mxu0
        %1652 = vdwg.mxu0
        %v1654 = vsel %vm916, %v780, 0
        %v1657 = vsel %vm916, %v900, 0
        %1659 = vmatprep.subr.bf16.mxu0 0
        %1660 = vmatpush1.bf16.xpose.msra.mxu0 0
        %1661 = vmatprep.subr.bf16.mxu0 0
        %1662 = vmatpush1.bf16.xpose.msra.mxu0 0
        %1663 = vmatprep.subr.bf16.mxu0 0
        %1664 = vmatpush1.bf16.xpose.msra.mxu0 0
        %1665 = vmatprep.subr.bf16.mxu0 0
        %1666 = vmatpush1.bf16.xpose.msra.mxu0 0
        %1667 = vmatprep.subr.bf16.mxu0 0
        %1668 = vmatpush1.bf16.xpose.msra.mxu0 0
        %1669 = vmatprep.subr.bf16.mxu0 0
        %1670 = vmatpush1.bf16.xpose.msra.mxu0 0
        %1671 = vmatprep.subr.bf16.mxu0 0
        %1672 = vmatpush1.bf16.xpose.msra.mxu0 0
        %1673 = vmatprep.subr.bf16.mxu0 0
        %1674 = vmatpush1.bf16.xpose.msra.mxu0 %v1657
        %1675 = vmatprep.subr.bf16.mxu0 0
        %1676 = vmatpush2.bf16.xpose.msra.mxu0 0
        %1677 = vmatprep.subr.bf16.mxu0 0
        %1678 = vmatpush2.bf16.xpose.msra.mxu0 0
        %1679 = vmatprep.subr.bf16.mxu0 0
        %1680 = vmatpush2.bf16.xpose.msra.mxu0 0
        %1681 = vmatprep.subr.bf16.mxu0 0
        %1682 = vmatpush2.bf16.xpose.msra.mxu0 0
        %1683 = vmatprep.subr.bf16.mxu0 0
        %1684 = vmatpush2.bf16.xpose.msra.mxu0 0
        %1685 = vmatprep.subr.bf16.mxu0 0
        %1686 = vmatpush2.bf16.xpose.msra.mxu0 0
        %1687 = vmatprep.subr.bf16.mxu0 0
        %1688 = vmatpush2.bf16.xpose.msra.mxu0 0
        %1689 = vmatprep.subr.bf16.mxu0 0
        %1690 = vmatpush2.bf16.xpose.msra.mxu0 0
        %1691 = vmatprep.mubr.bf16.mxu0 0
        %1692 = vmatmul.mubr.bf16.gmra.mxu0 %v1654
        %v1693 = vpop.f32.mrf.mxu0
        %v1694 = vadd.f32 0.0, %v1693
        %v1695 = vpop.f32.mrf.mxu0
        %v1696 = vpop.f32.mrf.mxu0
        %v1697 = vpop.f32.mrf.mxu0
        %1698 = vdwg.mxu0
        %v1700 = vsel %vm916, %v781, 0
        %v1703 = vsel %vm916, %v901, 0
        %1705 = vmatprep.subr.bf16.mxu0 0
        %1706 = vmatpush1.bf16.xpose.msra.mxu0 0
        %1707 = vmatprep.subr.bf16.mxu0 0
        %1708 = vmatpush1.bf16.xpose.msra.mxu0 0
        %1709 = vmatprep.subr.bf16.mxu0 0
        %1710 = vmatpush1.bf16.xpose.msra.mxu0 0
        %1711 = vmatprep.subr.bf16.mxu0 0
        %1712 = vmatpush1.bf16.xpose.msra.mxu0 0
        %1713 = vmatprep.subr.bf16.mxu0 0
        %1714 = vmatpush1.bf16.xpose.msra.mxu0 0
        %1715 = vmatprep.subr.bf16.mxu0 0
        %1716 = vmatpush1.bf16.xpose.msra.mxu0 0
        %1717 = vmatprep.subr.bf16.mxu0 0
        %1718 = vmatpush1.bf16.xpose.msra.mxu0 0
        %1719 = vmatprep.subr.bf16.mxu0 0
        %1720 = vmatpush1.bf16.xpose.msra.mxu0 %v1703
        %1721 = vmatprep.subr.bf16.mxu0 0
        %1722 = vmatpush2.bf16.xpose.msra.mxu0 0
        %1723 = vmatprep.subr.bf16.mxu0 0
        %1724 = vmatpush2.bf16.xpose.msra.mxu0 0
        %1725 = vmatprep.subr.bf16.mxu0 0
        %1726 = vmatpush2.bf16.xpose.msra.mxu0 0
        %1727 = vmatprep.subr.bf16.mxu0 0
        %1728 = vmatpush2.bf16.xpose.msra.mxu0 0
        %1729 = vmatprep.subr.bf16.mxu0 0
        %1730 = vmatpush2.bf16.xpose.msra.mxu0 0
        %1731 = vmatprep.subr.bf16.mxu0 0
        %1732 = vmatpush2.bf16.xpose.msra.mxu0 0
        %1733 = vmatprep.subr.bf16.mxu0 0
        %1734 = vmatpush2.bf16.xpose.msra.mxu0 0
        %1735 = vmatprep.subr.bf16.mxu0 0
        %1736 = vmatpush2.bf16.xpose.msra.mxu0 0
        %1737 = vmatprep.mubr.bf16.mxu0 0
        %1738 = vmatmul.mubr.bf16.gmra.mxu0 %v1700
        %v1739 = vpop.f32.mrf.mxu0
        %v1740 = vadd.f32 0.0, %v1739
        %v1741 = vpop.f32.mrf.mxu0
        %v1742 = vpop.f32.mrf.mxu0
        %v1743 = vpop.f32.mrf.mxu0
        %1744 = vdwg.mxu0
        %v1746 = vsel %vm916, %v782, 0
        %v1749 = vsel %vm916, %v902, 0
        %1751 = vmatprep.subr.bf16.mxu0 0
        %1752 = vmatpush1.bf16.xpose.msra.mxu0 0
        %1753 = vmatprep.subr.bf16.mxu0 0
        %1754 = vmatpush1.bf16.xpose.msra.mxu0 0
        %1755 = vmatprep.subr.bf16.mxu0 0
        %1756 = vmatpush1.bf16.xpose.msra.mxu0 0
        %1757 = vmatprep.subr.bf16.mxu0 0
        %1758 = vmatpush1.bf16.xpose.msra.mxu0 0
        %1759 = vmatprep.subr.bf16.mxu0 0
        %1760 = vmatpush1.bf16.xpose.msra.mxu0 0
        %1761 = vmatprep.subr.bf16.mxu0 0
        %1762 = vmatpush1.bf16.xpose.msra.mxu0 0
        %1763 = vmatprep.subr.bf16.mxu0 0
        %1764 = vmatpush1.bf16.xpose.msra.mxu0 0
        %1765 = vmatprep.subr.bf16.mxu0 0
        %1766 = vmatpush1.bf16.xpose.msra.mxu0 %v1749
        %1767 = vmatprep.subr.bf16.mxu0 0
        %1768 = vmatpush2.bf16.xpose.msra.mxu0 0
        %1769 = vmatprep.subr.bf16.mxu0 0
        %1770 = vmatpush2.bf16.xpose.msra.mxu0 0
        %1771 = vmatprep.subr.bf16.mxu0 0
        %1772 = vmatpush2.bf16.xpose.msra.mxu0 0
        %1773 = vmatprep.subr.bf16.mxu0 0
        %1774 = vmatpush2.bf16.xpose.msra.mxu0 0
        %1775 = vmatprep.subr.bf16.mxu0 0
        %1776 = vmatpush2.bf16.xpose.msra.mxu0 0
        %1777 = vmatprep.subr.bf16.mxu0 0
        %1778 = vmatpush2.bf16.xpose.msra.mxu0 0
        %1779 = vmatprep.subr.bf16.mxu0 0
        %1780 = vmatpush2.bf16.xpose.msra.mxu0 0
        %1781 = vmatprep.subr.bf16.mxu0 0
        %1782 = vmatpush2.bf16.xpose.msra.mxu0 0
        %1783 = vmatprep.mubr.bf16.mxu0 0
        %1784 = vmatmul.mubr.bf16.gmra.mxu0 %v1746
        %v1785 = vpop.f32.mrf.mxu0
        %v1786 = vadd.f32 0.0, %v1785
        %v1787 = vpop.f32.mrf.mxu0
        %v1788 = vpop.f32.mrf.mxu0
        %v1789 = vpop.f32.mrf.mxu0
        %1790 = vdwg.mxu0
        %v1792 = vsel %vm916, %v783, 0
        %v1795 = vsel %vm916, %v903, 0
        %1797 = vmatprep.subr.bf16.mxu0 0
        %1798 = vmatpush1.bf16.xpose.msra.mxu0 0
        %1799 = vmatprep.subr.bf16.mxu0 0
        %1800 = vmatpush1.bf16.xpose.msra.mxu0 0
        %1801 = vmatprep.subr.bf16.mxu0 0
        %1802 = vmatpush1.bf16.xpose.msra.mxu0 0
        %1803 = vmatprep.subr.bf16.mxu0 0
        %1804 = vmatpush1.bf16.xpose.msra.mxu0 0
        %1805 = vmatprep.subr.bf16.mxu0 0
        %1806 = vmatpush1.bf16.xpose.msra.mxu0 0
        %1807 = vmatprep.subr.bf16.mxu0 0
        %1808 = vmatpush1.bf16.xpose.msra.mxu0 0
        %1809 = vmatprep.subr.bf16.mxu0 0
        %1810 = vmatpush1.bf16.xpose.msra.mxu0 0
        %1811 = vmatprep.subr.bf16.mxu0 0
        %1812 = vmatpush1.bf16.xpose.msra.mxu0 %v1795
        %1813 = vmatprep.subr.bf16.mxu0 0
        %1814 = vmatpush2.bf16.xpose.msra.mxu0 0
        %1815 = vmatprep.subr.bf16.mxu0 0
        %1816 = vmatpush2.bf16.xpose.msra.mxu0 0
        %1817 = vmatprep.subr.bf16.mxu0 0
        %1818 = vmatpush2.bf16.xpose.msra.mxu0 0
        %1819 = vmatprep.subr.bf16.mxu0 0
        %1820 = vmatpush2.bf16.xpose.msra.mxu0 0
        %1821 = vmatprep.subr.bf16.mxu0 0
        %1822 = vmatpush2.bf16.xpose.msra.mxu0 0
        %1823 = vmatprep.subr.bf16.mxu0 0
        %1824 = vmatpush2.bf16.xpose.msra.mxu0 0
        %1825 = vmatprep.subr.bf16.mxu0 0
        %1826 = vmatpush2.bf16.xpose.msra.mxu0 0
        %1827 = vmatprep.subr.bf16.mxu0 0
        %1828 = vmatpush2.bf16.xpose.msra.mxu0 0
        %1829 = vmatprep.mubr.bf16.mxu0 0
        %1830 = vmatmul.mubr.bf16.gmra.mxu0 %v1792
        %v1831 = vpop.f32.mrf.mxu0
        %v1832 = vadd.f32 0.0, %v1831
        %v1833 = vpop.f32.mrf.mxu0
        %v1834 = vpop.f32.mrf.mxu0
        %v1835 = vpop.f32.mrf.mxu0
        %1836 = vdwg.mxu0
        %v1838 = vsel %vm916, %v784, 0
        %v1841 = vsel %vm916, %v904, 0
        %1843 = vmatprep.subr.bf16.mxu0 0
        %1844 = vmatpush1.bf16.xpose.msra.mxu0 0
        %1845 = vmatprep.subr.bf16.mxu0 0
        %1846 = vmatpush1.bf16.xpose.msra.mxu0 0
        %1847 = vmatprep.subr.bf16.mxu0 0
        %1848 = vmatpush1.bf16.xpose.msra.mxu0 0
        %1849 = vmatprep.subr.bf16.mxu0 0
        %1850 = vmatpush1.bf16.xpose.msra.mxu0 0
        %1851 = vmatprep.subr.bf16.mxu0 0
        %1852 = vmatpush1.bf16.xpose.msra.mxu0 0
        %1853 = vmatprep.subr.bf16.mxu0 0
        %1854 = vmatpush1.bf16.xpose.msra.mxu0 0
        %1855 = vmatprep.subr.bf16.mxu0 0
        %1856 = vmatpush1.bf16.xpose.msra.mxu0 0
        %1857 = vmatprep.subr.bf16.mxu0 0
        %1858 = vmatpush1.bf16.xpose.msra.mxu0 %v1841
        %1859 = vmatprep.subr.bf16.mxu0 0
        %1860 = vmatpush2.bf16.xpose.msra.mxu0 0
        %1861 = vmatprep.subr.bf16.mxu0 0
        %1862 = vmatpush2.bf16.xpose.msra.mxu0 0
        %1863 = vmatprep.subr.bf16.mxu0 0
        %1864 = vmatpush2.bf16.xpose.msra.mxu0 0
        %1865 = vmatprep.subr.bf16.mxu0 0
        %1866 = vmatpush2.bf16.xpose.msra.mxu0 0
        %1867 = vmatprep.subr.bf16.mxu0 0
        %1868 = vmatpush2.bf16.xpose.msra.mxu0 0
        %1869 = vmatprep.subr.bf16.mxu0 0
        %1870 = vmatpush2.bf16.xpose.msra.mxu0 0
        %1871 = vmatprep.subr.bf16.mxu0 0
        %1872 = vmatpush2.bf16.xpose.msra.mxu0 0
        %1873 = vmatprep.subr.bf16.mxu0 0
        %1874 = vmatpush2.bf16.xpose.msra.mxu0 0
        %1875 = vmatprep.mubr.bf16.mxu0 0
        %1876 = vmatmul.mubr.bf16.gmra.mxu0 %v1838
        %v1877 = vpop.f32.mrf.mxu0
        %v1878 = vadd.f32 0.0, %v1877
        %v1879 = vpop.f32.mrf.mxu0
        %v1880 = vpop.f32.mrf.mxu0
        %v1881 = vpop.f32.mrf.mxu0
        %1882 = vdwg.mxu0
        %v1884 = vsel %vm916, %v785, 0
        %v1887 = vsel %vm916, %v905, 0
        %1889 = vmatprep.subr.bf16.mxu0 0
        %1890 = vmatpush1.bf16.xpose.msra.mxu0 0
        %1891 = vmatprep.subr.bf16.mxu0 0
        %1892 = vmatpush1.bf16.xpose.msra.mxu0 0
        %1893 = vmatprep.subr.bf16.mxu0 0
        %1894 = vmatpush1.bf16.xpose.msra.mxu0 0
        %1895 = vmatprep.subr.bf16.mxu0 0
        %1896 = vmatpush1.bf16.xpose.msra.mxu0 0
        %1897 = vmatprep.subr.bf16.mxu0 0
        %1898 = vmatpush1.bf16.xpose.msra.mxu0 0
        %1899 = vmatprep.subr.bf16.mxu0 0
        %1900 = vmatpush1.bf16.xpose.msra.mxu0 0
        %1901 = vmatprep.subr.bf16.mxu0 0
        %1902 = vmatpush1.bf16.xpose.msra.mxu0 0
        %1903 = vmatprep.subr.bf16.mxu0 0
        %1904 = vmatpush1.bf16.xpose.msra.mxu0 %v1887
        %1905 = vmatprep.subr.bf16.mxu0 0
        %1906 = vmatpush2.bf16.xpose.msra.mxu0 0
        %1907 = vmatprep.subr.bf16.mxu0 0
        %1908 = vmatpush2.bf16.xpose.msra.mxu0 0
        %1909 = vmatprep.subr.bf16.mxu0 0
        %1910 = vmatpush2.bf16.xpose.msra.mxu0 0
        %1911 = vmatprep.subr.bf16.mxu0 0
        %1912 = vmatpush2.bf16.xpose.msra.mxu0 0
        %1913 = vmatprep.subr.bf16.mxu0 0
        %1914 = vmatpush2.bf16.xpose.msra.mxu0 0
        %1915 = vmatprep.subr.bf16.mxu0 0
        %1916 = vmatpush2.bf16.xpose.msra.mxu0 0
        %1917 = vmatprep.subr.bf16.mxu0 0
        %1918 = vmatpush2.bf16.xpose.msra.mxu0 0
        %1919 = vmatprep.subr.bf16.mxu0 0
        %1920 = vmatpush2.bf16.xpose.msra.mxu0 0
        %1921 = vmatprep.mubr.bf16.mxu0 0
        %1922 = vmatmul.mubr.bf16.gmra.mxu0 %v1884
        %v1923 = vpop.f32.mrf.mxu0
        %v1924 = vadd.f32 0.0, %v1923
        %v1925 = vpop.f32.mrf.mxu0
        %v1926 = vpop.f32.mrf.mxu0
        %v1927 = vpop.f32.mrf.mxu0
        %1928 = vdwg.mxu0
        %v1930 = vsel %vm916, %v786, 0
        %v1933 = vsel %vm916, %v906, 0
        %1935 = vmatprep.subr.bf16.mxu0 0
        %1936 = vmatpush1.bf16.xpose.msra.mxu0 0
        %1937 = vmatprep.subr.bf16.mxu0 0
        %1938 = vmatpush1.bf16.xpose.msra.mxu0 0
        %1939 = vmatprep.subr.bf16.mxu0 0
        %1940 = vmatpush1.bf16.xpose.msra.mxu0 0
        %1941 = vmatprep.subr.bf16.mxu0 0
        %1942 = vmatpush1.bf16.xpose.msra.mxu0 0
        %1943 = vmatprep.subr.bf16.mxu0 0
        %1944 = vmatpush1.bf16.xpose.msra.mxu0 0
        %1945 = vmatprep.subr.bf16.mxu0 0
        %1946 = vmatpush1.bf16.xpose.msra.mxu0 0
        %1947 = vmatprep.subr.bf16.mxu0 0
        %1948 = vmatpush1.bf16.xpose.msra.mxu0 0
        %1949 = vmatprep.subr.bf16.mxu0 0
        %1950 = vmatpush1.bf16.xpose.msra.mxu0 %v1933
        %1951 = vmatprep.subr.bf16.mxu0 0
        %1952 = vmatpush2.bf16.xpose.msra.mxu0 0
        %1953 = vmatprep.subr.bf16.mxu0 0
        %1954 = vmatpush2.bf16.xpose.msra.mxu0 0
        %1955 = vmatprep.subr.bf16.mxu0 0
        %1956 = vmatpush2.bf16.xpose.msra.mxu0 0
        %1957 = vmatprep.subr.bf16.mxu0 0
        %1958 = vmatpush2.bf16.xpose.msra.mxu0 0
        %1959 = vmatprep.subr.bf16.mxu0 0
        %1960 = vmatpush2.bf16.xpose.msra.mxu0 0
        %1961 = vmatprep.subr.bf16.mxu0 0
        %1962 = vmatpush2.bf16.xpose.msra.mxu0 0
        %1963 = vmatprep.subr.bf16.mxu0 0
        %1964 = vmatpush2.bf16.xpose.msra.mxu0 0
        %1965 = vmatprep.subr.bf16.mxu0 0
        %1966 = vmatpush2.bf16.xpose.msra.mxu0 0
        %1967 = vmatprep.mubr.bf16.mxu0 0
        %1968 = vmatmul.mubr.bf16.gmra.mxu0 %v1930
        %v1969 = vpop.f32.mrf.mxu0
        %v1970 = vadd.f32 0.0, %v1969
        %v1971 = vpop.f32.mrf.mxu0
        %v1972 = vpop.f32.mrf.mxu0
        %v1973 = vpop.f32.mrf.mxu0
        %1974 = vdwg.mxu0
        %v1976 = vsel %vm916, %v787, 0
        %v1979 = vsel %vm916, %v907, 0
        %1981 = vmatprep.subr.bf16.mxu0 0
        %1982 = vmatpush1.bf16.xpose.msra.mxu0 0
        %1983 = vmatprep.subr.bf16.mxu0 0
        %1984 = vmatpush1.bf16.xpose.msra.mxu0 0
        %1985 = vmatprep.subr.bf16.mxu0 0
        %1986 = vmatpush1.bf16.xpose.msra.mxu0 0
        %1987 = vmatprep.subr.bf16.mxu0 0
        %1988 = vmatpush1.bf16.xpose.msra.mxu0 0
        %1989 = vmatprep.subr.bf16.mxu0 0
        %1990 = vmatpush1.bf16.xpose.msra.mxu0 0
        %1991 = vmatprep.subr.bf16.mxu0 0
        %1992 = vmatpush1.bf16.xpose.msra.mxu0 0
        %1993 = vmatprep.subr.bf16.mxu0 0
        %1994 = vmatpush1.bf16.xpose.msra.mxu0 0
        %1995 = vmatprep.subr.bf16.mxu0 0
        %1996 = vmatpush1.bf16.xpose.msra.mxu0 %v1979
        %1997 = vmatprep.subr.bf16.mxu0 0
        %1998 = vmatpush2.bf16.xpose.msra.mxu0 0
        %1999 = vmatprep.subr.bf16.mxu0 0
        %2000 = vmatpush2.bf16.xpose.msra.mxu0 0
        %2001 = vmatprep.subr.bf16.mxu0 0
        %2002 = vmatpush2.bf16.xpose.msra.mxu0 0
        %2003 = vmatprep.subr.bf16.mxu0 0
        %2004 = vmatpush2.bf16.xpose.msra.mxu0 0
        %2005 = vmatprep.subr.bf16.mxu0 0
        %2006 = vmatpush2.bf16.xpose.msra.mxu0 0
        %2007 = vmatprep.subr.bf16.mxu0 0
        %2008 = vmatpush2.bf16.xpose.msra.mxu0 0
        %2009 = vmatprep.subr.bf16.mxu0 0
        %2010 = vmatpush2.bf16.xpose.msra.mxu0 0
        %2011 = vmatprep.subr.bf16.mxu0 0
        %2012 = vmatpush2.bf16.xpose.msra.mxu0 0
        %2013 = vmatprep.mubr.bf16.mxu0 0
        %2014 = vmatmul.mubr.bf16.gmra.mxu0 %v1976
        %v2015 = vpop.f32.mrf.mxu0
        %v2016 = vadd.f32 0.0, %v2015
        %v2017 = vpop.f32.mrf.mxu0
        %v2018 = vpop.f32.mrf.mxu0
        %v2019 = vpop.f32.mrf.mxu0
        %2020 = vdwg.mxu0
        %v2022 = vsel %vm916, %v788, 0
        %v2025 = vsel %vm916, %v908, 0
        %2027 = vmatprep.subr.bf16.mxu0 0
        %2028 = vmatpush1.bf16.xpose.msra.mxu0 0
        %2029 = vmatprep.subr.bf16.mxu0 0
        %2030 = vmatpush1.bf16.xpose.msra.mxu0 0
        %2031 = vmatprep.subr.bf16.mxu0 0
        %2032 = vmatpush1.bf16.xpose.msra.mxu0 0
        %2033 = vmatprep.subr.bf16.mxu0 0
        %2034 = vmatpush1.bf16.xpose.msra.mxu0 0
        %2035 = vmatprep.subr.bf16.mxu0 0
        %2036 = vmatpush1.bf16.xpose.msra.mxu0 0
        %2037 = vmatprep.subr.bf16.mxu0 0
        %2038 = vmatpush1.bf16.xpose.msra.mxu0 0
        %2039 = vmatprep.subr.bf16.mxu0 0
        %2040 = vmatpush1.bf16.xpose.msra.mxu0 0
        %2041 = vmatprep.subr.bf16.mxu0 0
        %2042 = vmatpush1.bf16.xpose.msra.mxu0 %v2025
        %2043 = vmatprep.subr.bf16.mxu0 0
        %2044 = vmatpush2.bf16.xpose.msra.mxu0 0
        %2045 = vmatprep.subr.bf16.mxu0 0
        %2046 = vmatpush2.bf16.xpose.msra.mxu0 0
        %2047 = vmatprep.subr.bf16.mxu0 0
        %2048 = vmatpush2.bf16.xpose.msra.mxu0 0
        %2049 = vmatprep.subr.bf16.mxu0 0
        %2050 = vmatpush2.bf16.xpose.msra.mxu0 0
        %2051 = vmatprep.subr.bf16.mxu0 0
        %2052 = vmatpush2.bf16.xpose.msra.mxu0 0
        %2053 = vmatprep.subr.bf16.mxu0 0
        %2054 = vmatpush2.bf16.xpose.msra.mxu0 0
        %2055 = vmatprep.subr.bf16.mxu0 0
        %2056 = vmatpush2.bf16.xpose.msra.mxu0 0
        %2057 = vmatprep.subr.bf16.mxu0 0
        %2058 = vmatpush2.bf16.xpose.msra.mxu0 0
        %2059 = vmatprep.mubr.bf16.mxu0 0
        %2060 = vmatmul.mubr.bf16.gmra.mxu0 %v2022
        %v2061 = vpop.f32.mrf.mxu0
        %v2062 = vadd.f32 0.0, %v2061
        %v2063 = vpop.f32.mrf.mxu0
        %v2064 = vpop.f32.mrf.mxu0
        %v2065 = vpop.f32.mrf.mxu0
        %2066 = vdwg.mxu0
        %v2068 = vsel %vm916, %v789, 0
        %v2071 = vsel %vm916, %v909, 0
        %2073 = vmatprep.subr.bf16.mxu0 0
        %2074 = vmatpush1.bf16.xpose.msra.mxu0 0
        %2075 = vmatprep.subr.bf16.mxu0 0
        %2076 = vmatpush1.bf16.xpose.msra.mxu0 0
        %2077 = vmatprep.subr.bf16.mxu0 0
        %2078 = vmatpush1.bf16.xpose.msra.mxu0 0
        %2079 = vmatprep.subr.bf16.mxu0 0
        %2080 = vmatpush1.bf16.xpose.msra.mxu0 0
        %2081 = vmatprep.subr.bf16.mxu0 0
        %2082 = vmatpush1.bf16.xpose.msra.mxu0 0
        %2083 = vmatprep.subr.bf16.mxu0 0
        %2084 = vmatpush1.bf16.xpose.msra.mxu0 0
        %2085 = vmatprep.subr.bf16.mxu0 0
        %2086 = vmatpush1.bf16.xpose.msra.mxu0 0
        %2087 = vmatprep.subr.bf16.mxu0 0
        %2088 = vmatpush1.bf16.xpose.msra.mxu0 %v2071
        %2089 = vmatprep.subr.bf16.mxu0 0
        %2090 = vmatpush2.bf16.xpose.msra.mxu0 0
        %2091 = vmatprep.subr.bf16.mxu0 0
        %2092 = vmatpush2.bf16.xpose.msra.mxu0 0
        %2093 = vmatprep.subr.bf16.mxu0 0
        %2094 = vmatpush2.bf16.xpose.msra.mxu0 0
        %2095 = vmatprep.subr.bf16.mxu0 0
        %2096 = vmatpush2.bf16.xpose.msra.mxu0 0
        %2097 = vmatprep.subr.bf16.mxu0 0
        %2098 = vmatpush2.bf16.xpose.msra.mxu0 0
        %2099 = vmatprep.subr.bf16.mxu0 0
        %2100 = vmatpush2.bf16.xpose.msra.mxu0 0
        %2101 = vmatprep.subr.bf16.mxu0 0
        %2102 = vmatpush2.bf16.xpose.msra.mxu0 0
        %2103 = vmatprep.subr.bf16.mxu0 0
        %2104 = vmatpush2.bf16.xpose.msra.mxu0 0
        %2105 = vmatprep.mubr.bf16.mxu0 0
        %2106 = vmatmul.mubr.bf16.gmra.mxu0 %v2068
        %v2107 = vpop.f32.mrf.mxu0
        %v2108 = vadd.f32 0.0, %v2107
        %v2109 = vpop.f32.mrf.mxu0
        %v2110 = vpop.f32.mrf.mxu0
        %v2111 = vpop.f32.mrf.mxu0
        %2112 = vdwg.mxu0
        %v2114 = vsel %vm916, %v790, 0
        %v2117 = vsel %vm916, %v910, 0
        %2119 = vmatprep.subr.bf16.mxu0 0
        %2120 = vmatpush1.bf16.xpose.msra.mxu0 0
        %2121 = vmatprep.subr.bf16.mxu0 0
        %2122 = vmatpush1.bf16.xpose.msra.mxu0 0
        %2123 = vmatprep.subr.bf16.mxu0 0
        %2124 = vmatpush1.bf16.xpose.msra.mxu0 0
        %2125 = vmatprep.subr.bf16.mxu0 0
        %2126 = vmatpush1.bf16.xpose.msra.mxu0 0
        %2127 = vmatprep.subr.bf16.mxu0 0
        %2128 = vmatpush1.bf16.xpose.msra.mxu0 0
        %2129 = vmatprep.subr.bf16.mxu0 0
        %2130 = vmatpush1.bf16.xpose.msra.mxu0 0
        %2131 = vmatprep.subr.bf16.mxu0 0
        %2132 = vmatpush1.bf16.xpose.msra.mxu0 0
        %2133 = vmatprep.subr.bf16.mxu0 0
        %2134 = vmatpush1.bf16.xpose.msra.mxu0 %v2117
        %2135 = vmatprep.subr.bf16.mxu0 0
        %2136 = vmatpush2.bf16.xpose.msra.mxu0 0
        %2137 = vmatprep.subr.bf16.mxu0 0
        %2138 = vmatpush2.bf16.xpose.msra.mxu0 0
        %2139 = vmatprep.subr.bf16.mxu0 0
        %2140 = vmatpush2.bf16.xpose.msra.mxu0 0
        %2141 = vmatprep.subr.bf16.mxu0 0
        %2142 = vmatpush2.bf16.xpose.msra.mxu0 0
        %2143 = vmatprep.subr.bf16.mxu0 0
        %2144 = vmatpush2.bf16.xpose.msra.mxu0 0
        %2145 = vmatprep.subr.bf16.mxu0 0
        %2146 = vmatpush2.bf16.xpose.msra.mxu0 0
        %2147 = vmatprep.subr.bf16.mxu0 0
        %2148 = vmatpush2.bf16.xpose.msra.mxu0 0
        %2149 = vmatprep.subr.bf16.mxu0 0
        %2150 = vmatpush2.bf16.xpose.msra.mxu0 0
        %2151 = vmatprep.mubr.bf16.mxu0 0
        %2152 = vmatmul.mubr.bf16.gmra.mxu0 %v2114
        %v2153 = vpop.f32.mrf.mxu0
        %v2154 = vadd.f32 0.0, %v2153
        %v2155 = vpop.f32.mrf.mxu0
        %v2156 = vpop.f32.mrf.mxu0
        %v2157 = vpop.f32.mrf.mxu0
        %2158 = vdwg.mxu0
        %v2160 = vsel %vm916, %v791, 0
        %v2163 = vsel %vm916, %v911, 0
        %2165 = vmatprep.subr.bf16.mxu0 0
        %2166 = vmatpush1.bf16.xpose.msra.mxu0 0
        %2167 = vmatprep.subr.bf16.mxu0 0
        %2168 = vmatpush1.bf16.xpose.msra.mxu0 0
        %2169 = vmatprep.subr.bf16.mxu0 0
        %2170 = vmatpush1.bf16.xpose.msra.mxu0 0
        %2171 = vmatprep.subr.bf16.mxu0 0
        %2172 = vmatpush1.bf16.xpose.msra.mxu0 0
        %2173 = vmatprep.subr.bf16.mxu0 0
        %2174 = vmatpush1.bf16.xpose.msra.mxu0 0
        %2175 = vmatprep.subr.bf16.mxu0 0
        %2176 = vmatpush1.bf16.xpose.msra.mxu0 0
        %2177 = vmatprep.subr.bf16.mxu0 0
        %2178 = vmatpush1.bf16.xpose.msra.mxu0 0
        %2179 = vmatprep.subr.bf16.mxu0 0
        %2180 = vmatpush1.bf16.xpose.msra.mxu0 %v2163
        %2181 = vmatprep.subr.bf16.mxu0 0
        %2182 = vmatpush2.bf16.xpose.msra.mxu0 0
        %2183 = vmatprep.subr.bf16.mxu0 0
        %2184 = vmatpush2.bf16.xpose.msra.mxu0 0
        %2185 = vmatprep.subr.bf16.mxu0 0
        %2186 = vmatpush2.bf16.xpose.msra.mxu0 0
        %2187 = vmatprep.subr.bf16.mxu0 0
        %2188 = vmatpush2.bf16.xpose.msra.mxu0 0
        %2189 = vmatprep.subr.bf16.mxu0 0
        %2190 = vmatpush2.bf16.xpose.msra.mxu0 0
        %2191 = vmatprep.subr.bf16.mxu0 0
        %2192 = vmatpush2.bf16.xpose.msra.mxu0 0
        %2193 = vmatprep.subr.bf16.mxu0 0
        %2194 = vmatpush2.bf16.xpose.msra.mxu0 0
        %2195 = vmatprep.subr.bf16.mxu0 0
        %2196 = vmatpush2.bf16.xpose.msra.mxu0 0
        %2197 = vmatprep.mubr.bf16.mxu0 0
        %2198 = vmatmul.mubr.bf16.gmra.mxu0 %v2160
        %v2199 = vpop.f32.mrf.mxu0
        %v2200 = vadd.f32 0.0, %v2199
        %v2201 = vpop.f32.mrf.mxu0
        %v2202 = vpop.f32.mrf.mxu0
        %v2203 = vpop.f32.mrf.mxu0
        %2204 = vdwg.mxu0
        %v2206 = vsel %vm916, %v792, 0
        %v2209 = vsel %vm916, %v912, 0
        %2211 = vmatprep.subr.bf16.mxu0 0
        %2212 = vmatpush1.bf16.xpose.msra.mxu0 0
        %2213 = vmatprep.subr.bf16.mxu0 0
        %2214 = vmatpush1.bf16.xpose.msra.mxu0 0
        %2215 = vmatprep.subr.bf16.mxu0 0
        %2216 = vmatpush1.bf16.xpose.msra.mxu0 0
        %2217 = vmatprep.subr.bf16.mxu0 0
        %2218 = vmatpush1.bf16.xpose.msra.mxu0 0
        %2219 = vmatprep.subr.bf16.mxu0 0
        %2220 = vmatpush1.bf16.xpose.msra.mxu0 0
        %2221 = vmatprep.subr.bf16.mxu0 0
        %2222 = vmatpush1.bf16.xpose.msra.mxu0 0
        %2223 = vmatprep.subr.bf16.mxu0 0
        %2224 = vmatpush1.bf16.xpose.msra.mxu0 0
        %2225 = vmatprep.subr.bf16.mxu0 0
        %2226 = vmatpush1.bf16.xpose.msra.mxu0 %v2209
        %2227 = vmatprep.subr.bf16.mxu0 0
        %2228 = vmatpush2.bf16.xpose.msra.mxu0 0
        %2229 = vmatprep.subr.bf16.mxu0 0
        %2230 = vmatpush2.bf16.xpose.msra.mxu0 0
        %2231 = vmatprep.subr.bf16.mxu0 0
        %2232 = vmatpush2.bf16.xpose.msra.mxu0 0
        %2233 = vmatprep.subr.bf16.mxu0 0
        %2234 = vmatpush2.bf16.xpose.msra.mxu0 0
        %2235 = vmatprep.subr.bf16.mxu0 0
        %2236 = vmatpush2.bf16.xpose.msra.mxu0 0
        %2237 = vmatprep.subr.bf16.mxu0 0
        %2238 = vmatpush2.bf16.xpose.msra.mxu0 0
        %2239 = vmatprep.subr.bf16.mxu0 0
        %2240 = vmatpush2.bf16.xpose.msra.mxu0 0
        %2241 = vmatprep.subr.bf16.mxu0 0
        %2242 = vmatpush2.bf16.xpose.msra.mxu0 0
        %2243 = vmatprep.mubr.bf16.mxu0 0
        %2244 = vmatmul.mubr.bf16.gmra.mxu0 %v2206
        %v2245 = vpop.f32.mrf.mxu0
        %v2246 = vadd.f32 0.0, %v2245
        %v2247 = vpop.f32.mrf.mxu0
        %v2248 = vpop.f32.mrf.mxu0
        %v2249 = vpop.f32.mrf.mxu0
        %2250 = vdwg.mxu0
        %v2252 = vsel %vm916, %v793, 0
        %v2255 = vsel %vm916, %v913, 0
        %2257 = vmatprep.subr.bf16.mxu0 0
        %2258 = vmatpush1.bf16.xpose.msra.mxu0 0
        %2259 = vmatprep.subr.bf16.mxu0 0
        %2260 = vmatpush1.bf16.xpose.msra.mxu0 0
        %2261 = vmatprep.subr.bf16.mxu0 0
        %2262 = vmatpush1.bf16.xpose.msra.mxu0 0
        %2263 = vmatprep.subr.bf16.mxu0 0
        %2264 = vmatpush1.bf16.xpose.msra.mxu0 0
        %2265 = vmatprep.subr.bf16.mxu0 0
        %2266 = vmatpush1.bf16.xpose.msra.mxu0 0
        %2267 = vmatprep.subr.bf16.mxu0 0
        %2268 = vmatpush1.bf16.xpose.msra.mxu0 0
        %2269 = vmatprep.subr.bf16.mxu0 0
        %2270 = vmatpush1.bf16.xpose.msra.mxu0 0
        %2271 = vmatprep.subr.bf16.mxu0 0
        %2272 = vmatpush1.bf16.xpose.msra.mxu0 %v2255
        %2273 = vmatprep.subr.bf16.mxu0 0
        %2274 = vmatpush2.bf16.xpose.msra.mxu0 0
        %2275 = vmatprep.subr.bf16.mxu0 0
        %2276 = vmatpush2.bf16.xpose.msra.mxu0 0
        %2277 = vmatprep.subr.bf16.mxu0 0
        %2278 = vmatpush2.bf16.xpose.msra.mxu0 0
        %2279 = vmatprep.subr.bf16.mxu0 0
        %2280 = vmatpush2.bf16.xpose.msra.mxu0 0
        %2281 = vmatprep.subr.bf16.mxu0 0
        %2282 = vmatpush2.bf16.xpose.msra.mxu0 0
        %2283 = vmatprep.subr.bf16.mxu0 0
        %2284 = vmatpush2.bf16.xpose.msra.mxu0 0
        %2285 = vmatprep.subr.bf16.mxu0 0
        %2286 = vmatpush2.bf16.xpose.msra.mxu0 0
        %2287 = vmatprep.subr.bf16.mxu0 0
        %2288 = vmatpush2.bf16.xpose.msra.mxu0 0
        %2289 = vmatprep.mubr.bf16.mxu0 0
        %2290 = vmatmul.mubr.bf16.gmra.mxu0 %v2252
        %v2291 = vpop.f32.mrf.mxu0
        %v2292 = vadd.f32 0.0, %v2291
        %v2293 = vpop.f32.mrf.mxu0
        %v2294 = vpop.f32.mrf.mxu0
        %v2295 = vpop.f32.mrf.mxu0
        %2296 = vdwg.mxu0
        %v2298 = vsel %vm916, %v794, 0
        %v2301 = vsel %vm916, %v914, 0
        %2303 = vmatprep.subr.bf16.mxu0 0
        %2304 = vmatpush1.bf16.xpose.msra.mxu0 0
        %2305 = vmatprep.subr.bf16.mxu0 0
        %2306 = vmatpush1.bf16.xpose.msra.mxu0 0
        %2307 = vmatprep.subr.bf16.mxu0 0
        %2308 = vmatpush1.bf16.xpose.msra.mxu0 0
        %2309 = vmatprep.subr.bf16.mxu0 0
        %2310 = vmatpush1.bf16.xpose.msra.mxu0 0
        %2311 = vmatprep.subr.bf16.mxu0 0
        %2312 = vmatpush1.bf16.xpose.msra.mxu0 0
        %2313 = vmatprep.subr.bf16.mxu0 0
        %2314 = vmatpush1.bf16.xpose.msra.mxu0 0
        %2315 = vmatprep.subr.bf16.mxu0 0
        %2316 = vmatpush1.bf16.xpose.msra.mxu0 0
        %2317 = vmatprep.subr.bf16.mxu0 0
        %2318 = vmatpush1.bf16.xpose.msra.mxu0 %v2301
        %2319 = vmatprep.subr.bf16.mxu0 0
        %2320 = vmatpush2.bf16.xpose.msra.mxu0 0
        %2321 = vmatprep.subr.bf16.mxu0 0
        %2322 = vmatpush2.bf16.xpose.msra.mxu0 0
        %2323 = vmatprep.subr.bf16.mxu0 0
        %2324 = vmatpush2.bf16.xpose.msra.mxu0 0
        %2325 = vmatprep.subr.bf16.mxu0 0
        %2326 = vmatpush2.bf16.xpose.msra.mxu0 0
        %2327 = vmatprep.subr.bf16.mxu0 0
        %2328 = vmatpush2.bf16.xpose.msra.mxu0 0
        %2329 = vmatprep.subr.bf16.mxu0 0
        %2330 = vmatpush2.bf16.xpose.msra.mxu0 0
        %2331 = vmatprep.subr.bf16.mxu0 0
        %2332 = vmatpush2.bf16.xpose.msra.mxu0 0
        %2333 = vmatprep.subr.bf16.mxu0 0
        %2334 = vmatpush2.bf16.xpose.msra.mxu0 0
        %2335 = vmatprep.mubr.bf16.mxu0 0
        %2336 = vmatmul.mubr.bf16.gmra.mxu0 %v2298
        %v2337 = vpop.f32.mrf.mxu0
        %v2338 = vadd.f32 0.0, %v2337
        %v2339 = vpop.f32.mrf.mxu0
        %v2340 = vpop.f32.mrf.mxu0
        %v2341 = vpop.f32.mrf.mxu0
        %2342 = vdwg.mxu0
        %v2344 = vsel %vm916, %v795, 0
        %v2347 = vsel %vm916, %v915, 0
        %2349 = vmatprep.subr.bf16.mxu0 0
        %2350 = vmatpush1.bf16.xpose.msra.mxu0 0
        %2351 = vmatprep.subr.bf16.mxu0 0
        %2352 = vmatpush1.bf16.xpose.msra.mxu0 0
        %2353 = vmatprep.subr.bf16.mxu0 0
        %2354 = vmatpush1.bf16.xpose.msra.mxu0 0
        %2355 = vmatprep.subr.bf16.mxu0 0
        %2356 = vmatpush1.bf16.xpose.msra.mxu0 0
        %2357 = vmatprep.subr.bf16.mxu0 0
        %2358 = vmatpush1.bf16.xpose.msra.mxu0 0
        %2359 = vmatprep.subr.bf16.mxu0 0
        %2360 = vmatpush1.bf16.xpose.msra.mxu0 0
        %2361 = vmatprep.subr.bf16.mxu0 0
        %2362 = vmatpush1.bf16.xpose.msra.mxu0 0
        %2363 = vmatprep.subr.bf16.mxu0 0
        %2364 = vmatpush1.bf16.xpose.msra.mxu0 %v2347
        %2365 = vmatprep.subr.bf16.mxu0 0
        %2366 = vmatpush2.bf16.xpose.msra.mxu0 0
        %2367 = vmatprep.subr.bf16.mxu0 0
        %2368 = vmatpush2.bf16.xpose.msra.mxu0 0
        %2369 = vmatprep.subr.bf16.mxu0 0
        %2370 = vmatpush2.bf16.xpose.msra.mxu0 0
        %2371 = vmatprep.subr.bf16.mxu0 0
        %2372 = vmatpush2.bf16.xpose.msra.mxu0 0
        %2373 = vmatprep.subr.bf16.mxu0 0
        %2374 = vmatpush2.bf16.xpose.msra.mxu0 0
        %2375 = vmatprep.subr.bf16.mxu0 0
        %2376 = vmatpush2.bf16.xpose.msra.mxu0 0
        %2377 = vmatprep.subr.bf16.mxu0 0
        %2378 = vmatpush2.bf16.xpose.msra.mxu0 0
        %2379 = vmatprep.subr.bf16.mxu0 0
        %2380 = vmatpush2.bf16.xpose.msra.mxu0 0
        %2381 = vmatprep.mubr.bf16.mxu0 0
        %2382 = vmatmul.mubr.bf16.gmra.mxu0 %v2344
        %v2383 = vpop.f32.mrf.mxu0
        %v2384 = vadd.f32 0.0, %v2383
        %v2385 = vpop.f32.mrf.mxu0
        %v2386 = vpop.f32.mrf.mxu0
        %v2387 = vpop.f32.mrf.mxu0
        %2388 = vdwg.mxu0
        %v2389 = vmul.f32 %v958, 0.125
        %v2390 = vmul.f32 %v1004, 0.125
        %v2391 = vmul.f32 %v1050, 0.125
        %v2392 = vmul.f32 %v1096, 0.125
        %v2393 = vmul.f32 %v1142, 0.125
        %v2394 = vmul.f32 %v1188, 0.125
        %v2395 = vmul.f32 %v1234, 0.125
        %v2396 = vmul.f32 %v1280, 0.125
        %v2397 = vmul.f32 %v1326, 0.125
        %v2398 = vmul.f32 %v1372, 0.125
        %v2399 = vmul.f32 %v1418, 0.125
        %v2400 = vmul.f32 %v1464, 0.125
        %v2401 = vmul.f32 %v1510, 0.125
        %v2402 = vmul.f32 %v1556, 0.125
        %v2403 = vmul.f32 %v1602, 0.125
        %v2404 = vmul.f32 %v1648, 0.125
        %v2405 = vmul.f32 %v1694, 0.125
        %v2406 = vmul.f32 %v1740, 0.125
        %v2407 = vmul.f32 %v1786, 0.125
        %v2408 = vmul.f32 %v1832, 0.125
        %v2409 = vmul.f32 %v1878, 0.125
        %v2410 = vmul.f32 %v1924, 0.125
        %v2411 = vmul.f32 %v1970, 0.125
        %v2412 = vmul.f32 %v2016, 0.125
        %v2413 = vmul.f32 %v2062, 0.125
        %v2414 = vmul.f32 %v2108, 0.125
        %v2415 = vmul.f32 %v2154, 0.125
        %v2416 = vmul.f32 %v2200, 0.125
        %v2417 = vmul.f32 %v2246, 0.125
        %v2418 = vmul.f32 %v2292, 0.125
        %v2419 = vmul.f32 %v2338, 0.125
        %v2420 = vmul.f32 %v2384, 0.125
        %vm2421 = vcmask 64512
        %v2422 = vsel %vm2421, %v2389, -inf
        %2423 = vmax.xlane.f32.xlu0 %v2422
        %v2424 = vpop.xlane.xlu0 %2423
        %v2425 = vsel %vm2421, %v2390, -inf
        %2426 = vmax.xlane.f32.xlu0 %v2425
        %v2427 = vpop.xlane.xlu0 %2426
        %v2428 = vsel %vm2421, %v2391, -inf
        %2429 = vmax.xlane.f32.xlu0 %v2428
        %v2430 = vpop.xlane.xlu0 %2429
        %v2431 = vsel %vm2421, %v2392, -inf
        %2432 = vmax.xlane.f32.xlu0 %v2431
        %v2433 = vpop.xlane.xlu0 %2432
        %v2434 = vsel %vm2421, %v2393, -inf
        %2435 = vmax.xlane.f32.xlu0 %v2434
        %v2436 = vpop.xlane.xlu0 %2435
        %v2437 = vsel %vm2421, %v2394, -inf
        %2438 = vmax.xlane.f32.xlu0 %v2437
        %v2439 = vpop.xlane.xlu0 %2438
        %v2440 = vsel %vm2421, %v2395, -inf
        %2441 = vmax.xlane.f32.xlu0 %v2440
        %v2442 = vpop.xlane.xlu0 %2441
        %v2443 = vsel %vm2421, %v2396, -inf
        %2444 = vmax.xlane.f32.xlu0 %v2443
        %v2445 = vpop.xlane.xlu0 %2444
        %v2446 = vsel %vm2421, %v2397, -inf
        %2447 = vmax.xlane.f32.xlu0 %v2446
        %v2448 = vpop.xlane.xlu0 %2447
        %v2449 = vsel %vm2421, %v2398, -inf
        %2450 = vmax.xlane.f32.xlu0 %v2449
        %v2451 = vpop.xlane.xlu0 %2450
        %v2452 = vsel %vm2421, %v2399, -inf
        %2453 = vmax.xlane.f32.xlu0 %v2452
        %v2454 = vpop.xlane.xlu0 %2453
        %v2455 = vsel %vm2421, %v2400, -inf
        %2456 = vmax.xlane.f32.xlu0 %v2455
        %v2457 = vpop.xlane.xlu0 %2456
        %v2458 = vsel %vm2421, %v2401, -inf
        %2459 = vmax.xlane.f32.xlu0 %v2458
        %v2460 = vpop.xlane.xlu0 %2459
        %v2461 = vsel %vm2421, %v2402, -inf
        %2462 = vmax.xlane.f32.xlu0 %v2461
        %v2463 = vpop.xlane.xlu0 %2462
        %v2464 = vsel %vm2421, %v2403, -inf
        %2465 = vmax.xlane.f32.xlu0 %v2464
        %v2466 = vpop.xlane.xlu0 %2465
        %v2467 = vsel %vm2421, %v2404, -inf
        %2468 = vmax.xlane.f32.xlu0 %v2467
        %v2469 = vpop.xlane.xlu0 %2468
        %v2470 = vsel %vm2421, %v2405, -inf
        %2471 = vmax.xlane.f32.xlu0 %v2470
        %v2472 = vpop.xlane.xlu0 %2471
        %v2473 = vsel %vm2421, %v2406, -inf
        %2474 = vmax.xlane.f32.xlu0 %v2473
        %v2475 = vpop.xlane.xlu0 %2474
        %v2476 = vsel %vm2421, %v2407, -inf
        %2477 = vmax.xlane.f32.xlu0 %v2476
        %v2478 = vpop.xlane.xlu0 %2477
        %v2479 = vsel %vm2421, %v2408, -inf
        %2480 = vmax.xlane.f32.xlu0 %v2479
        %v2481 = vpop.xlane.xlu0 %2480
        %v2482 = vsel %vm2421, %v2409, -inf
        %2483 = vmax.xlane.f32.xlu0 %v2482
        %v2484 = vpop.xlane.xlu0 %2483
        %v2485 = vsel %vm2421, %v2410, -inf
        %2486 = vmax.xlane.f32.xlu0 %v2485
        %v2487 = vpop.xlane.xlu0 %2486
        %v2488 = vsel %vm2421, %v2411, -inf
        %2489 = vmax.xlane.f32.xlu0 %v2488
        %v2490 = vpop.xlane.xlu0 %2489
        %v2491 = vsel %vm2421, %v2412, -inf
        %2492 = vmax.xlane.f32.xlu0 %v2491
        %v2493 = vpop.xlane.xlu0 %2492
        %v2494 = vsel %vm2421, %v2413, -inf
        %2495 = vmax.xlane.f32.xlu0 %v2494
        %v2496 = vpop.xlane.xlu0 %2495
        %v2497 = vsel %vm2421, %v2414, -inf
        %2498 = vmax.xlane.f32.xlu0 %v2497
        %v2499 = vpop.xlane.xlu0 %2498
        %v2500 = vsel %vm2421, %v2415, -inf
        %2501 = vmax.xlane.f32.xlu0 %v2500
        %v2502 = vpop.xlane.xlu0 %2501
        %v2503 = vsel %vm2421, %v2416, -inf
        %2504 = vmax.xlane.f32.xlu0 %v2503
        %v2505 = vpop.xlane.xlu0 %2504
        %v2506 = vsel %vm2421, %v2417, -inf
        %2507 = vmax.xlane.f32.xlu0 %v2506
        %v2508 = vpop.xlane.xlu0 %2507
        %v2509 = vsel %vm2421, %v2418, -inf
        %2510 = vmax.xlane.f32.xlu0 %v2509
        %v2511 = vpop.xlane.xlu0 %2510
        %v2512 = vsel %vm2421, %v2419, -inf
        %2513 = vmax.xlane.f32.xlu0 %v2512
        %v2514 = vpop.xlane.xlu0 %2513
        %v2515 = vsel %vm2421, %v2420, -inf
        %2516 = vmax.xlane.f32.xlu0 %v2515
        %v2517 = vpop.xlane.xlu0 %2516
        %v2518 = vsub.f32 %v2389, %v2424
        %v2519 = vsub.f32 %v2390, %v2427
        %v2520 = vsub.f32 %v2391, %v2430
        %v2521 = vsub.f32 %v2392, %v2433
        %v2522 = vsub.f32 %v2393, %v2436
        %v2523 = vsub.f32 %v2394, %v2439
        %v2524 = vsub.f32 %v2395, %v2442
        %v2525 = vsub.f32 %v2396, %v2445
        %v2526 = vsub.f32 %v2397, %v2448
        %v2527 = vsub.f32 %v2398, %v2451
        %v2528 = vsub.f32 %v2399, %v2454
        %v2529 = vsub.f32 %v2400, %v2457
        %v2530 = vsub.f32 %v2401, %v2460
        %v2531 = vsub.f32 %v2402, %v2463
        %v2532 = vsub.f32 %v2403, %v2466
        %v2533 = vsub.f32 %v2404, %v2469
        %v2534 = vsub.f32 %v2405, %v2472
        %v2535 = vsub.f32 %v2406, %v2475
        %v2536 = vsub.f32 %v2407, %v2478
        %v2537 = vsub.f32 %v2408, %v2481
        %v2538 = vsub.f32 %v2409, %v2484
        %v2539 = vsub.f32 %v2410, %v2487
        %v2540 = vsub.f32 %v2411, %v2490
        %v2541 = vsub.f32 %v2412, %v2493
        %v2542 = vsub.f32 %v2413, %v2496
        %v2543 = vsub.f32 %v2414, %v2499
        %v2544 = vsub.f32 %v2415, %v2502
        %v2545 = vsub.f32 %v2416, %v2505
        %v2546 = vsub.f32 %v2417, %v2508
        %v2547 = vsub.f32 %v2418, %v2511
        %v2548 = vsub.f32 %v2419, %v2514
        %v2549 = vsub.f32 %v2420, %v2517
        %v2550 = vmul.f32 %v2518, 1.442695
        %v2551 = vpow.pop %v2550
        %v2552 = vmul.f32 %v2519, 1.442695
        %v2553 = vpow.pop %v2552
        %v2554 = vmul.f32 %v2520, 1.442695
        %v2555 = vpow.pop %v2554
        %v2556 = vmul.f32 %v2521, 1.442695
        %v2557 = vpow.pop %v2556
        %v2558 = vmul.f32 %v2522, 1.442695
        %v2559 = vpow.pop %v2558
        %v2560 = vmul.f32 %v2523, 1.442695
        %v2561 = vpow.pop %v2560
        %v2562 = vmul.f32 %v2524, 1.442695
        %v2563 = vpow.pop %v2562
        %v2564 = vmul.f32 %v2525, 1.442695
        %v2565 = vpow.pop %v2564
        %v2566 = vmul.f32 %v2526, 1.442695
        %v2567 = vpow.pop %v2566
        %v2568 = vmul.f32 %v2527, 1.442695
        %v2569 = vpow.pop %v2568
        %v2570 = vmul.f32 %v2528, 1.442695
        %v2571 = vpow.pop %v2570
        %v2572 = vmul.f32 %v2529, 1.442695
        %v2573 = vpow.pop %v2572
        %v2574 = vmul.f32 %v2530, 1.442695
        %v2575 = vpow.pop %v2574
        %v2576 = vmul.f32 %v2531, 1.442695
        %v2577 = vpow.pop %v2576
        %v2578 = vmul.f32 %v2532, 1.442695
        %v2579 = vpow.pop %v2578
        %v2580 = vmul.f32 %v2533, 1.442695
        %v2581 = vpow.pop %v2580
        %v2582 = vmul.f32 %v2534, 1.442695
        %v2583 = vpow.pop %v2582
        %v2584 = vmul.f32 %v2535, 1.442695
        %v2585 = vpow.pop %v2584
        %v2586 = vmul.f32 %v2536, 1.442695
        %v2587 = vpow.pop %v2586
        %v2588 = vmul.f32 %v2537, 1.442695
        %v2589 = vpow.pop %v2588
        %v2590 = vmul.f32 %v2538, 1.442695
        %v2591 = vpow.pop %v2590
        %v2592 = vmul.f32 %v2539, 1.442695
        %v2593 = vpow.pop %v2592
        %v2594 = vmul.f32 %v2540, 1.442695
        %v2595 = vpow.pop %v2594
        %v2596 = vmul.f32 %v2541, 1.442695
        %v2597 = vpow.pop %v2596
        %v2598 = vmul.f32 %v2542, 1.442695
        %v2599 = vpow.pop %v2598
        %v2600 = vmul.f32 %v2543, 1.442695
        %v2601 = vpow.pop %v2600
        %v2602 = vmul.f32 %v2544, 1.442695
        %v2603 = vpow.pop %v2602
        %v2604 = vmul.f32 %v2545, 1.442695
        %v2605 = vpow.pop %v2604
        %v2606 = vmul.f32 %v2546, 1.442695
        %v2607 = vpow.pop %v2606
        %v2608 = vmul.f32 %v2547, 1.442695
        %v2609 = vpow.pop %v2608
        %v2610 = vmul.f32 %v2548, 1.442695
        %v2611 = vpow.pop %v2610
        %v2612 = vmul.f32 %v2549, 1.442695
        %v2613 = vpow.pop %v2612
        %v2614 = vsel %vm2421, %v2551, 0.0
        %2615 = vadd.xlane.f32.xlu0 %v2614
        %v2616 = vpop.xlane.xlu0 %2615
        %v2617 = vsel %vm2421, %v2553, 0.0
        %2618 = vadd.xlane.f32.xlu0 %v2617
        %v2619 = vpop.xlane.xlu0 %2618
        %v2620 = vsel %vm2421, %v2555, 0.0
        %2621 = vadd.xlane.f32.xlu0 %v2620
        %v2622 = vpop.xlane.xlu0 %2621
        %v2623 = vsel %vm2421, %v2557, 0.0
        %2624 = vadd.xlane.f32.xlu0 %v2623
        %v2625 = vpop.xlane.xlu0 %2624
        %v2626 = vsel %vm2421, %v2559, 0.0
        %2627 = vadd.xlane.f32.xlu0 %v2626
        %v2628 = vpop.xlane.xlu0 %2627
        %v2629 = vsel %vm2421, %v2561, 0.0
        %2630 = vadd.xlane.f32.xlu0 %v2629
        %v2631 = vpop.xlane.xlu0 %2630
        %v2632 = vsel %vm2421, %v2563, 0.0
        %2633 = vadd.xlane.f32.xlu0 %v2632
        %v2634 = vpop.xlane.xlu0 %2633
        %v2635 = vsel %vm2421, %v2565, 0.0
        %2636 = vadd.xlane.f32.xlu0 %v2635
        %v2637 = vpop.xlane.xlu0 %2636
        %v2638 = vsel %vm2421, %v2567, 0.0
        %2639 = vadd.xlane.f32.xlu0 %v2638
        %v2640 = vpop.xlane.xlu0 %2639
        %v2641 = vsel %vm2421, %v2569, 0.0
        %2642 = vadd.xlane.f32.xlu0 %v2641
        %v2643 = vpop.xlane.xlu0 %2642
        %v2644 = vsel %vm2421, %v2571, 0.0
        %2645 = vadd.xlane.f32.xlu0 %v2644
        %v2646 = vpop.xlane.xlu0 %2645
        %v2647 = vsel %vm2421, %v2573, 0.0
        %2648 = vadd.xlane.f32.xlu0 %v2647
        %v2649 = vpop.xlane.xlu0 %2648
        %v2650 = vsel %vm2421, %v2575, 0.0
        %2651 = vadd.xlane.f32.xlu0 %v2650
        %v2652 = vpop.xlane.xlu0 %2651
        %v2653 = vsel %vm2421, %v2577, 0.0
        %2654 = vadd.xlane.f32.xlu0 %v2653
        %v2655 = vpop.xlane.xlu0 %2654
        %v2656 = vsel %vm2421, %v2579, 0.0
        %2657 = vadd.xlane.f32.xlu0 %v2656
        %v2658 = vpop.xlane.xlu0 %2657
        %v2659 = vsel %vm2421, %v2581, 0.0
        %2660 = vadd.xlane.f32.xlu0 %v2659
        %v2661 = vpop.xlane.xlu0 %2660
        %v2662 = vsel %vm2421, %v2583, 0.0
        %2663 = vadd.xlane.f32.xlu0 %v2662
        %v2664 = vpop.xlane.xlu0 %2663
        %v2665 = vsel %vm2421, %v2585, 0.0
        %2666 = vadd.xlane.f32.xlu0 %v2665
        %v2667 = vpop.xlane.xlu0 %2666
        %v2668 = vsel %vm2421, %v2587, 0.0
        %2669 = vadd.xlane.f32.xlu0 %v2668
        %v2670 = vpop.xlane.xlu0 %2669
        %v2671 = vsel %vm2421, %v2589, 0.0
        %2672 = vadd.xlane.f32.xlu0 %v2671
        %v2673 = vpop.xlane.xlu0 %2672
        %v2674 = vsel %vm2421, %v2591, 0.0
        %2675 = vadd.xlane.f32.xlu0 %v2674
        %v2676 = vpop.xlane.xlu0 %2675
        %v2677 = vsel %vm2421, %v2593, 0.0
        %2678 = vadd.xlane.f32.xlu0 %v2677
        %v2679 = vpop.xlane.xlu0 %2678
        %v2680 = vsel %vm2421, %v2595, 0.0
        %2681 = vadd.xlane.f32.xlu0 %v2680
        %v2682 = vpop.xlane.xlu0 %2681
        %v2683 = vsel %vm2421, %v2597, 0.0
        %2684 = vadd.xlane.f32.xlu0 %v2683
        %v2685 = vpop.xlane.xlu0 %2684
        %v2686 = vsel %vm2421, %v2599, 0.0
        %2687 = vadd.xlane.f32.xlu0 %v2686
        %v2688 = vpop.xlane.xlu0 %2687
        %v2689 = vsel %vm2421, %v2601, 0.0
        %2690 = vadd.xlane.f32.xlu0 %v2689
        %v2691 = vpop.xlane.xlu0 %2690
        %v2692 = vsel %vm2421, %v2603, 0.0
        %2693 = vadd.xlane.f32.xlu0 %v2692
        %v2694 = vpop.xlane.xlu0 %2693
        %v2695 = vsel %vm2421, %v2605, 0.0
        %2696 = vadd.xlane.f32.xlu0 %v2695
        %v2697 = vpop.xlane.xlu0 %2696
        %v2698 = vsel %vm2421, %v2607, 0.0
        %2699 = vadd.xlane.f32.xlu0 %v2698
        %v2700 = vpop.xlane.xlu0 %2699
        %v2701 = vsel %vm2421, %v2609, 0.0
        %2702 = vadd.xlane.f32.xlu0 %v2701
        %v2703 = vpop.xlane.xlu0 %2702
        %v2704 = vsel %vm2421, %v2611, 0.0
        %2705 = vadd.xlane.f32.xlu0 %v2704
        %v2706 = vpop.xlane.xlu0 %2705
        %v2707 = vsel %vm2421, %v2613, 0.0
        %2708 = vadd.xlane.f32.xlu0 %v2707
        %v2709 = vpop.xlane.xlu0 %2708
        %v2710 = vrcp.pop %v2616
        %v2711 = vrcp.pop %v2619
        %v2712 = vrcp.pop %v2622
        %v2713 = vrcp.pop %v2625
        %v2714 = vrcp.pop %v2628
        %v2715 = vrcp.pop %v2631
        %v2716 = vrcp.pop %v2634
        %v2717 = vrcp.pop %v2637
        %v2718 = vrcp.pop %v2640
        %v2719 = vrcp.pop %v2643
        %v2720 = vrcp.pop %v2646
        %v2721 = vrcp.pop %v2649
        %v2722 = vrcp.pop %v2652
        %v2723 = vrcp.pop %v2655
        %v2724 = vrcp.pop %v2658
        %v2725 = vrcp.pop %v2661
        %v2726 = vrcp.pop %v2664
        %v2727 = vrcp.pop %v2667
        %v2728 = vrcp.pop %v2670
        %v2729 = vrcp.pop %v2673
        %v2730 = vrcp.pop %v2676
        %v2731 = vrcp.pop %v2679
        %v2732 = vrcp.pop %v2682
        %v2733 = vrcp.pop %v2685
        %v2734 = vrcp.pop %v2688
        %v2735 = vrcp.pop %v2691
        %v2736 = vrcp.pop %v2694
        %v2737 = vrcp.pop %v2697
        %v2738 = vrcp.pop %v2700
        %v2739 = vrcp.pop %v2703
        %v2740 = vrcp.pop %v2706
        %v2741 = vrcp.pop %v2709
        %v2742 = vmul.f32 %v2551, %v2710
        %v2743 = vmul.f32 %v2553, %v2711
        %v2744 = vmul.f32 %v2555, %v2712
        %v2745 = vmul.f32 %v2557, %v2713
        %v2746 = vmul.f32 %v2559, %v2714
        %v2747 = vmul.f32 %v2561, %v2715
        %v2748 = vmul.f32 %v2563, %v2716
        %v2749 = vmul.f32 %v2565, %v2717
        %v2750 = vmul.f32 %v2567, %v2718
        %v2751 = vmul.f32 %v2569, %v2719
        %v2752 = vmul.f32 %v2571, %v2720
        %v2753 = vmul.f32 %v2573, %v2721
        %v2754 = vmul.f32 %v2575, %v2722
        %v2755 = vmul.f32 %v2577, %v2723
        %v2756 = vmul.f32 %v2579, %v2724
        %v2757 = vmul.f32 %v2581, %v2725
        %v2758 = vmul.f32 %v2583, %v2726
        %v2759 = vmul.f32 %v2585, %v2727
        %v2760 = vmul.f32 %v2587, %v2728
        %v2761 = vmul.f32 %v2589, %v2729
        %v2762 = vmul.f32 %v2591, %v2730
        %v2763 = vmul.f32 %v2593, %v2731
        %v2764 = vmul.f32 %v2595, %v2732
        %v2765 = vmul.f32 %v2597, %v2733
        %v2766 = vmul.f32 %v2599, %v2734
        %v2767 = vmul.f32 %v2601, %v2735
        %v2768 = vmul.f32 %v2603, %v2736
        %v2769 = vmul.f32 %v2605, %v2737
        %v2770 = vmul.f32 %v2607, %v2738
        %v2771 = vmul.f32 %v2609, %v2739
        %v2772 = vmul.f32 %v2611, %v2740
        %v2773 = vmul.f32 %v2613, %v2741
        %v2774 = vpack.c.bf16 %v2742, %v2742
        %v2775 = vpack.c.bf16 %v2743, %v2743
        %v2776 = vpack.c.bf16 %v2744, %v2744
        %v2777 = vpack.c.bf16 %v2745, %v2745
        %v2778 = vpack.c.bf16 %v2746, %v2746
        %v2779 = vpack.c.bf16 %v2747, %v2747
        %v2780 = vpack.c.bf16 %v2748, %v2748
        %v2781 = vpack.c.bf16 %v2749, %v2749
        %v2782 = vpack.c.bf16 %v2750, %v2750
        %v2783 = vpack.c.bf16 %v2751, %v2751
        %v2784 = vpack.c.bf16 %v2752, %v2752
        %v2785 = vpack.c.bf16 %v2753, %v2753
        %v2786 = vpack.c.bf16 %v2754, %v2754
        %v2787 = vpack.c.bf16 %v2755, %v2755
        %v2788 = vpack.c.bf16 %v2756, %v2756
        %v2789 = vpack.c.bf16 %v2757, %v2757
        %v2790 = vpack.c.bf16 %v2758, %v2758
        %v2791 = vpack.c.bf16 %v2759, %v2759
        %v2792 = vpack.c.bf16 %v2760, %v2760
        %v2793 = vpack.c.bf16 %v2761, %v2761
        %v2794 = vpack.c.bf16 %v2762, %v2762
        %v2795 = vpack.c.bf16 %v2763, %v2763
        %v2796 = vpack.c.bf16 %v2764, %v2764
        %v2797 = vpack.c.bf16 %v2765, %v2765
        %v2798 = vpack.c.bf16 %v2766, %v2766
        %v2799 = vpack.c.bf16 %v2767, %v2767
        %v2800 = vpack.c.bf16 %v2768, %v2768
        %v2801 = vpack.c.bf16 %v2769, %v2769
        %v2802 = vpack.c.bf16 %v2770, %v2770
        %v2803 = vpack.c.bf16 %v2771, %v2771
        %v2804 = vpack.c.bf16 %v2772, %v2772
        %v2805 = vpack.c.bf16 %v2773, %v2773
        %2807 = vrot.lane.b32.xlu0 %v884, 96
        %v2808 = vpop.permute.xlu0 %2807
        %v2810 = vsel %vm2421, %v2774, 0
        %vm2812 = vcmask 1043456
        %v2814 = vsel %vm2812, %v2808, 0
        %2816 = vmatprep.subr.bf16.mxu0 0
        %2817 = vmatpush1.bf16.msra.mxu0 0
        %2818 = vmatprep.subr.bf16.mxu0 0
        %2819 = vmatpush1.bf16.msra.mxu0 0
        %2820 = vmatprep.subr.bf16.mxu0 0
        %2821 = vmatpush1.bf16.msra.mxu0 0
        %2822 = vmatprep.subr.bf16.mxu0 0
        %2823 = vmatpush1.bf16.msra.mxu0 0
        %2824 = vmatprep.subr.bf16.mxu0 0
        %2825 = vmatpush1.bf16.msra.mxu0 0
        %2826 = vmatprep.subr.bf16.mxu0 0
        %2827 = vmatpush1.bf16.msra.mxu0 0
        %2828 = vmatprep.subr.bf16.mxu0 0
        %2829 = vmatpush1.bf16.msra.mxu0 0
        %2830 = vmatprep.subr.bf16.mxu0 0
        %2831 = vmatpush1.bf16.msra.mxu0 %v2814
        %2832 = vmatprep.subr.bf16.mxu0 0
        %2833 = vmatpush2.bf16.msra.mxu0 0
        %2834 = vmatprep.subr.bf16.mxu0 0
        %2835 = vmatpush2.bf16.msra.mxu0 0
        %2836 = vmatprep.subr.bf16.mxu0 0
        %2837 = vmatpush2.bf16.msra.mxu0 0
        %2838 = vmatprep.subr.bf16.mxu0 0
        %2839 = vmatpush2.bf16.msra.mxu0 0
        %2840 = vmatprep.subr.bf16.mxu0 0
        %2841 = vmatpush2.bf16.msra.mxu0 0
        %2842 = vmatprep.subr.bf16.mxu0 0
        %2843 = vmatpush2.bf16.msra.mxu0 0
        %2844 = vmatprep.subr.bf16.mxu0 0
        %2845 = vmatpush2.bf16.msra.mxu0 0
        %2846 = vmatprep.subr.bf16.mxu0 0
        %2847 = vmatpush2.bf16.msra.mxu0 0
        %2848 = vmatprep.mubr.bf16.mxu0 0
        %2849 = vmatmul.mubr.bf16.gmra.mxu0 %v2810
        %v2850 = vpop.f32.mrf.mxu0
        %v2851 = vadd.f32 0.0, %v2850
        %v2852 = vpop.f32.mrf.mxu0
        %v2853 = vpop.f32.mrf.mxu0
        %v2854 = vpop.f32.mrf.mxu0
        %2855 = vdwg.mxu0
        %2857 = vrot.lane.b32.xlu0 %v885, 96
        %v2858 = vpop.permute.xlu0 %2857
        %v2860 = vsel %vm2421, %v2775, 0
        %v2863 = vsel %vm2812, %v2858, 0
        %2865 = vmatprep.subr.bf16.mxu0 0
        %2866 = vmatpush1.bf16.msra.mxu0 0
        %2867 = vmatprep.subr.bf16.mxu0 0
        %2868 = vmatpush1.bf16.msra.mxu0 0
        %2869 = vmatprep.subr.bf16.mxu0 0
        %2870 = vmatpush1.bf16.msra.mxu0 0
        %2871 = vmatprep.subr.bf16.mxu0 0
        %2872 = vmatpush1.bf16.msra.mxu0 0
        %2873 = vmatprep.subr.bf16.mxu0 0
        %2874 = vmatpush1.bf16.msra.mxu0 0
        %2875 = vmatprep.subr.bf16.mxu0 0
        %2876 = vmatpush1.bf16.msra.mxu0 0
        %2877 = vmatprep.subr.bf16.mxu0 0
        %2878 = vmatpush1.bf16.msra.mxu0 0
        %2879 = vmatprep.subr.bf16.mxu0 0
        %2880 = vmatpush1.bf16.msra.mxu0 %v2863
        %2881 = vmatprep.subr.bf16.mxu0 0
        %2882 = vmatpush2.bf16.msra.mxu0 0
        %2883 = vmatprep.subr.bf16.mxu0 0
        %2884 = vmatpush2.bf16.msra.mxu0 0
        %2885 = vmatprep.subr.bf16.mxu0 0
        %2886 = vmatpush2.bf16.msra.mxu0 0
        %2887 = vmatprep.subr.bf16.mxu0 0
        %2888 = vmatpush2.bf16.msra.mxu0 0
        %2889 = vmatprep.subr.bf16.mxu0 0
        %2890 = vmatpush2.bf16.msra.mxu0 0
        %2891 = vmatprep.subr.bf16.mxu0 0
        %2892 = vmatpush2.bf16.msra.mxu0 0
        %2893 = vmatprep.subr.bf16.mxu0 0
        %2894 = vmatpush2.bf16.msra.mxu0 0
        %2895 = vmatprep.subr.bf16.mxu0 0
        %2896 = vmatpush2.bf16.msra.mxu0 0
        %2897 = vmatprep.mubr.bf16.mxu0 0
        %2898 = vmatmul.mubr.bf16.gmra.mxu0 %v2860
        %v2899 = vpop.f32.mrf.mxu0
        %v2900 = vadd.f32 0.0, %v2899
        %v2901 = vpop.f32.mrf.mxu0
        %v2902 = vpop.f32.mrf.mxu0
        %v2903 = vpop.f32.mrf.mxu0
        %2904 = vdwg.mxu0
        %2906 = vrot.lane.b32.xlu0 %v886, 96
        %v2907 = vpop.permute.xlu0 %2906
        %v2909 = vsel %vm2421, %v2776, 0
        %v2912 = vsel %vm2812, %v2907, 0
        %2914 = vmatprep.subr.bf16.mxu0 0
        %2915 = vmatpush1.bf16.msra.mxu0 0
        %2916 = vmatprep.subr.bf16.mxu0 0
        %2917 = vmatpush1.bf16.msra.mxu0 0
        %2918 = vmatprep.subr.bf16.mxu0 0
        %2919 = vmatpush1.bf16.msra.mxu0 0
        %2920 = vmatprep.subr.bf16.mxu0 0
        %2921 = vmatpush1.bf16.msra.mxu0 0
        %2922 = vmatprep.subr.bf16.mxu0 0
        %2923 = vmatpush1.bf16.msra.mxu0 0
        %2924 = vmatprep.subr.bf16.mxu0 0
        %2925 = vmatpush1.bf16.msra.mxu0 0
        %2926 = vmatprep.subr.bf16.mxu0 0
        %2927 = vmatpush1.bf16.msra.mxu0 0
        %2928 = vmatprep.subr.bf16.mxu0 0
        %2929 = vmatpush1.bf16.msra.mxu0 %v2912
        %2930 = vmatprep.subr.bf16.mxu0 0
        %2931 = vmatpush2.bf16.msra.mxu0 0
        %2932 = vmatprep.subr.bf16.mxu0 0
        %2933 = vmatpush2.bf16.msra.mxu0 0
        %2934 = vmatprep.subr.bf16.mxu0 0
        %2935 = vmatpush2.bf16.msra.mxu0 0
        %2936 = vmatprep.subr.bf16.mxu0 0
        %2937 = vmatpush2.bf16.msra.mxu0 0
        %2938 = vmatprep.subr.bf16.mxu0 0
        %2939 = vmatpush2.bf16.msra.mxu0 0
        %2940 = vmatprep.subr.bf16.mxu0 0
        %2941 = vmatpush2.bf16.msra.mxu0 0
        %2942 = vmatprep.subr.bf16.mxu0 0
        %2943 = vmatpush2.bf16.msra.mxu0 0
        %2944 = vmatprep.subr.bf16.mxu0 0
        %2945 = vmatpush2.bf16.msra.mxu0 0
        %2946 = vmatprep.mubr.bf16.mxu0 0
        %2947 = vmatmul.mubr.bf16.gmra.mxu0 %v2909
        %v2948 = vpop.f32.mrf.mxu0
        %v2949 = vadd.f32 0.0, %v2948
        %v2950 = vpop.f32.mrf.mxu0
        %v2951 = vpop.f32.mrf.mxu0
        %v2952 = vpop.f32.mrf.mxu0
        %2953 = vdwg.mxu0
        %2955 = vrot.lane.b32.xlu0 %v887, 96
        %v2956 = vpop.permute.xlu0 %2955
        %v2958 = vsel %vm2421, %v2777, 0
        %v2961 = vsel %vm2812, %v2956, 0
        %2963 = vmatprep.subr.bf16.mxu0 0
        %2964 = vmatpush1.bf16.msra.mxu0 0
        %2965 = vmatprep.subr.bf16.mxu0 0
        %2966 = vmatpush1.bf16.msra.mxu0 0
        %2967 = vmatprep.subr.bf16.mxu0 0
        %2968 = vmatpush1.bf16.msra.mxu0 0
        %2969 = vmatprep.subr.bf16.mxu0 0
        %2970 = vmatpush1.bf16.msra.mxu0 0
        %2971 = vmatprep.subr.bf16.mxu0 0
        %2972 = vmatpush1.bf16.msra.mxu0 0
        %2973 = vmatprep.subr.bf16.mxu0 0
        %2974 = vmatpush1.bf16.msra.mxu0 0
        %2975 = vmatprep.subr.bf16.mxu0 0
        %2976 = vmatpush1.bf16.msra.mxu0 0
        %2977 = vmatprep.subr.bf16.mxu0 0
        %2978 = vmatpush1.bf16.msra.mxu0 %v2961
        %2979 = vmatprep.subr.bf16.mxu0 0
        %2980 = vmatpush2.bf16.msra.mxu0 0
        %2981 = vmatprep.subr.bf16.mxu0 0
        %2982 = vmatpush2.bf16.msra.mxu0 0
        %2983 = vmatprep.subr.bf16.mxu0 0
        %2984 = vmatpush2.bf16.msra.mxu0 0
        %2985 = vmatprep.subr.bf16.mxu0 0
        %2986 = vmatpush2.bf16.msra.mxu0 0
        %2987 = vmatprep.subr.bf16.mxu0 0
        %2988 = vmatpush2.bf16.msra.mxu0 0
        %2989 = vmatprep.subr.bf16.mxu0 0
        %2990 = vmatpush2.bf16.msra.mxu0 0
        %2991 = vmatprep.subr.bf16.mxu0 0
        %2992 = vmatpush2.bf16.msra.mxu0 0
        %2993 = vmatprep.subr.bf16.mxu0 0
        %2994 = vmatpush2.bf16.msra.mxu0 0
        %2995 = vmatprep.mubr.bf16.mxu0 0
        %2996 = vmatmul.mubr.bf16.gmra.mxu0 %v2958
        %v2997 = vpop.f32.mrf.mxu0
        %v2998 = vadd.f32 0.0, %v2997
        %v2999 = vpop.f32.mrf.mxu0
        %v3000 = vpop.f32.mrf.mxu0
        %v3001 = vpop.f32.mrf.mxu0
        %3002 = vdwg.mxu0
        %3004 = vrot.lane.b32.xlu0 %v888, 96
        %v3005 = vpop.permute.xlu0 %3004
        %v3007 = vsel %vm2421, %v2778, 0
        %v3010 = vsel %vm2812, %v3005, 0
        %3012 = vmatprep.subr.bf16.mxu0 0
        %3013 = vmatpush1.bf16.msra.mxu0 0
        %3014 = vmatprep.subr.bf16.mxu0 0
        %3015 = vmatpush1.bf16.msra.mxu0 0
        %3016 = vmatprep.subr.bf16.mxu0 0
        %3017 = vmatpush1.bf16.msra.mxu0 0
        %3018 = vmatprep.subr.bf16.mxu0 0
        %3019 = vmatpush1.bf16.msra.mxu0 0
        %3020 = vmatprep.subr.bf16.mxu0 0
        %3021 = vmatpush1.bf16.msra.mxu0 0
        %3022 = vmatprep.subr.bf16.mxu0 0
        %3023 = vmatpush1.bf16.msra.mxu0 0
        %3024 = vmatprep.subr.bf16.mxu0 0
        %3025 = vmatpush1.bf16.msra.mxu0 0
        %3026 = vmatprep.subr.bf16.mxu0 0
        %3027 = vmatpush1.bf16.msra.mxu0 %v3010
        %3028 = vmatprep.subr.bf16.mxu0 0
        %3029 = vmatpush2.bf16.msra.mxu0 0
        %3030 = vmatprep.subr.bf16.mxu0 0
        %3031 = vmatpush2.bf16.msra.mxu0 0
        %3032 = vmatprep.subr.bf16.mxu0 0
        %3033 = vmatpush2.bf16.msra.mxu0 0
        %3034 = vmatprep.subr.bf16.mxu0 0
        %3035 = vmatpush2.bf16.msra.mxu0 0
        %3036 = vmatprep.subr.bf16.mxu0 0
        %3037 = vmatpush2.bf16.msra.mxu0 0
        %3038 = vmatprep.subr.bf16.mxu0 0
        %3039 = vmatpush2.bf16.msra.mxu0 0
        %3040 = vmatprep.subr.bf16.mxu0 0
        %3041 = vmatpush2.bf16.msra.mxu0 0
        %3042 = vmatprep.subr.bf16.mxu0 0
        %3043 = vmatpush2.bf16.msra.mxu0 0
        %3044 = vmatprep.mubr.bf16.mxu0 0
        %3045 = vmatmul.mubr.bf16.gmra.mxu0 %v3007
        %v3046 = vpop.f32.mrf.mxu0
        %v3047 = vadd.f32 0.0, %v3046
        %v3048 = vpop.f32.mrf.mxu0
        %v3049 = vpop.f32.mrf.mxu0
        %v3050 = vpop.f32.mrf.mxu0
        %3051 = vdwg.mxu0
        %3053 = vrot.lane.b32.xlu0 %v889, 96
        %v3054 = vpop.permute.xlu0 %3053
        %v3056 = vsel %vm2421, %v2779, 0
        %v3059 = vsel %vm2812, %v3054, 0
        %3061 = vmatprep.subr.bf16.mxu0 0
        %3062 = vmatpush1.bf16.msra.mxu0 0
        %3063 = vmatprep.subr.bf16.mxu0 0
        %3064 = vmatpush1.bf16.msra.mxu0 0
        %3065 = vmatprep.subr.bf16.mxu0 0
        %3066 = vmatpush1.bf16.msra.mxu0 0
        %3067 = vmatprep.subr.bf16.mxu0 0
        %3068 = vmatpush1.bf16.msra.mxu0 0
        %3069 = vmatprep.subr.bf16.mxu0 0
        %3070 = vmatpush1.bf16.msra.mxu0 0
        %3071 = vmatprep.subr.bf16.mxu0 0
        %3072 = vmatpush1.bf16.msra.mxu0 0
        %3073 = vmatprep.subr.bf16.mxu0 0
        %3074 = vmatpush1.bf16.msra.mxu0 0
        %3075 = vmatprep.subr.bf16.mxu0 0
        %3076 = vmatpush1.bf16.msra.mxu0 %v3059
        %3077 = vmatprep.subr.bf16.mxu0 0
        %3078 = vmatpush2.bf16.msra.mxu0 0
        %3079 = vmatprep.subr.bf16.mxu0 0
        %3080 = vmatpush2.bf16.msra.mxu0 0
        %3081 = vmatprep.subr.bf16.mxu0 0
        %3082 = vmatpush2.bf16.msra.mxu0 0
        %3083 = vmatprep.subr.bf16.mxu0 0
        %3084 = vmatpush2.bf16.msra.mxu0 0
        %3085 = vmatprep.subr.bf16.mxu0 0
        %3086 = vmatpush2.bf16.msra.mxu0 0
        %3087 = vmatprep.subr.bf16.mxu0 0
        %3088 = vmatpush2.bf16.msra.mxu0 0
        %3089 = vmatprep.subr.bf16.mxu0 0
        %3090 = vmatpush2.bf16.msra.mxu0 0
        %3091 = vmatprep.subr.bf16.mxu0 0
        %3092 = vmatpush2.bf16.msra.mxu0 0
        %3093 = vmatprep.mubr.bf16.mxu0 0
        %3094 = vmatmul.mubr.bf16.gmra.mxu0 %v3056
        %v3095 = vpop.f32.mrf.mxu0
        %v3096 = vadd.f32 0.0, %v3095
        %v3097 = vpop.f32.mrf.mxu0
        %v3098 = vpop.f32.mrf.mxu0
        %v3099 = vpop.f32.mrf.mxu0
        %3100 = vdwg.mxu0
        %3102 = vrot.lane.b32.xlu0 %v890, 96
        %v3103 = vpop.permute.xlu0 %3102
        %v3105 = vsel %vm2421, %v2780, 0
        %v3108 = vsel %vm2812, %v3103, 0
        %3110 = vmatprep.subr.bf16.mxu0 0
        %3111 = vmatpush1.bf16.msra.mxu0 0
        %3112 = vmatprep.subr.bf16.mxu0 0
        %3113 = vmatpush1.bf16.msra.mxu0 0
        %3114 = vmatprep.subr.bf16.mxu0 0
        %3115 = vmatpush1.bf16.msra.mxu0 0
        %3116 = vmatprep.subr.bf16.mxu0 0
        %3117 = vmatpush1.bf16.msra.mxu0 0
        %3118 = vmatprep.subr.bf16.mxu0 0
        %3119 = vmatpush1.bf16.msra.mxu0 0
        %3120 = vmatprep.subr.bf16.mxu0 0
        %3121 = vmatpush1.bf16.msra.mxu0 0
        %3122 = vmatprep.subr.bf16.mxu0 0
        %3123 = vmatpush1.bf16.msra.mxu0 0
        %3124 = vmatprep.subr.bf16.mxu0 0
        %3125 = vmatpush1.bf16.msra.mxu0 %v3108
        %3126 = vmatprep.subr.bf16.mxu0 0
        %3127 = vmatpush2.bf16.msra.mxu0 0
        %3128 = vmatprep.subr.bf16.mxu0 0
        %3129 = vmatpush2.bf16.msra.mxu0 0
        %3130 = vmatprep.subr.bf16.mxu0 0
        %3131 = vmatpush2.bf16.msra.mxu0 0
        %3132 = vmatprep.subr.bf16.mxu0 0
        %3133 = vmatpush2.bf16.msra.mxu0 0
        %3134 = vmatprep.subr.bf16.mxu0 0
        %3135 = vmatpush2.bf16.msra.mxu0 0
        %3136 = vmatprep.subr.bf16.mxu0 0
        %3137 = vmatpush2.bf16.msra.mxu0 0
        %3138 = vmatprep.subr.bf16.mxu0 0
        %3139 = vmatpush2.bf16.msra.mxu0 0
        %3140 = vmatprep.subr.bf16.mxu0 0
        %3141 = vmatpush2.bf16.msra.mxu0 0
        %3142 = vmatprep.mubr.bf16.mxu0 0
        %3143 = vmatmul.mubr.bf16.gmra.mxu0 %v3105
        %v3144 = vpop.f32.mrf.mxu0
        %v3145 = vadd.f32 0.0, %v3144
        %v3146 = vpop.f32.mrf.mxu0
        %v3147 = vpop.f32.mrf.mxu0
        %v3148 = vpop.f32.mrf.mxu0
        %3149 = vdwg.mxu0
        %3151 = vrot.lane.b32.xlu0 %v891, 96
        %v3152 = vpop.permute.xlu0 %3151
        %v3154 = vsel %vm2421, %v2781, 0
        %v3157 = vsel %vm2812, %v3152, 0
        %3159 = vmatprep.subr.bf16.mxu0 0
        %3160 = vmatpush1.bf16.msra.mxu0 0
        %3161 = vmatprep.subr.bf16.mxu0 0
        %3162 = vmatpush1.bf16.msra.mxu0 0
        %3163 = vmatprep.subr.bf16.mxu0 0
        %3164 = vmatpush1.bf16.msra.mxu0 0
        %3165 = vmatprep.subr.bf16.mxu0 0
        %3166 = vmatpush1.bf16.msra.mxu0 0
        %3167 = vmatprep.subr.bf16.mxu0 0
        %3168 = vmatpush1.bf16.msra.mxu0 0
        %3169 = vmatprep.subr.bf16.mxu0 0
        %3170 = vmatpush1.bf16.msra.mxu0 0
        %3171 = vmatprep.subr.bf16.mxu0 0
        %3172 = vmatpush1.bf16.msra.mxu0 0
        %3173 = vmatprep.subr.bf16.mxu0 0
        %3174 = vmatpush1.bf16.msra.mxu0 %v3157
        %3175 = vmatprep.subr.bf16.mxu0 0
        %3176 = vmatpush2.bf16.msra.mxu0 0
        %3177 = vmatprep.subr.bf16.mxu0 0
        %3178 = vmatpush2.bf16.msra.mxu0 0
        %3179 = vmatprep.subr.bf16.mxu0 0
        %3180 = vmatpush2.bf16.msra.mxu0 0
        %3181 = vmatprep.subr.bf16.mxu0 0
        %3182 = vmatpush2.bf16.msra.mxu0 0
        %3183 = vmatprep.subr.bf16.mxu0 0
        %3184 = vmatpush2.bf16.msra.mxu0 0
        %3185 = vmatprep.subr.bf16.mxu0 0
        %3186 = vmatpush2.bf16.msra.mxu0 0
        %3187 = vmatprep.subr.bf16.mxu0 0
        %3188 = vmatpush2.bf16.msra.mxu0 0
        %3189 = vmatprep.subr.bf16.mxu0 0
        %3190 = vmatpush2.bf16.msra.mxu0 0
        %3191 = vmatprep.mubr.bf16.mxu0 0
        %3192 = vmatmul.mubr.bf16.gmra.mxu0 %v3154
        %v3193 = vpop.f32.mrf.mxu0
        %v3194 = vadd.f32 0.0, %v3193
        %v3195 = vpop.f32.mrf.mxu0
        %v3196 = vpop.f32.mrf.mxu0
        %v3197 = vpop.f32.mrf.mxu0
        %3198 = vdwg.mxu0
        %3200 = vrot.lane.b32.xlu0 %v892, 96
        %v3201 = vpop.permute.xlu0 %3200
        %v3203 = vsel %vm2421, %v2782, 0
        %v3206 = vsel %vm2812, %v3201, 0
        %3208 = vmatprep.subr.bf16.mxu0 0
        %3209 = vmatpush1.bf16.msra.mxu0 0
        %3210 = vmatprep.subr.bf16.mxu0 0
        %3211 = vmatpush1.bf16.msra.mxu0 0
        %3212 = vmatprep.subr.bf16.mxu0 0
        %3213 = vmatpush1.bf16.msra.mxu0 0
        %3214 = vmatprep.subr.bf16.mxu0 0
        %3215 = vmatpush1.bf16.msra.mxu0 0
        %3216 = vmatprep.subr.bf16.mxu0 0
        %3217 = vmatpush1.bf16.msra.mxu0 0
        %3218 = vmatprep.subr.bf16.mxu0 0
        %3219 = vmatpush1.bf16.msra.mxu0 0
        %3220 = vmatprep.subr.bf16.mxu0 0
        %3221 = vmatpush1.bf16.msra.mxu0 0
        %3222 = vmatprep.subr.bf16.mxu0 0
        %3223 = vmatpush1.bf16.msra.mxu0 %v3206
        %3224 = vmatprep.subr.bf16.mxu0 0
        %3225 = vmatpush2.bf16.msra.mxu0 0
        %3226 = vmatprep.subr.bf16.mxu0 0
        %3227 = vmatpush2.bf16.msra.mxu0 0
        %3228 = vmatprep.subr.bf16.mxu0 0
        %3229 = vmatpush2.bf16.msra.mxu0 0
        %3230 = vmatprep.subr.bf16.mxu0 0
        %3231 = vmatpush2.bf16.msra.mxu0 0
        %3232 = vmatprep.subr.bf16.mxu0 0
        %3233 = vmatpush2.bf16.msra.mxu0 0
        %3234 = vmatprep.subr.bf16.mxu0 0
        %3235 = vmatpush2.bf16.msra.mxu0 0
        %3236 = vmatprep.subr.bf16.mxu0 0
        %3237 = vmatpush2.bf16.msra.mxu0 0
        %3238 = vmatprep.subr.bf16.mxu0 0
        %3239 = vmatpush2.bf16.msra.mxu0 0
        %3240 = vmatprep.mubr.bf16.mxu0 0
        %3241 = vmatmul.mubr.bf16.gmra.mxu0 %v3203
        %v3242 = vpop.f32.mrf.mxu0
        %v3243 = vadd.f32 0.0, %v3242
        %v3244 = vpop.f32.mrf.mxu0
        %v3245 = vpop.f32.mrf.mxu0
        %v3246 = vpop.f32.mrf.mxu0
        %3247 = vdwg.mxu0
        %3249 = vrot.lane.b32.xlu0 %v893, 96
        %v3250 = vpop.permute.xlu0 %3249
        %v3252 = vsel %vm2421, %v2783, 0
        %v3255 = vsel %vm2812, %v3250, 0
        %3257 = vmatprep.subr.bf16.mxu0 0
        %3258 = vmatpush1.bf16.msra.mxu0 0
        %3259 = vmatprep.subr.bf16.mxu0 0
        %3260 = vmatpush1.bf16.msra.mxu0 0
        %3261 = vmatprep.subr.bf16.mxu0 0
        %3262 = vmatpush1.bf16.msra.mxu0 0
        %3263 = vmatprep.subr.bf16.mxu0 0
        %3264 = vmatpush1.bf16.msra.mxu0 0
        %3265 = vmatprep.subr.bf16.mxu0 0
        %3266 = vmatpush1.bf16.msra.mxu0 0
        %3267 = vmatprep.subr.bf16.mxu0 0
        %3268 = vmatpush1.bf16.msra.mxu0 0
        %3269 = vmatprep.subr.bf16.mxu0 0
        %3270 = vmatpush1.bf16.msra.mxu0 0
        %3271 = vmatprep.subr.bf16.mxu0 0
        %3272 = vmatpush1.bf16.msra.mxu0 %v3255
        %3273 = vmatprep.subr.bf16.mxu0 0
        %3274 = vmatpush2.bf16.msra.mxu0 0
        %3275 = vmatprep.subr.bf16.mxu0 0
        %3276 = vmatpush2.bf16.msra.mxu0 0
        %3277 = vmatprep.subr.bf16.mxu0 0
        %3278 = vmatpush2.bf16.msra.mxu0 0
        %3279 = vmatprep.subr.bf16.mxu0 0
        %3280 = vmatpush2.bf16.msra.mxu0 0
        %3281 = vmatprep.subr.bf16.mxu0 0
        %3282 = vmatpush2.bf16.msra.mxu0 0
        %3283 = vmatprep.subr.bf16.mxu0 0
        %3284 = vmatpush2.bf16.msra.mxu0 0
        %3285 = vmatprep.subr.bf16.mxu0 0
        %3286 = vmatpush2.bf16.msra.mxu0 0
        %3287 = vmatprep.subr.bf16.mxu0 0
        %3288 = vmatpush2.bf16.msra.mxu0 0
        %3289 = vmatprep.mubr.bf16.mxu0 0
        %3290 = vmatmul.mubr.bf16.gmra.mxu0 %v3252
        %v3291 = vpop.f32.mrf.mxu0
        %v3292 = vadd.f32 0.0, %v3291
        %v3293 = vpop.f32.mrf.mxu0
        %v3294 = vpop.f32.mrf.mxu0
        %v3295 = vpop.f32.mrf.mxu0
        %3296 = vdwg.mxu0
        %3298 = vrot.lane.b32.xlu0 %v894, 96
        %v3299 = vpop.permute.xlu0 %3298
        %v3301 = vsel %vm2421, %v2784, 0
        %v3304 = vsel %vm2812, %v3299, 0
        %3306 = vmatprep.subr.bf16.mxu0 0
        %3307 = vmatpush1.bf16.msra.mxu0 0
        %3308 = vmatprep.subr.bf16.mxu0 0
        %3309 = vmatpush1.bf16.msra.mxu0 0
        %3310 = vmatprep.subr.bf16.mxu0 0
        %3311 = vmatpush1.bf16.msra.mxu0 0
        %3312 = vmatprep.subr.bf16.mxu0 0
        %3313 = vmatpush1.bf16.msra.mxu0 0
        %3314 = vmatprep.subr.bf16.mxu0 0
        %3315 = vmatpush1.bf16.msra.mxu0 0
        %3316 = vmatprep.subr.bf16.mxu0 0
        %3317 = vmatpush1.bf16.msra.mxu0 0
        %3318 = vmatprep.subr.bf16.mxu0 0
        %3319 = vmatpush1.bf16.msra.mxu0 0
        %3320 = vmatprep.subr.bf16.mxu0 0
        %3321 = vmatpush1.bf16.msra.mxu0 %v3304
        %3322 = vmatprep.subr.bf16.mxu0 0
        %3323 = vmatpush2.bf16.msra.mxu0 0
        %3324 = vmatprep.subr.bf16.mxu0 0
        %3325 = vmatpush2.bf16.msra.mxu0 0
        %3326 = vmatprep.subr.bf16.mxu0 0
        %3327 = vmatpush2.bf16.msra.mxu0 0
        %3328 = vmatprep.subr.bf16.mxu0 0
        %3329 = vmatpush2.bf16.msra.mxu0 0
        %3330 = vmatprep.subr.bf16.mxu0 0
        %3331 = vmatpush2.bf16.msra.mxu0 0
        %3332 = vmatprep.subr.bf16.mxu0 0
        %3333 = vmatpush2.bf16.msra.mxu0 0
        %3334 = vmatprep.subr.bf16.mxu0 0
        %3335 = vmatpush2.bf16.msra.mxu0 0
        %3336 = vmatprep.subr.bf16.mxu0 0
        %3337 = vmatpush2.bf16.msra.mxu0 0
        %3338 = vmatprep.mubr.bf16.mxu0 0
        %3339 = vmatmul.mubr.bf16.gmra.mxu0 %v3301
        %v3340 = vpop.f32.mrf.mxu0
        %v3341 = vadd.f32 0.0, %v3340
        %v3342 = vpop.f32.mrf.mxu0
        %v3343 = vpop.f32.mrf.mxu0
        %v3344 = vpop.f32.mrf.mxu0
        %3345 = vdwg.mxu0
        %3347 = vrot.lane.b32.xlu0 %v895, 96
        %v3348 = vpop.permute.xlu0 %3347
        %v3350 = vsel %vm2421, %v2785, 0
        %v3353 = vsel %vm2812, %v3348, 0
        %3355 = vmatprep.subr.bf16.mxu0 0
        %3356 = vmatpush1.bf16.msra.mxu0 0
        %3357 = vmatprep.subr.bf16.mxu0 0
        %3358 = vmatpush1.bf16.msra.mxu0 0
        %3359 = vmatprep.subr.bf16.mxu0 0
        %3360 = vmatpush1.bf16.msra.mxu0 0
        %3361 = vmatprep.subr.bf16.mxu0 0
        %3362 = vmatpush1.bf16.msra.mxu0 0
        %3363 = vmatprep.subr.bf16.mxu0 0
        %3364 = vmatpush1.bf16.msra.mxu0 0
        %3365 = vmatprep.subr.bf16.mxu0 0
        %3366 = vmatpush1.bf16.msra.mxu0 0
        %3367 = vmatprep.subr.bf16.mxu0 0
        %3368 = vmatpush1.bf16.msra.mxu0 0
        %3369 = vmatprep.subr.bf16.mxu0 0
        %3370 = vmatpush1.bf16.msra.mxu0 %v3353
        %3371 = vmatprep.subr.bf16.mxu0 0
        %3372 = vmatpush2.bf16.msra.mxu0 0
        %3373 = vmatprep.subr.bf16.mxu0 0
        %3374 = vmatpush2.bf16.msra.mxu0 0
        %3375 = vmatprep.subr.bf16.mxu0 0
        %3376 = vmatpush2.bf16.msra.mxu0 0
        %3377 = vmatprep.subr.bf16.mxu0 0
        %3378 = vmatpush2.bf16.msra.mxu0 0
        %3379 = vmatprep.subr.bf16.mxu0 0
        %3380 = vmatpush2.bf16.msra.mxu0 0
        %3381 = vmatprep.subr.bf16.mxu0 0
        %3382 = vmatpush2.bf16.msra.mxu0 0
        %3383 = vmatprep.subr.bf16.mxu0 0
        %3384 = vmatpush2.bf16.msra.mxu0 0
        %3385 = vmatprep.subr.bf16.mxu0 0
        %3386 = vmatpush2.bf16.msra.mxu0 0
        %3387 = vmatprep.mubr.bf16.mxu0 0
        %3388 = vmatmul.mubr.bf16.gmra.mxu0 %v3350
        %v3389 = vpop.f32.mrf.mxu0
        %v3390 = vadd.f32 0.0, %v3389
        %v3391 = vpop.f32.mrf.mxu0
        %v3392 = vpop.f32.mrf.mxu0
        %v3393 = vpop.f32.mrf.mxu0
        %3394 = vdwg.mxu0
        %3396 = vrot.lane.b32.xlu0 %v896, 96
        %v3397 = vpop.permute.xlu0 %3396
        %v3399 = vsel %vm2421, %v2786, 0
        %v3402 = vsel %vm2812, %v3397, 0
        %3404 = vmatprep.subr.bf16.mxu0 0
        %3405 = vmatpush1.bf16.msra.mxu0 0
        %3406 = vmatprep.subr.bf16.mxu0 0
        %3407 = vmatpush1.bf16.msra.mxu0 0
        %3408 = vmatprep.subr.bf16.mxu0 0
        %3409 = vmatpush1.bf16.msra.mxu0 0
        %3410 = vmatprep.subr.bf16.mxu0 0
        %3411 = vmatpush1.bf16.msra.mxu0 0
        %3412 = vmatprep.subr.bf16.mxu0 0
        %3413 = vmatpush1.bf16.msra.mxu0 0
        %3414 = vmatprep.subr.bf16.mxu0 0
        %3415 = vmatpush1.bf16.msra.mxu0 0
        %3416 = vmatprep.subr.bf16.mxu0 0
        %3417 = vmatpush1.bf16.msra.mxu0 0
        %3418 = vmatprep.subr.bf16.mxu0 0
        %3419 = vmatpush1.bf16.msra.mxu0 %v3402
        %3420 = vmatprep.subr.bf16.mxu0 0
        %3421 = vmatpush2.bf16.msra.mxu0 0
        %3422 = vmatprep.subr.bf16.mxu0 0
        %3423 = vmatpush2.bf16.msra.mxu0 0
        %3424 = vmatprep.subr.bf16.mxu0 0
        %3425 = vmatpush2.bf16.msra.mxu0 0
        %3426 = vmatprep.subr.bf16.mxu0 0
        %3427 = vmatpush2.bf16.msra.mxu0 0
        %3428 = vmatprep.subr.bf16.mxu0 0
        %3429 = vmatpush2.bf16.msra.mxu0 0
        %3430 = vmatprep.subr.bf16.mxu0 0
        %3431 = vmatpush2.bf16.msra.mxu0 0
        %3432 = vmatprep.subr.bf16.mxu0 0
        %3433 = vmatpush2.bf16.msra.mxu0 0
        %3434 = vmatprep.subr.bf16.mxu0 0
        %3435 = vmatpush2.bf16.msra.mxu0 0
        %3436 = vmatprep.mubr.bf16.mxu0 0
        %3437 = vmatmul.mubr.bf16.gmra.mxu0 %v3399
        %v3438 = vpop.f32.mrf.mxu0
        %v3439 = vadd.f32 0.0, %v3438
        %v3440 = vpop.f32.mrf.mxu0
        %v3441 = vpop.f32.mrf.mxu0
        %v3442 = vpop.f32.mrf.mxu0
        %3443 = vdwg.mxu0
        %3445 = vrot.lane.b32.xlu0 %v897, 96
        %v3446 = vpop.permute.xlu0 %3445
        %v3448 = vsel %vm2421, %v2787, 0
        %v3451 = vsel %vm2812, %v3446, 0
        %3453 = vmatprep.subr.bf16.mxu0 0
        %3454 = vmatpush1.bf16.msra.mxu0 0
        %3455 = vmatprep.subr.bf16.mxu0 0
        %3456 = vmatpush1.bf16.msra.mxu0 0
        %3457 = vmatprep.subr.bf16.mxu0 0
        %3458 = vmatpush1.bf16.msra.mxu0 0
        %3459 = vmatprep.subr.bf16.mxu0 0
        %3460 = vmatpush1.bf16.msra.mxu0 0
        %3461 = vmatprep.subr.bf16.mxu0 0
        %3462 = vmatpush1.bf16.msra.mxu0 0
        %3463 = vmatprep.subr.bf16.mxu0 0
        %3464 = vmatpush1.bf16.msra.mxu0 0
        %3465 = vmatprep.subr.bf16.mxu0 0
        %3466 = vmatpush1.bf16.msra.mxu0 0
        %3467 = vmatprep.subr.bf16.mxu0 0
        %3468 = vmatpush1.bf16.msra.mxu0 %v3451
        %3469 = vmatprep.subr.bf16.mxu0 0
        %3470 = vmatpush2.bf16.msra.mxu0 0
        %3471 = vmatprep.subr.bf16.mxu0 0
        %3472 = vmatpush2.bf16.msra.mxu0 0
        %3473 = vmatprep.subr.bf16.mxu0 0
        %3474 = vmatpush2.bf16.msra.mxu0 0
        %3475 = vmatprep.subr.bf16.mxu0 0
        %3476 = vmatpush2.bf16.msra.mxu0 0
        %3477 = vmatprep.subr.bf16.mxu0 0
        %3478 = vmatpush2.bf16.msra.mxu0 0
        %3479 = vmatprep.subr.bf16.mxu0 0
        %3480 = vmatpush2.bf16.msra.mxu0 0
        %3481 = vmatprep.subr.bf16.mxu0 0
        %3482 = vmatpush2.bf16.msra.mxu0 0
        %3483 = vmatprep.subr.bf16.mxu0 0
        %3484 = vmatpush2.bf16.msra.mxu0 0
        %3485 = vmatprep.mubr.bf16.mxu0 0
        %3486 = vmatmul.mubr.bf16.gmra.mxu0 %v3448
        %v3487 = vpop.f32.mrf.mxu0
        %v3488 = vadd.f32 0.0, %v3487
        %v3489 = vpop.f32.mrf.mxu0
        %v3490 = vpop.f32.mrf.mxu0
        %v3491 = vpop.f32.mrf.mxu0
        %3492 = vdwg.mxu0
        %3494 = vrot.lane.b32.xlu0 %v898, 96
        %v3495 = vpop.permute.xlu0 %3494
        %v3497 = vsel %vm2421, %v2788, 0
        %v3500 = vsel %vm2812, %v3495, 0
        %3502 = vmatprep.subr.bf16.mxu0 0
        %3503 = vmatpush1.bf16.msra.mxu0 0
        %3504 = vmatprep.subr.bf16.mxu0 0
        %3505 = vmatpush1.bf16.msra.mxu0 0
        %3506 = vmatprep.subr.bf16.mxu0 0
        %3507 = vmatpush1.bf16.msra.mxu0 0
        %3508 = vmatprep.subr.bf16.mxu0 0
        %3509 = vmatpush1.bf16.msra.mxu0 0
        %3510 = vmatprep.subr.bf16.mxu0 0
        %3511 = vmatpush1.bf16.msra.mxu0 0
        %3512 = vmatprep.subr.bf16.mxu0 0
        %3513 = vmatpush1.bf16.msra.mxu0 0
        %3514 = vmatprep.subr.bf16.mxu0 0
        %3515 = vmatpush1.bf16.msra.mxu0 0
        %3516 = vmatprep.subr.bf16.mxu0 0
        %3517 = vmatpush1.bf16.msra.mxu0 %v3500
        %3518 = vmatprep.subr.bf16.mxu0 0
        %3519 = vmatpush2.bf16.msra.mxu0 0
        %3520 = vmatprep.subr.bf16.mxu0 0
        %3521 = vmatpush2.bf16.msra.mxu0 0
        %3522 = vmatprep.subr.bf16.mxu0 0
        %3523 = vmatpush2.bf16.msra.mxu0 0
        %3524 = vmatprep.subr.bf16.mxu0 0
        %3525 = vmatpush2.bf16.msra.mxu0 0
        %3526 = vmatprep.subr.bf16.mxu0 0
        %3527 = vmatpush2.bf16.msra.mxu0 0
        %3528 = vmatprep.subr.bf16.mxu0 0
        %3529 = vmatpush2.bf16.msra.mxu0 0
        %3530 = vmatprep.subr.bf16.mxu0 0
        %3531 = vmatpush2.bf16.msra.mxu0 0
        %3532 = vmatprep.subr.bf16.mxu0 0
        %3533 = vmatpush2.bf16.msra.mxu0 0
        %3534 = vmatprep.mubr.bf16.mxu0 0
        %3535 = vmatmul.mubr.bf16.gmra.mxu0 %v3497
        %v3536 = vpop.f32.mrf.mxu0
        %v3537 = vadd.f32 0.0, %v3536
        %v3538 = vpop.f32.mrf.mxu0
        %v3539 = vpop.f32.mrf.mxu0
        %v3540 = vpop.f32.mrf.mxu0
        %3541 = vdwg.mxu0
        %3543 = vrot.lane.b32.xlu0 %v899, 96
        %v3544 = vpop.permute.xlu0 %3543
        %v3546 = vsel %vm2421, %v2789, 0
        %v3549 = vsel %vm2812, %v3544, 0
        %3551 = vmatprep.subr.bf16.mxu0 0
        %3552 = vmatpush1.bf16.msra.mxu0 0
        %3553 = vmatprep.subr.bf16.mxu0 0
        %3554 = vmatpush1.bf16.msra.mxu0 0
        %3555 = vmatprep.subr.bf16.mxu0 0
        %3556 = vmatpush1.bf16.msra.mxu0 0
        %3557 = vmatprep.subr.bf16.mxu0 0
        %3558 = vmatpush1.bf16.msra.mxu0 0
        %3559 = vmatprep.subr.bf16.mxu0 0
        %3560 = vmatpush1.bf16.msra.mxu0 0
        %3561 = vmatprep.subr.bf16.mxu0 0
        %3562 = vmatpush1.bf16.msra.mxu0 0
        %3563 = vmatprep.subr.bf16.mxu0 0
        %3564 = vmatpush1.bf16.msra.mxu0 0
        %3565 = vmatprep.subr.bf16.mxu0 0
        %3566 = vmatpush1.bf16.msra.mxu0 %v3549
        %3567 = vmatprep.subr.bf16.mxu0 0
        %3568 = vmatpush2.bf16.msra.mxu0 0
        %3569 = vmatprep.subr.bf16.mxu0 0
        %3570 = vmatpush2.bf16.msra.mxu0 0
        %3571 = vmatprep.subr.bf16.mxu0 0
        %3572 = vmatpush2.bf16.msra.mxu0 0
        %3573 = vmatprep.subr.bf16.mxu0 0
        %3574 = vmatpush2.bf16.msra.mxu0 0
        %3575 = vmatprep.subr.bf16.mxu0 0
        %3576 = vmatpush2.bf16.msra.mxu0 0
        %3577 = vmatprep.subr.bf16.mxu0 0
        %3578 = vmatpush2.bf16.msra.mxu0 0
        %3579 = vmatprep.subr.bf16.mxu0 0
        %3580 = vmatpush2.bf16.msra.mxu0 0
        %3581 = vmatprep.subr.bf16.mxu0 0
        %3582 = vmatpush2.bf16.msra.mxu0 0
        %3583 = vmatprep.mubr.bf16.mxu0 0
        %3584 = vmatmul.mubr.bf16.gmra.mxu0 %v3546
        %v3585 = vpop.f32.mrf.mxu0
        %v3586 = vadd.f32 0.0, %v3585
        %v3587 = vpop.f32.mrf.mxu0
        %v3588 = vpop.f32.mrf.mxu0
        %v3589 = vpop.f32.mrf.mxu0
        %3590 = vdwg.mxu0
        %3592 = vrot.lane.b32.xlu0 %v900, 96
        %v3593 = vpop.permute.xlu0 %3592
        %v3595 = vsel %vm2421, %v2790, 0
        %v3598 = vsel %vm2812, %v3593, 0
        %3600 = vmatprep.subr.bf16.mxu0 0
        %3601 = vmatpush1.bf16.msra.mxu0 0
        %3602 = vmatprep.subr.bf16.mxu0 0
        %3603 = vmatpush1.bf16.msra.mxu0 0
        %3604 = vmatprep.subr.bf16.mxu0 0
        %3605 = vmatpush1.bf16.msra.mxu0 0
        %3606 = vmatprep.subr.bf16.mxu0 0
        %3607 = vmatpush1.bf16.msra.mxu0 0
        %3608 = vmatprep.subr.bf16.mxu0 0
        %3609 = vmatpush1.bf16.msra.mxu0 0
        %3610 = vmatprep.subr.bf16.mxu0 0
        %3611 = vmatpush1.bf16.msra.mxu0 0
        %3612 = vmatprep.subr.bf16.mxu0 0
        %3613 = vmatpush1.bf16.msra.mxu0 0
        %3614 = vmatprep.subr.bf16.mxu0 0
        %3615 = vmatpush1.bf16.msra.mxu0 %v3598
        %3616 = vmatprep.subr.bf16.mxu0 0
        %3617 = vmatpush2.bf16.msra.mxu0 0
        %3618 = vmatprep.subr.bf16.mxu0 0
        %3619 = vmatpush2.bf16.msra.mxu0 0
        %3620 = vmatprep.subr.bf16.mxu0 0
        %3621 = vmatpush2.bf16.msra.mxu0 0
        %3622 = vmatprep.subr.bf16.mxu0 0
        %3623 = vmatpush2.bf16.msra.mxu0 0
        %3624 = vmatprep.subr.bf16.mxu0 0
        %3625 = vmatpush2.bf16.msra.mxu0 0
        %3626 = vmatprep.subr.bf16.mxu0 0
        %3627 = vmatpush2.bf16.msra.mxu0 0
        %3628 = vmatprep.subr.bf16.mxu0 0
        %3629 = vmatpush2.bf16.msra.mxu0 0
        %3630 = vmatprep.subr.bf16.mxu0 0
        %3631 = vmatpush2.bf16.msra.mxu0 0
        %3632 = vmatprep.mubr.bf16.mxu0 0
        %3633 = vmatmul.mubr.bf16.gmra.mxu0 %v3595
        %v3634 = vpop.f32.mrf.mxu0
        %v3635 = vadd.f32 0.0, %v3634
        %v3636 = vpop.f32.mrf.mxu0
        %v3637 = vpop.f32.mrf.mxu0
        %v3638 = vpop.f32.mrf.mxu0
        %3639 = vdwg.mxu0
        %3641 = vrot.lane.b32.xlu0 %v901, 96
        %v3642 = vpop.permute.xlu0 %3641
        %v3644 = vsel %vm2421, %v2791, 0
        %v3647 = vsel %vm2812, %v3642, 0
        %3649 = vmatprep.subr.bf16.mxu0 0
        %3650 = vmatpush1.bf16.msra.mxu0 0
        %3651 = vmatprep.subr.bf16.mxu0 0
        %3652 = vmatpush1.bf16.msra.mxu0 0
        %3653 = vmatprep.subr.bf16.mxu0 0
        %3654 = vmatpush1.bf16.msra.mxu0 0
        %3655 = vmatprep.subr.bf16.mxu0 0
        %3656 = vmatpush1.bf16.msra.mxu0 0
        %3657 = vmatprep.subr.bf16.mxu0 0
        %3658 = vmatpush1.bf16.msra.mxu0 0
        %3659 = vmatprep.subr.bf16.mxu0 0
        %3660 = vmatpush1.bf16.msra.mxu0 0
        %3661 = vmatprep.subr.bf16.mxu0 0
        %3662 = vmatpush1.bf16.msra.mxu0 0
        %3663 = vmatprep.subr.bf16.mxu0 0
        %3664 = vmatpush1.bf16.msra.mxu0 %v3647
        %3665 = vmatprep.subr.bf16.mxu0 0
        %3666 = vmatpush2.bf16.msra.mxu0 0
        %3667 = vmatprep.subr.bf16.mxu0 0
        %3668 = vmatpush2.bf16.msra.mxu0 0
        %3669 = vmatprep.subr.bf16.mxu0 0
        %3670 = vmatpush2.bf16.msra.mxu0 0
        %3671 = vmatprep.subr.bf16.mxu0 0
        %3672 = vmatpush2.bf16.msra.mxu0 0
        %3673 = vmatprep.subr.bf16.mxu0 0
        %3674 = vmatpush2.bf16.msra.mxu0 0
        %3675 = vmatprep.subr.bf16.mxu0 0
        %3676 = vmatpush2.bf16.msra.mxu0 0
        %3677 = vmatprep.subr.bf16.mxu0 0
        %3678 = vmatpush2.bf16.msra.mxu0 0
        %3679 = vmatprep.subr.bf16.mxu0 0
        %3680 = vmatpush2.bf16.msra.mxu0 0
        %3681 = vmatprep.mubr.bf16.mxu0 0
        %3682 = vmatmul.mubr.bf16.gmra.mxu0 %v3644
        %v3683 = vpop.f32.mrf.mxu0
        %v3684 = vadd.f32 0.0, %v3683
        %v3685 = vpop.f32.mrf.mxu0
        %v3686 = vpop.f32.mrf.mxu0
        %v3687 = vpop.f32.mrf.mxu0
        %3688 = vdwg.mxu0
        %3690 = vrot.lane.b32.xlu0 %v902, 96
        %v3691 = vpop.permute.xlu0 %3690
        %v3693 = vsel %vm2421, %v2792, 0
        %v3696 = vsel %vm2812, %v3691, 0
        %3698 = vmatprep.subr.bf16.mxu0 0
        %3699 = vmatpush1.bf16.msra.mxu0 0
        %3700 = vmatprep.subr.bf16.mxu0 0
        %3701 = vmatpush1.bf16.msra.mxu0 0
        %3702 = vmatprep.subr.bf16.mxu0 0
        %3703 = vmatpush1.bf16.msra.mxu0 0
        %3704 = vmatprep.subr.bf16.mxu0 0
        %3705 = vmatpush1.bf16.msra.mxu0 0
        %3706 = vmatprep.subr.bf16.mxu0 0
        %3707 = vmatpush1.bf16.msra.mxu0 0
        %3708 = vmatprep.subr.bf16.mxu0 0
        %3709 = vmatpush1.bf16.msra.mxu0 0
        %3710 = vmatprep.subr.bf16.mxu0 0
        %3711 = vmatpush1.bf16.msra.mxu0 0
        %3712 = vmatprep.subr.bf16.mxu0 0
        %3713 = vmatpush1.bf16.msra.mxu0 %v3696
        %3714 = vmatprep.subr.bf16.mxu0 0
        %3715 = vmatpush2.bf16.msra.mxu0 0
        %3716 = vmatprep.subr.bf16.mxu0 0
        %3717 = vmatpush2.bf16.msra.mxu0 0
        %3718 = vmatprep.subr.bf16.mxu0 0
        %3719 = vmatpush2.bf16.msra.mxu0 0
        %3720 = vmatprep.subr.bf16.mxu0 0
        %3721 = vmatpush2.bf16.msra.mxu0 0
        %3722 = vmatprep.subr.bf16.mxu0 0
        %3723 = vmatpush2.bf16.msra.mxu0 0
        %3724 = vmatprep.subr.bf16.mxu0 0
        %3725 = vmatpush2.bf16.msra.mxu0 0
        %3726 = vmatprep.subr.bf16.mxu0 0
        %3727 = vmatpush2.bf16.msra.mxu0 0
        %3728 = vmatprep.subr.bf16.mxu0 0
        %3729 = vmatpush2.bf16.msra.mxu0 0
        %3730 = vmatprep.mubr.bf16.mxu0 0
        %3731 = vmatmul.mubr.bf16.gmra.mxu0 %v3693
        %v3732 = vpop.f32.mrf.mxu0
        %v3733 = vadd.f32 0.0, %v3732
        %v3734 = vpop.f32.mrf.mxu0
        %v3735 = vpop.f32.mrf.mxu0
        %v3736 = vpop.f32.mrf.mxu0
        %3737 = vdwg.mxu0
        %3739 = vrot.lane.b32.xlu0 %v903, 96
        %v3740 = vpop.permute.xlu0 %3739
        %v3742 = vsel %vm2421, %v2793, 0
        %v3745 = vsel %vm2812, %v3740, 0
        %3747 = vmatprep.subr.bf16.mxu0 0
        %3748 = vmatpush1.bf16.msra.mxu0 0
        %3749 = vmatprep.subr.bf16.mxu0 0
        %3750 = vmatpush1.bf16.msra.mxu0 0
        %3751 = vmatprep.subr.bf16.mxu0 0
        %3752 = vmatpush1.bf16.msra.mxu0 0
        %3753 = vmatprep.subr.bf16.mxu0 0
        %3754 = vmatpush1.bf16.msra.mxu0 0
        %3755 = vmatprep.subr.bf16.mxu0 0
        %3756 = vmatpush1.bf16.msra.mxu0 0
        %3757 = vmatprep.subr.bf16.mxu0 0
        %3758 = vmatpush1.bf16.msra.mxu0 0
        %3759 = vmatprep.subr.bf16.mxu0 0
        %3760 = vmatpush1.bf16.msra.mxu0 0
        %3761 = vmatprep.subr.bf16.mxu0 0
        %3762 = vmatpush1.bf16.msra.mxu0 %v3745
        %3763 = vmatprep.subr.bf16.mxu0 0
        %3764 = vmatpush2.bf16.msra.mxu0 0
        %3765 = vmatprep.subr.bf16.mxu0 0
        %3766 = vmatpush2.bf16.msra.mxu0 0
        %3767 = vmatprep.subr.bf16.mxu0 0
        %3768 = vmatpush2.bf16.msra.mxu0 0
        %3769 = vmatprep.subr.bf16.mxu0 0
        %3770 = vmatpush2.bf16.msra.mxu0 0
        %3771 = vmatprep.subr.bf16.mxu0 0
        %3772 = vmatpush2.bf16.msra.mxu0 0
        %3773 = vmatprep.subr.bf16.mxu0 0
        %3774 = vmatpush2.bf16.msra.mxu0 0
        %3775 = vmatprep.subr.bf16.mxu0 0
        %3776 = vmatpush2.bf16.msra.mxu0 0
        %3777 = vmatprep.subr.bf16.mxu0 0
        %3778 = vmatpush2.bf16.msra.mxu0 0
        %3779 = vmatprep.mubr.bf16.mxu0 0
        %3780 = vmatmul.mubr.bf16.gmra.mxu0 %v3742
        %v3781 = vpop.f32.mrf.mxu0
        %v3782 = vadd.f32 0.0, %v3781
        %v3783 = vpop.f32.mrf.mxu0
        %v3784 = vpop.f32.mrf.mxu0
        %v3785 = vpop.f32.mrf.mxu0
        %3786 = vdwg.mxu0
        %3788 = vrot.lane.b32.xlu0 %v904, 96
        %v3789 = vpop.permute.xlu0 %3788
        %v3791 = vsel %vm2421, %v2794, 0
        %v3794 = vsel %vm2812, %v3789, 0
        %3796 = vmatprep.subr.bf16.mxu0 0
        %3797 = vmatpush1.bf16.msra.mxu0 0
        %3798 = vmatprep.subr.bf16.mxu0 0
        %3799 = vmatpush1.bf16.msra.mxu0 0
        %3800 = vmatprep.subr.bf16.mxu0 0
        %3801 = vmatpush1.bf16.msra.mxu0 0
        %3802 = vmatprep.subr.bf16.mxu0 0
        %3803 = vmatpush1.bf16.msra.mxu0 0
        %3804 = vmatprep.subr.bf16.mxu0 0
        %3805 = vmatpush1.bf16.msra.mxu0 0
        %3806 = vmatprep.subr.bf16.mxu0 0
        %3807 = vmatpush1.bf16.msra.mxu0 0
        %3808 = vmatprep.subr.bf16.mxu0 0
        %3809 = vmatpush1.bf16.msra.mxu0 0
        %3810 = vmatprep.subr.bf16.mxu0 0
        %3811 = vmatpush1.bf16.msra.mxu0 %v3794
        %3812 = vmatprep.subr.bf16.mxu0 0
        %3813 = vmatpush2.bf16.msra.mxu0 0
        %3814 = vmatprep.subr.bf16.mxu0 0
        %3815 = vmatpush2.bf16.msra.mxu0 0
        %3816 = vmatprep.subr.bf16.mxu0 0
        %3817 = vmatpush2.bf16.msra.mxu0 0
        %3818 = vmatprep.subr.bf16.mxu0 0
        %3819 = vmatpush2.bf16.msra.mxu0 0
        %3820 = vmatprep.subr.bf16.mxu0 0
        %3821 = vmatpush2.bf16.msra.mxu0 0
        %3822 = vmatprep.subr.bf16.mxu0 0
        %3823 = vmatpush2.bf16.msra.mxu0 0
        %3824 = vmatprep.subr.bf16.mxu0 0
        %3825 = vmatpush2.bf16.msra.mxu0 0
        %3826 = vmatprep.subr.bf16.mxu0 0
        %3827 = vmatpush2.bf16.msra.mxu0 0
        %3828 = vmatprep.mubr.bf16.mxu0 0
        %3829 = vmatmul.mubr.bf16.gmra.mxu0 %v3791
        %v3830 = vpop.f32.mrf.mxu0
        %v3831 = vadd.f32 0.0, %v3830
        %v3832 = vpop.f32.mrf.mxu0
        %v3833 = vpop.f32.mrf.mxu0
        %v3834 = vpop.f32.mrf.mxu0
        %3835 = vdwg.mxu0
        %3837 = vrot.lane.b32.xlu0 %v905, 96
        %v3838 = vpop.permute.xlu0 %3837
        %v3840 = vsel %vm2421, %v2795, 0
        %v3843 = vsel %vm2812, %v3838, 0
        %3845 = vmatprep.subr.bf16.mxu0 0
        %3846 = vmatpush1.bf16.msra.mxu0 0
        %3847 = vmatprep.subr.bf16.mxu0 0
        %3848 = vmatpush1.bf16.msra.mxu0 0
        %3849 = vmatprep.subr.bf16.mxu0 0
        %3850 = vmatpush1.bf16.msra.mxu0 0
        %3851 = vmatprep.subr.bf16.mxu0 0
        %3852 = vmatpush1.bf16.msra.mxu0 0
        %3853 = vmatprep.subr.bf16.mxu0 0
        %3854 = vmatpush1.bf16.msra.mxu0 0
        %3855 = vmatprep.subr.bf16.mxu0 0
        %3856 = vmatpush1.bf16.msra.mxu0 0
        %3857 = vmatprep.subr.bf16.mxu0 0
        %3858 = vmatpush1.bf16.msra.mxu0 0
        %3859 = vmatprep.subr.bf16.mxu0 0
        %3860 = vmatpush1.bf16.msra.mxu0 %v3843
        %3861 = vmatprep.subr.bf16.mxu0 0
        %3862 = vmatpush2.bf16.msra.mxu0 0
        %3863 = vmatprep.subr.bf16.mxu0 0
        %3864 = vmatpush2.bf16.msra.mxu0 0
        %3865 = vmatprep.subr.bf16.mxu0 0
        %3866 = vmatpush2.bf16.msra.mxu0 0
        %3867 = vmatprep.subr.bf16.mxu0 0
        %3868 = vmatpush2.bf16.msra.mxu0 0
        %3869 = vmatprep.subr.bf16.mxu0 0
        %3870 = vmatpush2.bf16.msra.mxu0 0
        %3871 = vmatprep.subr.bf16.mxu0 0
        %3872 = vmatpush2.bf16.msra.mxu0 0
        %3873 = vmatprep.subr.bf16.mxu0 0
        %3874 = vmatpush2.bf16.msra.mxu0 0
        %3875 = vmatprep.subr.bf16.mxu0 0
        %3876 = vmatpush2.bf16.msra.mxu0 0
        %3877 = vmatprep.mubr.bf16.mxu0 0
        %3878 = vmatmul.mubr.bf16.gmra.mxu0 %v3840
        %v3879 = vpop.f32.mrf.mxu0
        %v3880 = vadd.f32 0.0, %v3879
        %v3881 = vpop.f32.mrf.mxu0
        %v3882 = vpop.f32.mrf.mxu0
        %v3883 = vpop.f32.mrf.mxu0
        %3884 = vdwg.mxu0
        %3886 = vrot.lane.b32.xlu0 %v906, 96
        %v3887 = vpop.permute.xlu0 %3886
        %v3889 = vsel %vm2421, %v2796, 0
        %v3892 = vsel %vm2812, %v3887, 0
        %3894 = vmatprep.subr.bf16.mxu0 0
        %3895 = vmatpush1.bf16.msra.mxu0 0
        %3896 = vmatprep.subr.bf16.mxu0 0
        %3897 = vmatpush1.bf16.msra.mxu0 0
        %3898 = vmatprep.subr.bf16.mxu0 0
        %3899 = vmatpush1.bf16.msra.mxu0 0
        %3900 = vmatprep.subr.bf16.mxu0 0
        %3901 = vmatpush1.bf16.msra.mxu0 0
        %3902 = vmatprep.subr.bf16.mxu0 0
        %3903 = vmatpush1.bf16.msra.mxu0 0
        %3904 = vmatprep.subr.bf16.mxu0 0
        %3905 = vmatpush1.bf16.msra.mxu0 0
        %3906 = vmatprep.subr.bf16.mxu0 0
        %3907 = vmatpush1.bf16.msra.mxu0 0
        %3908 = vmatprep.subr.bf16.mxu0 0
        %3909 = vmatpush1.bf16.msra.mxu0 %v3892
        %3910 = vmatprep.subr.bf16.mxu0 0
        %3911 = vmatpush2.bf16.msra.mxu0 0
        %3912 = vmatprep.subr.bf16.mxu0 0
        %3913 = vmatpush2.bf16.msra.mxu0 0
        %3914 = vmatprep.subr.bf16.mxu0 0
        %3915 = vmatpush2.bf16.msra.mxu0 0
        %3916 = vmatprep.subr.bf16.mxu0 0
        %3917 = vmatpush2.bf16.msra.mxu0 0
        %3918 = vmatprep.subr.bf16.mxu0 0
        %3919 = vmatpush2.bf16.msra.mxu0 0
        %3920 = vmatprep.subr.bf16.mxu0 0
        %3921 = vmatpush2.bf16.msra.mxu0 0
        %3922 = vmatprep.subr.bf16.mxu0 0
        %3923 = vmatpush2.bf16.msra.mxu0 0
        %3924 = vmatprep.subr.bf16.mxu0 0
        %3925 = vmatpush2.bf16.msra.mxu0 0
        %3926 = vmatprep.mubr.bf16.mxu0 0
        %3927 = vmatmul.mubr.bf16.gmra.mxu0 %v3889
        %v3928 = vpop.f32.mrf.mxu0
        %v3929 = vadd.f32 0.0, %v3928
        %v3930 = vpop.f32.mrf.mxu0
        %v3931 = vpop.f32.mrf.mxu0
        %v3932 = vpop.f32.mrf.mxu0
        %3933 = vdwg.mxu0
        %3935 = vrot.lane.b32.xlu0 %v907, 96
        %v3936 = vpop.permute.xlu0 %3935
        %v3938 = vsel %vm2421, %v2797, 0
        %v3941 = vsel %vm2812, %v3936, 0
        %3943 = vmatprep.subr.bf16.mxu0 0
        %3944 = vmatpush1.bf16.msra.mxu0 0
        %3945 = vmatprep.subr.bf16.mxu0 0
        %3946 = vmatpush1.bf16.msra.mxu0 0
        %3947 = vmatprep.subr.bf16.mxu0 0
        %3948 = vmatpush1.bf16.msra.mxu0 0
        %3949 = vmatprep.subr.bf16.mxu0 0
        %3950 = vmatpush1.bf16.msra.mxu0 0
        %3951 = vmatprep.subr.bf16.mxu0 0
        %3952 = vmatpush1.bf16.msra.mxu0 0
        %3953 = vmatprep.subr.bf16.mxu0 0
        %3954 = vmatpush1.bf16.msra.mxu0 0
        %3955 = vmatprep.subr.bf16.mxu0 0
        %3956 = vmatpush1.bf16.msra.mxu0 0
        %3957 = vmatprep.subr.bf16.mxu0 0
        %3958 = vmatpush1.bf16.msra.mxu0 %v3941
        %3959 = vmatprep.subr.bf16.mxu0 0
        %3960 = vmatpush2.bf16.msra.mxu0 0
        %3961 = vmatprep.subr.bf16.mxu0 0
        %3962 = vmatpush2.bf16.msra.mxu0 0
        %3963 = vmatprep.subr.bf16.mxu0 0
        %3964 = vmatpush2.bf16.msra.mxu0 0
        %3965 = vmatprep.subr.bf16.mxu0 0
        %3966 = vmatpush2.bf16.msra.mxu0 0
        %3967 = vmatprep.subr.bf16.mxu0 0
        %3968 = vmatpush2.bf16.msra.mxu0 0
        %3969 = vmatprep.subr.bf16.mxu0 0
        %3970 = vmatpush2.bf16.msra.mxu0 0
        %3971 = vmatprep.subr.bf16.mxu0 0
        %3972 = vmatpush2.bf16.msra.mxu0 0
        %3973 = vmatprep.subr.bf16.mxu0 0
        %3974 = vmatpush2.bf16.msra.mxu0 0
        %3975 = vmatprep.mubr.bf16.mxu0 0
        %3976 = vmatmul.mubr.bf16.gmra.mxu0 %v3938
        %v3977 = vpop.f32.mrf.mxu0
        %v3978 = vadd.f32 0.0, %v3977
        %v3979 = vpop.f32.mrf.mxu0
        %v3980 = vpop.f32.mrf.mxu0
        %v3981 = vpop.f32.mrf.mxu0
        %3982 = vdwg.mxu0
        %3984 = vrot.lane.b32.xlu0 %v908, 96
        %v3985 = vpop.permute.xlu0 %3984
        %v3987 = vsel %vm2421, %v2798, 0
        %v3990 = vsel %vm2812, %v3985, 0
        %3992 = vmatprep.subr.bf16.mxu0 0
        %3993 = vmatpush1.bf16.msra.mxu0 0
        %3994 = vmatprep.subr.bf16.mxu0 0
        %3995 = vmatpush1.bf16.msra.mxu0 0
        %3996 = vmatprep.subr.bf16.mxu0 0
        %3997 = vmatpush1.bf16.msra.mxu0 0
        %3998 = vmatprep.subr.bf16.mxu0 0
        %3999 = vmatpush1.bf16.msra.mxu0 0
        %4000 = vmatprep.subr.bf16.mxu0 0
        %4001 = vmatpush1.bf16.msra.mxu0 0
        %4002 = vmatprep.subr.bf16.mxu0 0
        %4003 = vmatpush1.bf16.msra.mxu0 0
        %4004 = vmatprep.subr.bf16.mxu0 0
        %4005 = vmatpush1.bf16.msra.mxu0 0
        %4006 = vmatprep.subr.bf16.mxu0 0
        %4007 = vmatpush1.bf16.msra.mxu0 %v3990
        %4008 = vmatprep.subr.bf16.mxu0 0
        %4009 = vmatpush2.bf16.msra.mxu0 0
        %4010 = vmatprep.subr.bf16.mxu0 0
        %4011 = vmatpush2.bf16.msra.mxu0 0
        %4012 = vmatprep.subr.bf16.mxu0 0
        %4013 = vmatpush2.bf16.msra.mxu0 0
        %4014 = vmatprep.subr.bf16.mxu0 0
        %4015 = vmatpush2.bf16.msra.mxu0 0
        %4016 = vmatprep.subr.bf16.mxu0 0
        %4017 = vmatpush2.bf16.msra.mxu0 0
        %4018 = vmatprep.subr.bf16.mxu0 0
        %4019 = vmatpush2.bf16.msra.mxu0 0
        %4020 = vmatprep.subr.bf16.mxu0 0
        %4021 = vmatpush2.bf16.msra.mxu0 0
        %4022 = vmatprep.subr.bf16.mxu0 0
        %4023 = vmatpush2.bf16.msra.mxu0 0
        %4024 = vmatprep.mubr.bf16.mxu0 0
        %4025 = vmatmul.mubr.bf16.gmra.mxu0 %v3987
        %v4026 = vpop.f32.mrf.mxu0
        %v4027 = vadd.f32 0.0, %v4026
        %v4028 = vpop.f32.mrf.mxu0
        %v4029 = vpop.f32.mrf.mxu0
        %v4030 = vpop.f32.mrf.mxu0
        %4031 = vdwg.mxu0
        %4033 = vrot.lane.b32.xlu0 %v909, 96
        %v4034 = vpop.permute.xlu0 %4033
        %v4036 = vsel %vm2421, %v2799, 0
        %v4039 = vsel %vm2812, %v4034, 0
        %4041 = vmatprep.subr.bf16.mxu0 0
        %4042 = vmatpush1.bf16.msra.mxu0 0
        %4043 = vmatprep.subr.bf16.mxu0 0
        %4044 = vmatpush1.bf16.msra.mxu0 0
        %4045 = vmatprep.subr.bf16.mxu0 0
        %4046 = vmatpush1.bf16.msra.mxu0 0
        %4047 = vmatprep.subr.bf16.mxu0 0
        %4048 = vmatpush1.bf16.msra.mxu0 0
        %4049 = vmatprep.subr.bf16.mxu0 0
        %4050 = vmatpush1.bf16.msra.mxu0 0
        %4051 = vmatprep.subr.bf16.mxu0 0
        %4052 = vmatpush1.bf16.msra.mxu0 0
        %4053 = vmatprep.subr.bf16.mxu0 0
        %4054 = vmatpush1.bf16.msra.mxu0 0
        %4055 = vmatprep.subr.bf16.mxu0 0
        %4056 = vmatpush1.bf16.msra.mxu0 %v4039
        %4057 = vmatprep.subr.bf16.mxu0 0
        %4058 = vmatpush2.bf16.msra.mxu0 0
        %4059 = vmatprep.subr.bf16.mxu0 0
        %4060 = vmatpush2.bf16.msra.mxu0 0
        %4061 = vmatprep.subr.bf16.mxu0 0
        %4062 = vmatpush2.bf16.msra.mxu0 0
        %4063 = vmatprep.subr.bf16.mxu0 0
        %4064 = vmatpush2.bf16.msra.mxu0 0
        %4065 = vmatprep.subr.bf16.mxu0 0
        %4066 = vmatpush2.bf16.msra.mxu0 0
        %4067 = vmatprep.subr.bf16.mxu0 0
        %4068 = vmatpush2.bf16.msra.mxu0 0
        %4069 = vmatprep.subr.bf16.mxu0 0
        %4070 = vmatpush2.bf16.msra.mxu0 0
        %4071 = vmatprep.subr.bf16.mxu0 0
        %4072 = vmatpush2.bf16.msra.mxu0 0
        %4073 = vmatprep.mubr.bf16.mxu0 0
        %4074 = vmatmul.mubr.bf16.gmra.mxu0 %v4036
        %v4075 = vpop.f32.mrf.mxu0
        %v4076 = vadd.f32 0.0, %v4075
        %v4077 = vpop.f32.mrf.mxu0
        %v4078 = vpop.f32.mrf.mxu0
        %v4079 = vpop.f32.mrf.mxu0
        %4080 = vdwg.mxu0
        %4082 = vrot.lane.b32.xlu0 %v910, 96
        %v4083 = vpop.permute.xlu0 %4082
        %v4085 = vsel %vm2421, %v2800, 0
        %v4088 = vsel %vm2812, %v4083, 0
        %4090 = vmatprep.subr.bf16.mxu0 0
        %4091 = vmatpush1.bf16.msra.mxu0 0
        %4092 = vmatprep.subr.bf16.mxu0 0
        %4093 = vmatpush1.bf16.msra.mxu0 0
        %4094 = vmatprep.subr.bf16.mxu0 0
        %4095 = vmatpush1.bf16.msra.mxu0 0
        %4096 = vmatprep.subr.bf16.mxu0 0
        %4097 = vmatpush1.bf16.msra.mxu0 0
        %4098 = vmatprep.subr.bf16.mxu0 0
        %4099 = vmatpush1.bf16.msra.mxu0 0
        %4100 = vmatprep.subr.bf16.mxu0 0
        %4101 = vmatpush1.bf16.msra.mxu0 0
        %4102 = vmatprep.subr.bf16.mxu0 0
        %4103 = vmatpush1.bf16.msra.mxu0 0
        %4104 = vmatprep.subr.bf16.mxu0 0
        %4105 = vmatpush1.bf16.msra.mxu0 %v4088
        %4106 = vmatprep.subr.bf16.mxu0 0
        %4107 = vmatpush2.bf16.msra.mxu0 0
        %4108 = vmatprep.subr.bf16.mxu0 0
        %4109 = vmatpush2.bf16.msra.mxu0 0
        %4110 = vmatprep.subr.bf16.mxu0 0
        %4111 = vmatpush2.bf16.msra.mxu0 0
        %4112 = vmatprep.subr.bf16.mxu0 0
        %4113 = vmatpush2.bf16.msra.mxu0 0
        %4114 = vmatprep.subr.bf16.mxu0 0
        %4115 = vmatpush2.bf16.msra.mxu0 0
        %4116 = vmatprep.subr.bf16.mxu0 0
        %4117 = vmatpush2.bf16.msra.mxu0 0
        %4118 = vmatprep.subr.bf16.mxu0 0
        %4119 = vmatpush2.bf16.msra.mxu0 0
        %4120 = vmatprep.subr.bf16.mxu0 0
        %4121 = vmatpush2.bf16.msra.mxu0 0
        %4122 = vmatprep.mubr.bf16.mxu0 0
        %4123 = vmatmul.mubr.bf16.gmra.mxu0 %v4085
        %v4124 = vpop.f32.mrf.mxu0
        %v4125 = vadd.f32 0.0, %v4124
        %v4126 = vpop.f32.mrf.mxu0
        %v4127 = vpop.f32.mrf.mxu0
        %v4128 = vpop.f32.mrf.mxu0
        %4129 = vdwg.mxu0
        %4131 = vrot.lane.b32.xlu0 %v911, 96
        %v4132 = vpop.permute.xlu0 %4131
        %v4134 = vsel %vm2421, %v2801, 0
        %v4137 = vsel %vm2812, %v4132, 0
        %4139 = vmatprep.subr.bf16.mxu0 0
        %4140 = vmatpush1.bf16.msra.mxu0 0
        %4141 = vmatprep.subr.bf16.mxu0 0
        %4142 = vmatpush1.bf16.msra.mxu0 0
        %4143 = vmatprep.subr.bf16.mxu0 0
        %4144 = vmatpush1.bf16.msra.mxu0 0
        %4145 = vmatprep.subr.bf16.mxu0 0
        %4146 = vmatpush1.bf16.msra.mxu0 0
        %4147 = vmatprep.subr.bf16.mxu0 0
        %4148 = vmatpush1.bf16.msra.mxu0 0
        %4149 = vmatprep.subr.bf16.mxu0 0
        %4150 = vmatpush1.bf16.msra.mxu0 0
        %4151 = vmatprep.subr.bf16.mxu0 0
        %4152 = vmatpush1.bf16.msra.mxu0 0
        %4153 = vmatprep.subr.bf16.mxu0 0
        %4154 = vmatpush1.bf16.msra.mxu0 %v4137
        %4155 = vmatprep.subr.bf16.mxu0 0
        %4156 = vmatpush2.bf16.msra.mxu0 0
        %4157 = vmatprep.subr.bf16.mxu0 0
        %4158 = vmatpush2.bf16.msra.mxu0 0
        %4159 = vmatprep.subr.bf16.mxu0 0
        %4160 = vmatpush2.bf16.msra.mxu0 0
        %4161 = vmatprep.subr.bf16.mxu0 0
        %4162 = vmatpush2.bf16.msra.mxu0 0
        %4163 = vmatprep.subr.bf16.mxu0 0
        %4164 = vmatpush2.bf16.msra.mxu0 0
        %4165 = vmatprep.subr.bf16.mxu0 0
        %4166 = vmatpush2.bf16.msra.mxu0 0
        %4167 = vmatprep.subr.bf16.mxu0 0
        %4168 = vmatpush2.bf16.msra.mxu0 0
        %4169 = vmatprep.subr.bf16.mxu0 0
        %4170 = vmatpush2.bf16.msra.mxu0 0
        %4171 = vmatprep.mubr.bf16.mxu0 0
        %4172 = vmatmul.mubr.bf16.gmra.mxu0 %v4134
        %v4173 = vpop.f32.mrf.mxu0
        %v4174 = vadd.f32 0.0, %v4173
        %v4175 = vpop.f32.mrf.mxu0
        %v4176 = vpop.f32.mrf.mxu0
        %v4177 = vpop.f32.mrf.mxu0
        %4178 = vdwg.mxu0
        %4180 = vrot.lane.b32.xlu0 %v912, 96
        %v4181 = vpop.permute.xlu0 %4180
        %v4183 = vsel %vm2421, %v2802, 0
        %v4186 = vsel %vm2812, %v4181, 0
        %4188 = vmatprep.subr.bf16.mxu0 0
        %4189 = vmatpush1.bf16.msra.mxu0 0
        %4190 = vmatprep.subr.bf16.mxu0 0
        %4191 = vmatpush1.bf16.msra.mxu0 0
        %4192 = vmatprep.subr.bf16.mxu0 0
        %4193 = vmatpush1.bf16.msra.mxu0 0
        %4194 = vmatprep.subr.bf16.mxu0 0
        %4195 = vmatpush1.bf16.msra.mxu0 0
        %4196 = vmatprep.subr.bf16.mxu0 0
        %4197 = vmatpush1.bf16.msra.mxu0 0
        %4198 = vmatprep.subr.bf16.mxu0 0
        %4199 = vmatpush1.bf16.msra.mxu0 0
        %4200 = vmatprep.subr.bf16.mxu0 0
        %4201 = vmatpush1.bf16.msra.mxu0 0
        %4202 = vmatprep.subr.bf16.mxu0 0
        %4203 = vmatpush1.bf16.msra.mxu0 %v4186
        %4204 = vmatprep.subr.bf16.mxu0 0
        %4205 = vmatpush2.bf16.msra.mxu0 0
        %4206 = vmatprep.subr.bf16.mxu0 0
        %4207 = vmatpush2.bf16.msra.mxu0 0
        %4208 = vmatprep.subr.bf16.mxu0 0
        %4209 = vmatpush2.bf16.msra.mxu0 0
        %4210 = vmatprep.subr.bf16.mxu0 0
        %4211 = vmatpush2.bf16.msra.mxu0 0
        %4212 = vmatprep.subr.bf16.mxu0 0
        %4213 = vmatpush2.bf16.msra.mxu0 0
        %4214 = vmatprep.subr.bf16.mxu0 0
        %4215 = vmatpush2.bf16.msra.mxu0 0
        %4216 = vmatprep.subr.bf16.mxu0 0
        %4217 = vmatpush2.bf16.msra.mxu0 0
        %4218 = vmatprep.subr.bf16.mxu0 0
        %4219 = vmatpush2.bf16.msra.mxu0 0
        %4220 = vmatprep.mubr.bf16.mxu0 0
        %4221 = vmatmul.mubr.bf16.gmra.mxu0 %v4183
        %v4222 = vpop.f32.mrf.mxu0
        %v4223 = vadd.f32 0.0, %v4222
        %v4224 = vpop.f32.mrf.mxu0
        %v4225 = vpop.f32.mrf.mxu0
        %v4226 = vpop.f32.mrf.mxu0
        %4227 = vdwg.mxu0
        %4229 = vrot.lane.b32.xlu0 %v913, 96
        %v4230 = vpop.permute.xlu0 %4229
        %v4232 = vsel %vm2421, %v2803, 0
        %v4235 = vsel %vm2812, %v4230, 0
        %4237 = vmatprep.subr.bf16.mxu0 0
        %4238 = vmatpush1.bf16.msra.mxu0 0
        %4239 = vmatprep.subr.bf16.mxu0 0
        %4240 = vmatpush1.bf16.msra.mxu0 0
        %4241 = vmatprep.subr.bf16.mxu0 0
        %4242 = vmatpush1.bf16.msra.mxu0 0
        %4243 = vmatprep.subr.bf16.mxu0 0
        %4244 = vmatpush1.bf16.msra.mxu0 0
        %4245 = vmatprep.subr.bf16.mxu0 0
        %4246 = vmatpush1.bf16.msra.mxu0 0
        %4247 = vmatprep.subr.bf16.mxu0 0
        %4248 = vmatpush1.bf16.msra.mxu0 0
        %4249 = vmatprep.subr.bf16.mxu0 0
        %4250 = vmatpush1.bf16.msra.mxu0 0
        %4251 = vmatprep.subr.bf16.mxu0 0
        %4252 = vmatpush1.bf16.msra.mxu0 %v4235
        %4253 = vmatprep.subr.bf16.mxu0 0
        %4254 = vmatpush2.bf16.msra.mxu0 0
        %4255 = vmatprep.subr.bf16.mxu0 0
        %4256 = vmatpush2.bf16.msra.mxu0 0
        %4257 = vmatprep.subr.bf16.mxu0 0
        %4258 = vmatpush2.bf16.msra.mxu0 0
        %4259 = vmatprep.subr.bf16.mxu0 0
        %4260 = vmatpush2.bf16.msra.mxu0 0
        %4261 = vmatprep.subr.bf16.mxu0 0
        %4262 = vmatpush2.bf16.msra.mxu0 0
        %4263 = vmatprep.subr.bf16.mxu0 0
        %4264 = vmatpush2.bf16.msra.mxu0 0
        %4265 = vmatprep.subr.bf16.mxu0 0
        %4266 = vmatpush2.bf16.msra.mxu0 0
        %4267 = vmatprep.subr.bf16.mxu0 0
        %4268 = vmatpush2.bf16.msra.mxu0 0
        %4269 = vmatprep.mubr.bf16.mxu0 0
        %4270 = vmatmul.mubr.bf16.gmra.mxu0 %v4232
        %v4271 = vpop.f32.mrf.mxu0
        %v4272 = vadd.f32 0.0, %v4271
        %v4273 = vpop.f32.mrf.mxu0
        %v4274 = vpop.f32.mrf.mxu0
        %v4275 = vpop.f32.mrf.mxu0
        %4276 = vdwg.mxu0
        %4278 = vrot.lane.b32.xlu0 %v914, 96
        %v4279 = vpop.permute.xlu0 %4278
        %v4281 = vsel %vm2421, %v2804, 0
        %v4284 = vsel %vm2812, %v4279, 0
        %4286 = vmatprep.subr.bf16.mxu0 0
        %4287 = vmatpush1.bf16.msra.mxu0 0
        %4288 = vmatprep.subr.bf16.mxu0 0
        %4289 = vmatpush1.bf16.msra.mxu0 0
        %4290 = vmatprep.subr.bf16.mxu0 0
        %4291 = vmatpush1.bf16.msra.mxu0 0
        %4292 = vmatprep.subr.bf16.mxu0 0
        %4293 = vmatpush1.bf16.msra.mxu0 0
        %4294 = vmatprep.subr.bf16.mxu0 0
        %4295 = vmatpush1.bf16.msra.mxu0 0
        %4296 = vmatprep.subr.bf16.mxu0 0
        %4297 = vmatpush1.bf16.msra.mxu0 0
        %4298 = vmatprep.subr.bf16.mxu0 0
        %4299 = vmatpush1.bf16.msra.mxu0 0
        %4300 = vmatprep.subr.bf16.mxu0 0
        %4301 = vmatpush1.bf16.msra.mxu0 %v4284
        %4302 = vmatprep.subr.bf16.mxu0 0
        %4303 = vmatpush2.bf16.msra.mxu0 0
        %4304 = vmatprep.subr.bf16.mxu0 0
        %4305 = vmatpush2.bf16.msra.mxu0 0
        %4306 = vmatprep.subr.bf16.mxu0 0
        %4307 = vmatpush2.bf16.msra.mxu0 0
        %4308 = vmatprep.subr.bf16.mxu0 0
        %4309 = vmatpush2.bf16.msra.mxu0 0
        %4310 = vmatprep.subr.bf16.mxu0 0
        %4311 = vmatpush2.bf16.msra.mxu0 0
        %4312 = vmatprep.subr.bf16.mxu0 0
        %4313 = vmatpush2.bf16.msra.mxu0 0
        %4314 = vmatprep.subr.bf16.mxu0 0
        %4315 = vmatpush2.bf16.msra.mxu0 0
        %4316 = vmatprep.subr.bf16.mxu0 0
        %4317 = vmatpush2.bf16.msra.mxu0 0
        %4318 = vmatprep.mubr.bf16.mxu0 0
        %4319 = vmatmul.mubr.bf16.gmra.mxu0 %v4281
        %v4320 = vpop.f32.mrf.mxu0
        %v4321 = vadd.f32 0.0, %v4320
        %v4322 = vpop.f32.mrf.mxu0
        %v4323 = vpop.f32.mrf.mxu0
        %v4324 = vpop.f32.mrf.mxu0
        %4325 = vdwg.mxu0
        %4327 = vrot.lane.b32.xlu0 %v915, 96
        %v4328 = vpop.permute.xlu0 %4327
        %v4330 = vsel %vm2421, %v2805, 0
        %v4333 = vsel %vm2812, %v4328, 0
        %4335 = vmatprep.subr.bf16.mxu0 0
        %4336 = vmatpush1.bf16.msra.mxu0 0
        %4337 = vmatprep.subr.bf16.mxu0 0
        %4338 = vmatpush1.bf16.msra.mxu0 0
        %4339 = vmatprep.subr.bf16.mxu0 0
        %4340 = vmatpush1.bf16.msra.mxu0 0
        %4341 = vmatprep.subr.bf16.mxu0 0
        %4342 = vmatpush1.bf16.msra.mxu0 0
        %4343 = vmatprep.subr.bf16.mxu0 0
        %4344 = vmatpush1.bf16.msra.mxu0 0
        %4345 = vmatprep.subr.bf16.mxu0 0
        %4346 = vmatpush1.bf16.msra.mxu0 0
        %4347 = vmatprep.subr.bf16.mxu0 0
        %4348 = vmatpush1.bf16.msra.mxu0 0
        %4349 = vmatprep.subr.bf16.mxu0 0
        %4350 = vmatpush1.bf16.msra.mxu0 %v4333
        %4351 = vmatprep.subr.bf16.mxu0 0
        %4352 = vmatpush2.bf16.msra.mxu0 0
        %4353 = vmatprep.subr.bf16.mxu0 0
        %4354 = vmatpush2.bf16.msra.mxu0 0
        %4355 = vmatprep.subr.bf16.mxu0 0
        %4356 = vmatpush2.bf16.msra.mxu0 0
        %4357 = vmatprep.subr.bf16.mxu0 0
        %4358 = vmatpush2.bf16.msra.mxu0 0
        %4359 = vmatprep.subr.bf16.mxu0 0
        %4360 = vmatpush2.bf16.msra.mxu0 0
        %4361 = vmatprep.subr.bf16.mxu0 0
        %4362 = vmatpush2.bf16.msra.mxu0 0
        %4363 = vmatprep.subr.bf16.mxu0 0
        %4364 = vmatpush2.bf16.msra.mxu0 0
        %4365 = vmatprep.subr.bf16.mxu0 0
        %4366 = vmatpush2.bf16.msra.mxu0 0
        %4367 = vmatprep.mubr.bf16.mxu0 0
        %4368 = vmatmul.mubr.bf16.gmra.mxu0 %v4330
        %v4369 = vpop.f32.mrf.mxu0
        %v4370 = vadd.f32 0.0, %v4369
        %v4371 = vpop.f32.mrf.mxu0
        %v4372 = vpop.f32.mrf.mxu0
        %v4373 = vpop.f32.mrf.mxu0
        %4374 = vdwg.mxu0
        %4379 = vrot.lane.b32.xlu0 %v3047, 4
        %v4380 = vpop.permute.xlu0 %4379
        %4381 = vrot.lane.b32.xlu0 %v3096, 4
        %v4382 = vpop.permute.xlu0 %4381
        %4383 = vrot.lane.b32.xlu0 %v3145, 4
        %v4384 = vpop.permute.xlu0 %4383
        %4385 = vrot.lane.b32.xlu0 %v3194, 4
        %v4386 = vpop.permute.xlu0 %4385
        %4395 = vrot.lane.b32.xlu0 %v3243, 8
        %v4396 = vpop.permute.xlu0 %4395
        %4397 = vrot.lane.b32.xlu0 %v3292, 8
        %v4398 = vpop.permute.xlu0 %4397
        %4399 = vrot.lane.b32.xlu0 %v3341, 8
        %v4400 = vpop.permute.xlu0 %4399
        %4401 = vrot.lane.b32.xlu0 %v3390, 8
        %v4402 = vpop.permute.xlu0 %4401
        %4411 = vrot.lane.b32.xlu0 %v3439, 12
        %v4412 = vpop.permute.xlu0 %4411
        %4413 = vrot.lane.b32.xlu0 %v3488, 12
        %v4414 = vpop.permute.xlu0 %4413
        %4415 = vrot.lane.b32.xlu0 %v3537, 12
        %v4416 = vpop.permute.xlu0 %4415
        %4417 = vrot.lane.b32.xlu0 %v3586, 12
        %v4418 = vpop.permute.xlu0 %4417
        %4427 = vrot.lane.b32.xlu0 %v3635, 16
        %v4428 = vpop.permute.xlu0 %4427
        %4429 = vrot.lane.b32.xlu0 %v3684, 16
        %v4430 = vpop.permute.xlu0 %4429
        %4431 = vrot.lane.b32.xlu0 %v3733, 16
        %v4432 = vpop.permute.xlu0 %4431
        %4433 = vrot.lane.b32.xlu0 %v3782, 16
        %v4434 = vpop.permute.xlu0 %4433
        %4443 = vrot.lane.b32.xlu0 %v3831, 20
        %v4444 = vpop.permute.xlu0 %4443
        %4445 = vrot.lane.b32.xlu0 %v3880, 20
        %v4446 = vpop.permute.xlu0 %4445
        %4447 = vrot.lane.b32.xlu0 %v3929, 20
        %v4448 = vpop.permute.xlu0 %4447
        %4449 = vrot.lane.b32.xlu0 %v3978, 20
        %v4450 = vpop.permute.xlu0 %4449
        %4459 = vrot.lane.b32.xlu0 %v4027, 24
        %v4460 = vpop.permute.xlu0 %4459
        %4461 = vrot.lane.b32.xlu0 %v4076, 24
        %v4462 = vpop.permute.xlu0 %4461
        %4463 = vrot.lane.b32.xlu0 %v4125, 24
        %v4464 = vpop.permute.xlu0 %4463
        %4465 = vrot.lane.b32.xlu0 %v4174, 24
        %v4466 = vpop.permute.xlu0 %4465
        %4475 = vrot.lane.b32.xlu0 %v4223, 28
        %v4476 = vpop.permute.xlu0 %4475
        %4477 = vrot.lane.b32.xlu0 %v4272, 28
        %v4478 = vpop.permute.xlu0 %4477
        %4479 = vrot.lane.b32.xlu0 %v4321, 28
        %v4480 = vpop.permute.xlu0 %4479
        %4481 = vrot.lane.b32.xlu0 %v4370, 28
        %v4482 = vpop.permute.xlu0 %4481
        %v4487 = vsel %vm916, %v2851, %v4380
        %v4488 = vsel %vm916, %v2900, %v4382
        %v4489 = vsel %vm916, %v2949, %v4384
        %v4490 = vsel %vm916, %v2998, %v4386
        %v4491 = vsel %vm2421, %v4487, %v4396
        %v4492 = vsel %vm2421, %v4488, %v4398
        %v4493 = vsel %vm2421, %v4489, %v4400
        %v4494 = vsel %vm2421, %v4490, %v4402
        %vm4495 = vcmask 97280
        %v4496 = vsel %vm4495, %v4491, %v4412
        %v4497 = vsel %vm4495, %v4492, %v4414
        %v4498 = vsel %vm4495, %v4493, %v4416
        %v4499 = vsel %vm4495, %v4494, %v4418
        %vm4500 = vcmask 130048
        %v4501 = vsel %vm4500, %v4496, %v4428
        %v4502 = vsel %vm4500, %v4497, %v4430
        %v4503 = vsel %vm4500, %v4498, %v4432
        %v4504 = vsel %vm4500, %v4499, %v4434
        %vm4505 = vcmask 162816
        %v4506 = vsel %vm4505, %v4501, %v4444
        %v4507 = vsel %vm4505, %v4502, %v4446
        %v4508 = vsel %vm4505, %v4503, %v4448
        %v4509 = vsel %vm4505, %v4504, %v4450
        %vm4510 = vcmask 195584
        %v4511 = vsel %vm4510, %v4506, %v4460
        %v4512 = vsel %vm4510, %v4507, %v4462
        %v4513 = vsel %vm4510, %v4508, %v4464
        %v4514 = vsel %vm4510, %v4509, %v4466
        %vm4515 = vcmask 228352
        %v4516 = vsel %vm4515, %v4511, %v4476
        %v4517 = vsel %vm4515, %v4512, %v4478
        %v4518 = vsel %vm4515, %v4513, %v4480
        %v4519 = vsel %vm4515, %v4514, %v4482
        %v4520 = vmul.f32 %v582, %v582
        %v4521 = vmul.f32 %v585, %v585
        %v4522 = vmul.f32 %v590, %v590
        %v4523 = vmul.f32 %v593, %v593
        %v4524 = vsel %vm540, %v4520, 0.0
        %4525 = vadd.xlane.f32.xlu0 %v4524
        %v4526 = vpop.xlane.xlu0 %4525
        %v4527 = vsel %vm540, %v4521, 0.0
        %4528 = vadd.xlane.f32.xlu0 %v4527
        %v4529 = vpop.xlane.xlu0 %4528
        %v4530 = vsel %vm540, %v4522, 0.0
        %4531 = vadd.xlane.f32.xlu0 %v4530
        %v4532 = vpop.xlane.xlu0 %4531
        %v4533 = vsel %vm540, %v4523, 0.0
        %4534 = vadd.xlane.f32.xlu0 %v4533
        %v4535 = vpop.xlane.xlu0 %4534
        %v4536 = vmul.f32 %v4516, %v4516
        %v4537 = vmul.f32 %v4517, %v4517
        %v4538 = vmul.f32 %v4518, %v4518
        %v4539 = vmul.f32 %v4519, %v4519
        %v4540 = vsel %vm540, %v4536, 0.0
        %4541 = vadd.xlane.f32.xlu0 %v4540
        %v4542 = vpop.xlane.xlu0 %4541
        %v4543 = vsel %vm540, %v4537, 0.0
        %4544 = vadd.xlane.f32.xlu0 %v4543
        %v4545 = vpop.xlane.xlu0 %4544
        %v4546 = vsel %vm540, %v4538, 0.0
        %4547 = vadd.xlane.f32.xlu0 %v4546
        %v4548 = vpop.xlane.xlu0 %4547
        %v4549 = vsel %vm540, %v4539, 0.0
        %4550 = vadd.xlane.f32.xlu0 %v4549
        %v4551 = vpop.xlane.xlu0 %4550
        %v4552 = vpack.c.bf16 %v4516, %v4516
        %v4553 = vpack.c.bf16 %v4517, %v4517
        %v4554 = vpack.c.bf16 %v4518, %v4518
        %v4555 = vpack.c.bf16 %v4519, %v4519
        %v4556 = vsel %vm540, %v764, 0
        %v4559 = vsel %vm540, %v4552, 0
        %4561 = vmatprep.subr.bf16.mxu0 0
        %4562 = vmatpush1.bf16.xpose.msra.mxu0 0
        %4563 = vmatprep.subr.bf16.mxu0 0
        %4564 = vmatpush1.bf16.xpose.msra.mxu0 0
        %4565 = vmatprep.subr.bf16.mxu0 0
        %4566 = vmatpush1.bf16.xpose.msra.mxu0 0
        %4567 = vmatprep.subr.bf16.mxu0 0
        %4568 = vmatpush1.bf16.xpose.msra.mxu0 0
        %4569 = vmatprep.subr.bf16.mxu0 0
        %4570 = vmatpush1.bf16.xpose.msra.mxu0 0
        %4571 = vmatprep.subr.bf16.mxu0 0
        %4572 = vmatpush1.bf16.xpose.msra.mxu0 0
        %4573 = vmatprep.subr.bf16.mxu0 0
        %4574 = vmatpush1.bf16.xpose.msra.mxu0 0
        %4575 = vmatprep.subr.bf16.mxu0 0
        %4576 = vmatpush1.bf16.xpose.msra.mxu0 %v4559
        %4577 = vmatprep.subr.bf16.mxu0 0
        %4578 = vmatpush2.bf16.xpose.msra.mxu0 0
        %4579 = vmatprep.subr.bf16.mxu0 0
        %4580 = vmatpush2.bf16.xpose.msra.mxu0 0
        %4581 = vmatprep.subr.bf16.mxu0 0
        %4582 = vmatpush2.bf16.xpose.msra.mxu0 0
        %4583 = vmatprep.subr.bf16.mxu0 0
        %4584 = vmatpush2.bf16.xpose.msra.mxu0 0
        %4585 = vmatprep.subr.bf16.mxu0 0
        %4586 = vmatpush2.bf16.xpose.msra.mxu0 0
        %4587 = vmatprep.subr.bf16.mxu0 0
        %4588 = vmatpush2.bf16.xpose.msra.mxu0 0
        %4589 = vmatprep.subr.bf16.mxu0 0
        %4590 = vmatpush2.bf16.xpose.msra.mxu0 0
        %4591 = vmatprep.subr.bf16.mxu0 0
        %4592 = vmatpush2.bf16.xpose.msra.mxu0 0
        %4593 = vmatprep.mubr.bf16.mxu0 0
        %4594 = vmatmul.mubr.bf16.gmra.mxu0 %v4556
        %v4595 = vpop.f32.mrf.mxu0
        %v4596 = vadd.f32 0.0, %v4595
        %v4597 = vpop.f32.mrf.mxu0
        %v4598 = vpop.f32.mrf.mxu0
        %v4599 = vpop.f32.mrf.mxu0
        %4600 = vdwg.mxu0
        %v4601 = vsel %vm540, %v765, 0
        %v4604 = vsel %vm540, %v4553, 0
        %4606 = vmatprep.subr.bf16.mxu0 0
        %4607 = vmatpush1.bf16.xpose.msra.mxu0 0
        %4608 = vmatprep.subr.bf16.mxu0 0
        %4609 = vmatpush1.bf16.xpose.msra.mxu0 0
        %4610 = vmatprep.subr.bf16.mxu0 0
        %4611 = vmatpush1.bf16.xpose.msra.mxu0 0
        %4612 = vmatprep.subr.bf16.mxu0 0
        %4613 = vmatpush1.bf16.xpose.msra.mxu0 0
        %4614 = vmatprep.subr.bf16.mxu0 0
        %4615 = vmatpush1.bf16.xpose.msra.mxu0 0
        %4616 = vmatprep.subr.bf16.mxu0 0
        %4617 = vmatpush1.bf16.xpose.msra.mxu0 0
        %4618 = vmatprep.subr.bf16.mxu0 0
        %4619 = vmatpush1.bf16.xpose.msra.mxu0 0
        %4620 = vmatprep.subr.bf16.mxu0 0
        %4621 = vmatpush1.bf16.xpose.msra.mxu0 %v4604
        %4622 = vmatprep.subr.bf16.mxu0 0
        %4623 = vmatpush2.bf16.xpose.msra.mxu0 0
        %4624 = vmatprep.subr.bf16.mxu0 0
        %4625 = vmatpush2.bf16.xpose.msra.mxu0 0
        %4626 = vmatprep.subr.bf16.mxu0 0
        %4627 = vmatpush2.bf16.xpose.msra.mxu0 0
        %4628 = vmatprep.subr.bf16.mxu0 0
        %4629 = vmatpush2.bf16.xpose.msra.mxu0 0
        %4630 = vmatprep.subr.bf16.mxu0 0
        %4631 = vmatpush2.bf16.xpose.msra.mxu0 0
        %4632 = vmatprep.subr.bf16.mxu0 0
        %4633 = vmatpush2.bf16.xpose.msra.mxu0 0
        %4634 = vmatprep.subr.bf16.mxu0 0
        %4635 = vmatpush2.bf16.xpose.msra.mxu0 0
        %4636 = vmatprep.subr.bf16.mxu0 0
        %4637 = vmatpush2.bf16.xpose.msra.mxu0 0
        %4638 = vmatprep.mubr.bf16.mxu0 0
        %4639 = vmatmul.mubr.bf16.gmra.mxu0 %v4601
        %v4640 = vpop.f32.mrf.mxu0
        %v4641 = vadd.f32 0.0, %v4640
        %v4642 = vpop.f32.mrf.mxu0
        %v4643 = vpop.f32.mrf.mxu0
        %v4644 = vpop.f32.mrf.mxu0
        %4645 = vdwg.mxu0
        %v4646 = vsel %vm540, %v766, 0
        %v4649 = vsel %vm540, %v4554, 0
        %4651 = vmatprep.subr.bf16.mxu0 0
        %4652 = vmatpush1.bf16.xpose.msra.mxu0 0
        %4653 = vmatprep.subr.bf16.mxu0 0
        %4654 = vmatpush1.bf16.xpose.msra.mxu0 0
        %4655 = vmatprep.subr.bf16.mxu0 0
        %4656 = vmatpush1.bf16.xpose.msra.mxu0 0
        %4657 = vmatprep.subr.bf16.mxu0 0
        %4658 = vmatpush1.bf16.xpose.msra.mxu0 0
        %4659 = vmatprep.subr.bf16.mxu0 0
        %4660 = vmatpush1.bf16.xpose.msra.mxu0 0
        %4661 = vmatprep.subr.bf16.mxu0 0
        %4662 = vmatpush1.bf16.xpose.msra.mxu0 0
        %4663 = vmatprep.subr.bf16.mxu0 0
        %4664 = vmatpush1.bf16.xpose.msra.mxu0 0
        %4665 = vmatprep.subr.bf16.mxu0 0
        %4666 = vmatpush1.bf16.xpose.msra.mxu0 %v4649
        %4667 = vmatprep.subr.bf16.mxu0 0
        %4668 = vmatpush2.bf16.xpose.msra.mxu0 0
        %4669 = vmatprep.subr.bf16.mxu0 0
        %4670 = vmatpush2.bf16.xpose.msra.mxu0 0
        %4671 = vmatprep.subr.bf16.mxu0 0
        %4672 = vmatpush2.bf16.xpose.msra.mxu0 0
        %4673 = vmatprep.subr.bf16.mxu0 0
        %4674 = vmatpush2.bf16.xpose.msra.mxu0 0
        %4675 = vmatprep.subr.bf16.mxu0 0
        %4676 = vmatpush2.bf16.xpose.msra.mxu0 0
        %4677 = vmatprep.subr.bf16.mxu0 0
        %4678 = vmatpush2.bf16.xpose.msra.mxu0 0
        %4679 = vmatprep.subr.bf16.mxu0 0
        %4680 = vmatpush2.bf16.xpose.msra.mxu0 0
        %4681 = vmatprep.subr.bf16.mxu0 0
        %4682 = vmatpush2.bf16.xpose.msra.mxu0 0
        %4683 = vmatprep.mubr.bf16.mxu0 0
        %4684 = vmatmul.mubr.bf16.gmra.mxu0 %v4646
        %v4685 = vpop.f32.mrf.mxu0
        %v4686 = vadd.f32 0.0, %v4685
        %v4687 = vpop.f32.mrf.mxu0
        %v4688 = vpop.f32.mrf.mxu0
        %v4689 = vpop.f32.mrf.mxu0
        %4690 = vdwg.mxu0
        %v4691 = vsel %vm540, %v767, 0
        %v4694 = vsel %vm540, %v4555, 0
        %4696 = vmatprep.subr.bf16.mxu0 0
        %4697 = vmatpush1.bf16.xpose.msra.mxu0 0
        %4698 = vmatprep.subr.bf16.mxu0 0
        %4699 = vmatpush1.bf16.xpose.msra.mxu0 0
        %4700 = vmatprep.subr.bf16.mxu0 0
        %4701 = vmatpush1.bf16.xpose.msra.mxu0 0
        %4702 = vmatprep.subr.bf16.mxu0 0
        %4703 = vmatpush1.bf16.xpose.msra.mxu0 0
        %4704 = vmatprep.subr.bf16.mxu0 0
        %4705 = vmatpush1.bf16.xpose.msra.mxu0 0
        %4706 = vmatprep.subr.bf16.mxu0 0
        %4707 = vmatpush1.bf16.xpose.msra.mxu0 0
        %4708 = vmatprep.subr.bf16.mxu0 0
        %4709 = vmatpush1.bf16.xpose.msra.mxu0 0
        %4710 = vmatprep.subr.bf16.mxu0 0
        %4711 = vmatpush1.bf16.xpose.msra.mxu0 %v4694
        %4712 = vmatprep.subr.bf16.mxu0 0
        %4713 = vmatpush2.bf16.xpose.msra.mxu0 0
        %4714 = vmatprep.subr.bf16.mxu0 0
        %4715 = vmatpush2.bf16.xpose.msra.mxu0 0
        %4716 = vmatprep.subr.bf16.mxu0 0
        %4717 = vmatpush2.bf16.xpose.msra.mxu0 0
        %4718 = vmatprep.subr.bf16.mxu0 0
        %4719 = vmatpush2.bf16.xpose.msra.mxu0 0
        %4720 = vmatprep.subr.bf16.mxu0 0
        %4721 = vmatpush2.bf16.xpose.msra.mxu0 0
        %4722 = vmatprep.subr.bf16.mxu0 0
        %4723 = vmatpush2.bf16.xpose.msra.mxu0 0
        %4724 = vmatprep.subr.bf16.mxu0 0
        %4725 = vmatpush2.bf16.xpose.msra.mxu0 0
        %4726 = vmatprep.subr.bf16.mxu0 0
        %4727 = vmatpush2.bf16.xpose.msra.mxu0 0
        %4728 = vmatprep.mubr.bf16.mxu0 0
        %4729 = vmatmul.mubr.bf16.gmra.mxu0 %v4691
        %v4730 = vpop.f32.mrf.mxu0
        %v4731 = vadd.f32 0.0, %v4730
        %v4732 = vpop.f32.mrf.mxu0
        %v4733 = vpop.f32.mrf.mxu0
        %v4734 = vpop.f32.mrf.mxu0
        %4735 = vdwg.mxu0
        %vm4736 = vcmask 7168
        %v4738 = vsel %vm4736, %v4526, 0
        %v4741 = vsel %vm4736, %v4542, 0
        %4743 = vmatprep.subr.mxu0 0.0
        %4744 = vmatpush1.xpose.msra.mxu0 0.0
        %4745 = vmatprep.subr.mxu0 0.0
        %4746 = vmatpush1.xpose.msra.mxu0 0.0
        %4747 = vmatprep.subr.mxu0 0.0
        %4748 = vmatpush1.xpose.msra.mxu0 0.0
        %4749 = vmatprep.subr.mxu0 0.0
        %4750 = vmatpush1.xpose.msra.mxu0 0.0
        %4751 = vmatprep.subr.mxu0 0.0
        %4752 = vmatpush1.xpose.msra.mxu0 0.0
        %4753 = vmatprep.subr.mxu0 0.0
        %4754 = vmatpush1.xpose.msra.mxu0 0.0
        %4755 = vmatprep.subr.mxu0 0.0
        %4756 = vmatpush1.xpose.msra.mxu0 0.0
        %4757 = vmatprep.subr.mxu0 0.0
        %4758 = vmatpush1.xpose.msra.mxu0 0.0
        %4759 = vmatprep.subr.mxu0 0.0
        %4760 = vmatpush1.xpose.msra.mxu0 0.0
        %4761 = vmatprep.subr.mxu0 0.0
        %4762 = vmatpush1.xpose.msra.mxu0 0.0
        %4763 = vmatprep.subr.mxu0 0.0
        %4764 = vmatpush1.xpose.msra.mxu0 0.0
        %4765 = vmatprep.subr.mxu0 0.0
        %4766 = vmatpush1.xpose.msra.mxu0 0.0
        %4767 = vmatprep.subr.mxu0 0.0
        %4768 = vmatpush1.xpose.msra.mxu0 0.0
        %4769 = vmatprep.subr.mxu0 0.0
        %4770 = vmatpush1.xpose.msra.mxu0 0.0
        %4771 = vmatprep.subr.mxu0 0.0
        %4772 = vmatpush1.xpose.msra.mxu0 0.0
        %4773 = vmatprep.subr.mxu0 0.0
        %4774 = vmatpush1.xpose.msra.mxu0 %v4741
        %4775 = vmatprep.subr.mxu0 0.0
        %4776 = vmatpush2.xpose.msra.mxu0 0.0
        %4777 = vmatprep.subr.mxu0 0.0
        %4778 = vmatpush2.xpose.msra.mxu0 0.0
        %4779 = vmatprep.subr.mxu0 0.0
        %4780 = vmatpush2.xpose.msra.mxu0 0.0
        %4781 = vmatprep.subr.mxu0 0.0
        %4782 = vmatpush2.xpose.msra.mxu0 0.0
        %4783 = vmatprep.subr.mxu0 0.0
        %4784 = vmatpush2.xpose.msra.mxu0 0.0
        %4785 = vmatprep.subr.mxu0 0.0
        %4786 = vmatpush2.xpose.msra.mxu0 0.0
        %4787 = vmatprep.subr.mxu0 0.0
        %4788 = vmatpush2.xpose.msra.mxu0 0.0
        %4789 = vmatprep.subr.mxu0 0.0
        %4790 = vmatpush2.xpose.msra.mxu0 0.0
        %4791 = vmatprep.subr.mxu0 0.0
        %4792 = vmatpush2.xpose.msra.mxu0 0.0
        %4793 = vmatprep.subr.mxu0 0.0
        %4794 = vmatpush2.xpose.msra.mxu0 0.0
        %4795 = vmatprep.subr.mxu0 0.0
        %4796 = vmatpush2.xpose.msra.mxu0 0.0
        %4797 = vmatprep.subr.mxu0 0.0
        %4798 = vmatpush2.xpose.msra.mxu0 0.0
        %4799 = vmatprep.subr.mxu0 0.0
        %4800 = vmatpush2.xpose.msra.mxu0 0.0
        %4801 = vmatprep.subr.mxu0 0.0
        %4802 = vmatpush2.xpose.msra.mxu0 0.0
        %4803 = vmatprep.subr.mxu0 0.0
        %4804 = vmatpush2.xpose.msra.mxu0 0.0
        %4805 = vmatprep.subr.mxu0 0.0
        %4806 = vmatpush2.xpose.msra.mxu0 0.0
        %4807 = vmatprep.mubr.f32.mxu0 0.0
        %4808 = vmatmul.mubr.f32.gmra.mxu0 %v4738
        %v4809 = vpop.f32.mrf.mxu0
        %v4810 = vadd.f32 0.0, %v4809
        %v4811 = vpop.f32.mrf.mxu0
        %4812 = vdwg.mxu0
        %v4814 = vsel %vm4736, %v4529, 0
        %v4817 = vsel %vm4736, %v4545, 0
        %4819 = vmatprep.subr.mxu0 0.0
        %4820 = vmatpush1.xpose.msra.mxu0 0.0
        %4821 = vmatprep.subr.mxu0 0.0
        %4822 = vmatpush1.xpose.msra.mxu0 0.0
        %4823 = vmatprep.subr.mxu0 0.0
        %4824 = vmatpush1.xpose.msra.mxu0 0.0
        %4825 = vmatprep.subr.mxu0 0.0
        %4826 = vmatpush1.xpose.msra.mxu0 0.0
        %4827 = vmatprep.subr.mxu0 0.0
        %4828 = vmatpush1.xpose.msra.mxu0 0.0
        %4829 = vmatprep.subr.mxu0 0.0
        %4830 = vmatpush1.xpose.msra.mxu0 0.0
        %4831 = vmatprep.subr.mxu0 0.0
        %4832 = vmatpush1.xpose.msra.mxu0 0.0
        %4833 = vmatprep.subr.mxu0 0.0
        %4834 = vmatpush1.xpose.msra.mxu0 0.0
        %4835 = vmatprep.subr.mxu0 0.0
        %4836 = vmatpush1.xpose.msra.mxu0 0.0
        %4837 = vmatprep.subr.mxu0 0.0
        %4838 = vmatpush1.xpose.msra.mxu0 0.0
        %4839 = vmatprep.subr.mxu0 0.0
        %4840 = vmatpush1.xpose.msra.mxu0 0.0
        %4841 = vmatprep.subr.mxu0 0.0
        %4842 = vmatpush1.xpose.msra.mxu0 0.0
        %4843 = vmatprep.subr.mxu0 0.0
        %4844 = vmatpush1.xpose.msra.mxu0 0.0
        %4845 = vmatprep.subr.mxu0 0.0
        %4846 = vmatpush1.xpose.msra.mxu0 0.0
        %4847 = vmatprep.subr.mxu0 0.0
        %4848 = vmatpush1.xpose.msra.mxu0 0.0
        %4849 = vmatprep.subr.mxu0 0.0
        %4850 = vmatpush1.xpose.msra.mxu0 %v4817
        %4851 = vmatprep.subr.mxu0 0.0
        %4852 = vmatpush2.xpose.msra.mxu0 0.0
        %4853 = vmatprep.subr.mxu0 0.0
        %4854 = vmatpush2.xpose.msra.mxu0 0.0
        %4855 = vmatprep.subr.mxu0 0.0
        %4856 = vmatpush2.xpose.msra.mxu0 0.0
        %4857 = vmatprep.subr.mxu0 0.0
        %4858 = vmatpush2.xpose.msra.mxu0 0.0
        %4859 = vmatprep.subr.mxu0 0.0
        %4860 = vmatpush2.xpose.msra.mxu0 0.0
        %4861 = vmatprep.subr.mxu0 0.0
        %4862 = vmatpush2.xpose.msra.mxu0 0.0
        %4863 = vmatprep.subr.mxu0 0.0
        %4864 = vmatpush2.xpose.msra.mxu0 0.0
        %4865 = vmatprep.subr.mxu0 0.0
        %4866 = vmatpush2.xpose.msra.mxu0 0.0
        %4867 = vmatprep.subr.mxu0 0.0
        %4868 = vmatpush2.xpose.msra.mxu0 0.0
        %4869 = vmatprep.subr.mxu0 0.0
        %4870 = vmatpush2.xpose.msra.mxu0 0.0
        %4871 = vmatprep.subr.mxu0 0.0
        %4872 = vmatpush2.xpose.msra.mxu0 0.0
        %4873 = vmatprep.subr.mxu0 0.0
        %4874 = vmatpush2.xpose.msra.mxu0 0.0
        %4875 = vmatprep.subr.mxu0 0.0
        %4876 = vmatpush2.xpose.msra.mxu0 0.0
        %4877 = vmatprep.subr.mxu0 0.0
        %4878 = vmatpush2.xpose.msra.mxu0 0.0
        %4879 = vmatprep.subr.mxu0 0.0
        %4880 = vmatpush2.xpose.msra.mxu0 0.0
        %4881 = vmatprep.subr.mxu0 0.0
        %4882 = vmatpush2.xpose.msra.mxu0 0.0
        %4883 = vmatprep.mubr.f32.mxu0 0.0
        %4884 = vmatmul.mubr.f32.gmra.mxu0 %v4814
        %v4885 = vpop.f32.mrf.mxu0
        %v4886 = vadd.f32 0.0, %v4885
        %v4887 = vpop.f32.mrf.mxu0
        %4888 = vdwg.mxu0
        %v4890 = vsel %vm4736, %v4532, 0
        %v4893 = vsel %vm4736, %v4548, 0
        %4895 = vmatprep.subr.mxu0 0.0
        %4896 = vmatpush1.xpose.msra.mxu0 0.0
        %4897 = vmatprep.subr.mxu0 0.0
        %4898 = vmatpush1.xpose.msra.mxu0 0.0
        %4899 = vmatprep.subr.mxu0 0.0
        %4900 = vmatpush1.xpose.msra.mxu0 0.0
        %4901 = vmatprep.subr.mxu0 0.0
        %4902 = vmatpush1.xpose.msra.mxu0 0.0
        %4903 = vmatprep.subr.mxu0 0.0
        %4904 = vmatpush1.xpose.msra.mxu0 0.0
        %4905 = vmatprep.subr.mxu0 0.0
        %4906 = vmatpush1.xpose.msra.mxu0 0.0
        %4907 = vmatprep.subr.mxu0 0.0
        %4908 = vmatpush1.xpose.msra.mxu0 0.0
        %4909 = vmatprep.subr.mxu0 0.0
        %4910 = vmatpush1.xpose.msra.mxu0 0.0
        %4911 = vmatprep.subr.mxu0 0.0
        %4912 = vmatpush1.xpose.msra.mxu0 0.0
        %4913 = vmatprep.subr.mxu0 0.0
        %4914 = vmatpush1.xpose.msra.mxu0 0.0
        %4915 = vmatprep.subr.mxu0 0.0
        %4916 = vmatpush1.xpose.msra.mxu0 0.0
        %4917 = vmatprep.subr.mxu0 0.0
        %4918 = vmatpush1.xpose.msra.mxu0 0.0
        %4919 = vmatprep.subr.mxu0 0.0
        %4920 = vmatpush1.xpose.msra.mxu0 0.0
        %4921 = vmatprep.subr.mxu0 0.0
        %4922 = vmatpush1.xpose.msra.mxu0 0.0
        %4923 = vmatprep.subr.mxu0 0.0
        %4924 = vmatpush1.xpose.msra.mxu0 0.0
        %4925 = vmatprep.subr.mxu0 0.0
        %4926 = vmatpush1.xpose.msra.mxu0 %v4893
        %4927 = vmatprep.subr.mxu0 0.0
        %4928 = vmatpush2.xpose.msra.mxu0 0.0
        %4929 = vmatprep.subr.mxu0 0.0
        %4930 = vmatpush2.xpose.msra.mxu0 0.0
        %4931 = vmatprep.subr.mxu0 0.0
        %4932 = vmatpush2.xpose.msra.mxu0 0.0
        %4933 = vmatprep.subr.mxu0 0.0
        %4934 = vmatpush2.xpose.msra.mxu0 0.0
        %4935 = vmatprep.subr.mxu0 0.0
        %4936 = vmatpush2.xpose.msra.mxu0 0.0
        %4937 = vmatprep.subr.mxu0 0.0
        %4938 = vmatpush2.xpose.msra.mxu0 0.0
        %4939 = vmatprep.subr.mxu0 0.0
        %4940 = vmatpush2.xpose.msra.mxu0 0.0
        %4941 = vmatprep.subr.mxu0 0.0
        %4942 = vmatpush2.xpose.msra.mxu0 0.0
        %4943 = vmatprep.subr.mxu0 0.0
        %4944 = vmatpush2.xpose.msra.mxu0 0.0
        %4945 = vmatprep.subr.mxu0 0.0
        %4946 = vmatpush2.xpose.msra.mxu0 0.0
        %4947 = vmatprep.subr.mxu0 0.0
        %4948 = vmatpush2.xpose.msra.mxu0 0.0
        %4949 = vmatprep.subr.mxu0 0.0
        %4950 = vmatpush2.xpose.msra.mxu0 0.0
        %4951 = vmatprep.subr.mxu0 0.0
        %4952 = vmatpush2.xpose.msra.mxu0 0.0
        %4953 = vmatprep.subr.mxu0 0.0
        %4954 = vmatpush2.xpose.msra.mxu0 0.0
        %4955 = vmatprep.subr.mxu0 0.0
        %4956 = vmatpush2.xpose.msra.mxu0 0.0
        %4957 = vmatprep.subr.mxu0 0.0
        %4958 = vmatpush2.xpose.msra.mxu0 0.0
        %4959 = vmatprep.mubr.f32.mxu0 0.0
        %4960 = vmatmul.mubr.f32.gmra.mxu0 %v4890
        %v4961 = vpop.f32.mrf.mxu0
        %v4962 = vadd.f32 0.0, %v4961
        %v4963 = vpop.f32.mrf.mxu0
        %4964 = vdwg.mxu0
        %v4966 = vsel %vm4736, %v4535, 0
        %v4969 = vsel %vm4736, %v4551, 0
        %4971 = vmatprep.subr.mxu0 0.0
        %4972 = vmatpush1.xpose.msra.mxu0 0.0
        %4973 = vmatprep.subr.mxu0 0.0
        %4974 = vmatpush1.xpose.msra.mxu0 0.0
        %4975 = vmatprep.subr.mxu0 0.0
        %4976 = vmatpush1.xpose.msra.mxu0 0.0
        %4977 = vmatprep.subr.mxu0 0.0
        %4978 = vmatpush1.xpose.msra.mxu0 0.0
        %4979 = vmatprep.subr.mxu0 0.0
        %4980 = vmatpush1.xpose.msra.mxu0 0.0
        %4981 = vmatprep.subr.mxu0 0.0
        %4982 = vmatpush1.xpose.msra.mxu0 0.0
        %4983 = vmatprep.subr.mxu0 0.0
        %4984 = vmatpush1.xpose.msra.mxu0 0.0
        %4985 = vmatprep.subr.mxu0 0.0
        %4986 = vmatpush1.xpose.msra.mxu0 0.0
        %4987 = vmatprep.subr.mxu0 0.0
        %4988 = vmatpush1.xpose.msra.mxu0 0.0
        %4989 = vmatprep.subr.mxu0 0.0
        %4990 = vmatpush1.xpose.msra.mxu0 0.0
        %4991 = vmatprep.subr.mxu0 0.0
        %4992 = vmatpush1.xpose.msra.mxu0 0.0
        %4993 = vmatprep.subr.mxu0 0.0
        %4994 = vmatpush1.xpose.msra.mxu0 0.0
        %4995 = vmatprep.subr.mxu0 0.0
        %4996 = vmatpush1.xpose.msra.mxu0 0.0
        %4997 = vmatprep.subr.mxu0 0.0
        %4998 = vmatpush1.xpose.msra.mxu0 0.0
        %4999 = vmatprep.subr.mxu0 0.0
        %5000 = vmatpush1.xpose.msra.mxu0 0.0
        %5001 = vmatprep.subr.mxu0 0.0
        %5002 = vmatpush1.xpose.msra.mxu0 %v4969
        %5003 = vmatprep.subr.mxu0 0.0
        %5004 = vmatpush2.xpose.msra.mxu0 0.0
        %5005 = vmatprep.subr.mxu0 0.0
        %5006 = vmatpush2.xpose.msra.mxu0 0.0
        %5007 = vmatprep.subr.mxu0 0.0
        %5008 = vmatpush2.xpose.msra.mxu0 0.0
        %5009 = vmatprep.subr.mxu0 0.0
        %5010 = vmatpush2.xpose.msra.mxu0 0.0
        %5011 = vmatprep.subr.mxu0 0.0
        %5012 = vmatpush2.xpose.msra.mxu0 0.0
        %5013 = vmatprep.subr.mxu0 0.0
        %5014 = vmatpush2.xpose.msra.mxu0 0.0
        %5015 = vmatprep.subr.mxu0 0.0
        %5016 = vmatpush2.xpose.msra.mxu0 0.0
        %5017 = vmatprep.subr.mxu0 0.0
        %5018 = vmatpush2.xpose.msra.mxu0 0.0
        %5019 = vmatprep.subr.mxu0 0.0
        %5020 = vmatpush2.xpose.msra.mxu0 0.0
        %5021 = vmatprep.subr.mxu0 0.0
        %5022 = vmatpush2.xpose.msra.mxu0 0.0
        %5023 = vmatprep.subr.mxu0 0.0
        %5024 = vmatpush2.xpose.msra.mxu0 0.0
        %5025 = vmatprep.subr.mxu0 0.0
        %5026 = vmatpush2.xpose.msra.mxu0 0.0
        %5027 = vmatprep.subr.mxu0 0.0
        %5028 = vmatpush2.xpose.msra.mxu0 0.0
        %5029 = vmatprep.subr.mxu0 0.0
        %5030 = vmatpush2.xpose.msra.mxu0 0.0
        %5031 = vmatprep.subr.mxu0 0.0
        %5032 = vmatpush2.xpose.msra.mxu0 0.0
        %5033 = vmatprep.subr.mxu0 0.0
        %5034 = vmatpush2.xpose.msra.mxu0 0.0
        %5035 = vmatprep.mubr.f32.mxu0 0.0
        %5036 = vmatmul.mubr.f32.gmra.mxu0 %v4966
        %v5037 = vpop.f32.mrf.mxu0
        %v5038 = vadd.f32 0.0, %v5037
        %v5039 = vpop.f32.mrf.mxu0
        %5040 = vdwg.mxu0
        %v5041 = vmax.f32 %v4810, 1e-16
        %v5042 = vmax.f32 %v4886, 1e-16
        %v5043 = vmax.f32 %v4962, 1e-16
        %v5044 = vmax.f32 %v5038, 1e-16
        %v5045 = vrsqrt.pop %v5041
        %v5046 = vrsqrt.pop %v5042
        %v5047 = vrsqrt.pop %v5043
        %v5048 = vrsqrt.pop %v5044
        %v5049 = vmul.f32 %v4596, %v5045
        %v5050 = vmul.f32 %v4641, %v5046
        %v5051 = vmul.f32 %v4686, %v5047
        %v5052 = vmul.f32 %v4731, %v5048
        %v5053 = vsel %vm2421, %v5049, 0.0
        %5054 = vadd.xlane.f32.xlu0 %v5053
        %v5055 = vpop.xlane.xlu0 %5054
        %v5056 = vsel %vm2421, %v5050, 0.0
        %5057 = vadd.xlane.f32.xlu0 %v5056
        %v5058 = vpop.xlane.xlu0 %5057
        %v5059 = vsel %vm2421, %v5051, 0.0
        %5060 = vadd.xlane.f32.xlu0 %v5059
        %v5061 = vpop.xlane.xlu0 %5060
        %v5062 = vsel %vm2421, %v5052, 0.0
        %5063 = vadd.xlane.f32.xlu0 %v5062
        %v5064 = vpop.xlane.xlu0 %5063
        %v5065 = vrcp.pop %v5055
        %v5066 = vrcp.pop %v5058
        %v5067 = vrcp.pop %v5061
        %v5068 = vrcp.pop %v5064
        %v5069 = vmul.f32 %v5049, %v5065
        %v5070 = vmul.f32 %v5050, %v5066
        %v5071 = vmul.f32 %v5051, %v5067
        %v5072 = vmul.f32 %v5052, %v5068
        %v5073 = vsel %vm2421, %v5069, -inf
        %5074 = vmax.xlane.f32.xlu0 %v5073
        %v5075 = vpop.xlane.xlu0 %5074
        %v5076 = vsel %vm2421, %v5070, -inf
        %5077 = vmax.xlane.f32.xlu0 %v5076
        %v5078 = vpop.xlane.xlu0 %5077
        %v5079 = vsel %vm2421, %v5071, -inf
        %5080 = vmax.xlane.f32.xlu0 %v5079
        %v5081 = vpop.xlane.xlu0 %5080
        %v5082 = vsel %vm2421, %v5072, -inf
        %5083 = vmax.xlane.f32.xlu0 %v5082
        %v5084 = vpop.xlane.xlu0 %5083
        %v5085 = vsub.f32 %v5069, %v5075
        %v5086 = vsub.f32 %v5070, %v5078
        %v5087 = vsub.f32 %v5071, %v5081
        %v5088 = vsub.f32 %v5072, %v5084
        %v5089 = vmul.f32 %v5085, 1.442695
        %v5090 = vpow.pop %v5089
        %v5091 = vmul.f32 %v5086, 1.442695
        %v5092 = vpow.pop %v5091
        %v5093 = vmul.f32 %v5087, 1.442695
        %v5094 = vpow.pop %v5093
        %v5095 = vmul.f32 %v5088, 1.442695
        %v5096 = vpow.pop %v5095
        %v5097 = vsel %vm2421, %v5090, 0.0
        %5098 = vadd.xlane.f32.xlu0 %v5097
        %v5099 = vpop.xlane.xlu0 %5098
        %v5100 = vsel %vm2421, %v5092, 0.0
        %5101 = vadd.xlane.f32.xlu0 %v5100
        %v5102 = vpop.xlane.xlu0 %5101
        %v5103 = vsel %vm2421, %v5094, 0.0
        %5104 = vadd.xlane.f32.xlu0 %v5103
        %v5105 = vpop.xlane.xlu0 %5104
        %v5106 = vsel %vm2421, %v5096, 0.0
        %5107 = vadd.xlane.f32.xlu0 %v5106
        %v5108 = vpop.xlane.xlu0 %5107
        %v5109 = vrcp.pop %v5099
        %v5110 = vrcp.pop %v5102
        %v5111 = vrcp.pop %v5105
        %v5112 = vrcp.pop %v5108
        %v5113 = vmul.f32 %v5090, %v5109
        %v5114 = vmul.f32 %v5092, %v5110
        %v5115 = vmul.f32 %v5094, %v5111
        %v5116 = vmul.f32 %v5096, %v5112
        %v5117 = vpack.c.bf16 %v5113, %v5113
        %v5118 = vpack.c.bf16 %v5114, %v5114
        %v5119 = vpack.c.bf16 %v5115, %v5115
        %v5120 = vpack.c.bf16 %v5116, %v5116
        %v5122 = vsel %vm2421, %v5117, 0
        %v5124 = vsel %vm2812, %v4552, 0
        %5126 = vmatprep.subr.bf16.mxu0 0
        %5127 = vmatpush1.bf16.msra.mxu0 0
        %5128 = vmatprep.subr.bf16.mxu0 0
        %5129 = vmatpush1.bf16.msra.mxu0 0
        %5130 = vmatprep.subr.bf16.mxu0 0
        %5131 = vmatpush1.bf16.msra.mxu0 0
        %5132 = vmatprep.subr.bf16.mxu0 0
        %5133 = vmatpush1.bf16.msra.mxu0 0
        %5134 = vmatprep.subr.bf16.mxu0 0
        %5135 = vmatpush1.bf16.msra.mxu0 0
        %5136 = vmatprep.subr.bf16.mxu0 0
        %5137 = vmatpush1.bf16.msra.mxu0 0
        %5138 = vmatprep.subr.bf16.mxu0 0
        %5139 = vmatpush1.bf16.msra.mxu0 0
        %5140 = vmatprep.subr.bf16.mxu0 0
        %5141 = vmatpush1.bf16.msra.mxu0 %v5124
        %5142 = vmatprep.subr.bf16.mxu0 0
        %5143 = vmatpush2.bf16.msra.mxu0 0
        %5144 = vmatprep.subr.bf16.mxu0 0
        %5145 = vmatpush2.bf16.msra.mxu0 0
        %5146 = vmatprep.subr.bf16.mxu0 0
        %5147 = vmatpush2.bf16.msra.mxu0 0
        %5148 = vmatprep.subr.bf16.mxu0 0
        %5149 = vmatpush2.bf16.msra.mxu0 0
        %5150 = vmatprep.subr.bf16.mxu0 0
        %5151 = vmatpush2.bf16.msra.mxu0 0
        %5152 = vmatprep.subr.bf16.mxu0 0
        %5153 = vmatpush2.bf16.msra.mxu0 0
        %5154 = vmatprep.subr.bf16.mxu0 0
        %5155 = vmatpush2.bf16.msra.mxu0 0
        %5156 = vmatprep.subr.bf16.mxu0 0
        %5157 = vmatpush2.bf16.msra.mxu0 0
        %5158 = vmatprep.mubr.bf16.mxu0 0
        %5159 = vmatmul.mubr.bf16.gmra.mxu0 %v5122
        %v5160 = vpop.f32.mrf.mxu0
        %v5161 = vadd.f32 0.0, %v5160
        %v5162 = vpop.f32.mrf.mxu0
        %v5163 = vpop.f32.mrf.mxu0
        %v5164 = vpop.f32.mrf.mxu0
        %5165 = vdwg.mxu0
        %v5167 = vsel %vm2421, %v5118, 0
        %v5169 = vsel %vm2812, %v4553, 0
        %5171 = vmatprep.subr.bf16.mxu0 0
        %5172 = vmatpush1.bf16.msra.mxu0 0
        %5173 = vmatprep.subr.bf16.mxu0 0
        %5174 = vmatpush1.bf16.msra.mxu0 0
        %5175 = vmatprep.subr.bf16.mxu0 0
        %5176 = vmatpush1.bf16.msra.mxu0 0
        %5177 = vmatprep.subr.bf16.mxu0 0
        %5178 = vmatpush1.bf16.msra.mxu0 0
        %5179 = vmatprep.subr.bf16.mxu0 0
        %5180 = vmatpush1.bf16.msra.mxu0 0
        %5181 = vmatprep.subr.bf16.mxu0 0
        %5182 = vmatpush1.bf16.msra.mxu0 0
        %5183 = vmatprep.subr.bf16.mxu0 0
        %5184 = vmatpush1.bf16.msra.mxu0 0
        %5185 = vmatprep.subr.bf16.mxu0 0
        %5186 = vmatpush1.bf16.msra.mxu0 %v5169
        %5187 = vmatprep.subr.bf16.mxu0 0
        %5188 = vmatpush2.bf16.msra.mxu0 0
        %5189 = vmatprep.subr.bf16.mxu0 0
        %5190 = vmatpush2.bf16.msra.mxu0 0
        %5191 = vmatprep.subr.bf16.mxu0 0
        %5192 = vmatpush2.bf16.msra.mxu0 0
        %5193 = vmatprep.subr.bf16.mxu0 0
        %5194 = vmatpush2.bf16.msra.mxu0 0
        %5195 = vmatprep.subr.bf16.mxu0 0
        %5196 = vmatpush2.bf16.msra.mxu0 0
        %5197 = vmatprep.subr.bf16.mxu0 0
        %5198 = vmatpush2.bf16.msra.mxu0 0
        %5199 = vmatprep.subr.bf16.mxu0 0
        %5200 = vmatpush2.bf16.msra.mxu0 0
        %5201 = vmatprep.subr.bf16.mxu0 0
        %5202 = vmatpush2.bf16.msra.mxu0 0
        %5203 = vmatprep.mubr.bf16.mxu0 0
        %5204 = vmatmul.mubr.bf16.gmra.mxu0 %v5167
        %v5205 = vpop.f32.mrf.mxu0
        %v5206 = vadd.f32 0.0, %v5205
        %v5207 = vpop.f32.mrf.mxu0
        %v5208 = vpop.f32.mrf.mxu0
        %v5209 = vpop.f32.mrf.mxu0
        %5210 = vdwg.mxu0
        %v5212 = vsel %vm2421, %v5119, 0
        %v5214 = vsel %vm2812, %v4554, 0
        %5216 = vmatprep.subr.bf16.mxu0 0
        %5217 = vmatpush1.bf16.msra.mxu0 0
        %5218 = vmatprep.subr.bf16.mxu0 0
        %5219 = vmatpush1.bf16.msra.mxu0 0
        %5220 = vmatprep.subr.bf16.mxu0 0
        %5221 = vmatpush1.bf16.msra.mxu0 0
        %5222 = vmatprep.subr.bf16.mxu0 0
        %5223 = vmatpush1.bf16.msra.mxu0 0
        %5224 = vmatprep.subr.bf16.mxu0 0
        %5225 = vmatpush1.bf16.msra.mxu0 0
        %5226 = vmatprep.subr.bf16.mxu0 0
        %5227 = vmatpush1.bf16.msra.mxu0 0
        %5228 = vmatprep.subr.bf16.mxu0 0
        %5229 = vmatpush1.bf16.msra.mxu0 0
        %5230 = vmatprep.subr.bf16.mxu0 0
        %5231 = vmatpush1.bf16.msra.mxu0 %v5214
        %5232 = vmatprep.subr.bf16.mxu0 0
        %5233 = vmatpush2.bf16.msra.mxu0 0
        %5234 = vmatprep.subr.bf16.mxu0 0
        %5235 = vmatpush2.bf16.msra.mxu0 0
        %5236 = vmatprep.subr.bf16.mxu0 0
        %5237 = vmatpush2.bf16.msra.mxu0 0
        %5238 = vmatprep.subr.bf16.mxu0 0
        %5239 = vmatpush2.bf16.msra.mxu0 0
        %5240 = vmatprep.subr.bf16.mxu0 0
        %5241 = vmatpush2.bf16.msra.mxu0 0
        %5242 = vmatprep.subr.bf16.mxu0 0
        %5243 = vmatpush2.bf16.msra.mxu0 0
        %5244 = vmatprep.subr.bf16.mxu0 0
        %5245 = vmatpush2.bf16.msra.mxu0 0
        %5246 = vmatprep.subr.bf16.mxu0 0
        %5247 = vmatpush2.bf16.msra.mxu0 0
        %5248 = vmatprep.mubr.bf16.mxu0 0
        %5249 = vmatmul.mubr.bf16.gmra.mxu0 %v5212
        %v5250 = vpop.f32.mrf.mxu0
        %v5251 = vadd.f32 0.0, %v5250
        %v5252 = vpop.f32.mrf.mxu0
        %v5253 = vpop.f32.mrf.mxu0
        %v5254 = vpop.f32.mrf.mxu0
        %5255 = vdwg.mxu0
        %v5257 = vsel %vm2421, %v5120, 0
        %v5259 = vsel %vm2812, %v4555, 0
        %5261 = vmatprep.subr.bf16.mxu0 0
        %5262 = vmatpush1.bf16.msra.mxu0 0
        %5263 = vmatprep.subr.bf16.mxu0 0
        %5264 = vmatpush1.bf16.msra.mxu0 0
        %5265 = vmatprep.subr.bf16.mxu0 0
        %5266 = vmatpush1.bf16.msra.mxu0 0
        %5267 = vmatprep.subr.bf16.mxu0 0
        %5268 = vmatpush1.bf16.msra.mxu0 0
        %5269 = vmatprep.subr.bf16.mxu0 0
        %5270 = vmatpush1.bf16.msra.mxu0 0
        %5271 = vmatprep.subr.bf16.mxu0 0
        %5272 = vmatpush1.bf16.msra.mxu0 0
        %5273 = vmatprep.subr.bf16.mxu0 0
        %5274 = vmatpush1.bf16.msra.mxu0 0
        %5275 = vmatprep.subr.bf16.mxu0 0
        %5276 = vmatpush1.bf16.msra.mxu0 %v5259
        %5277 = vmatprep.subr.bf16.mxu0 0
        %5278 = vmatpush2.bf16.msra.mxu0 0
        %5279 = vmatprep.subr.bf16.mxu0 0
        %5280 = vmatpush2.bf16.msra.mxu0 0
        %5281 = vmatprep.subr.bf16.mxu0 0
        %5282 = vmatpush2.bf16.msra.mxu0 0
        %5283 = vmatprep.subr.bf16.mxu0 0
        %5284 = vmatpush2.bf16.msra.mxu0 0
        %5285 = vmatprep.subr.bf16.mxu0 0
        %5286 = vmatpush2.bf16.msra.mxu0 0
        %5287 = vmatprep.subr.bf16.mxu0 0
        %5288 = vmatpush2.bf16.msra.mxu0 0
        %5289 = vmatprep.subr.bf16.mxu0 0
        %5290 = vmatpush2.bf16.msra.mxu0 0
        %5291 = vmatprep.subr.bf16.mxu0 0
        %5292 = vmatpush2.bf16.msra.mxu0 0
        %5293 = vmatprep.mubr.bf16.mxu0 0
        %5294 = vmatmul.mubr.bf16.gmra.mxu0 %v5257
        %v5295 = vpop.f32.mrf.mxu0
        %v5296 = vadd.f32 0.0, %v5295
        %v5297 = vpop.f32.mrf.mxu0
        %v5298 = vpop.f32.mrf.mxu0
        %v5299 = vpop.f32.mrf.mxu0
        %5300 = vdwg.mxu0
        %v5301 = vpack.c.bf16 %v5206, %v5161
        %v5302 = vpack.c.bf16 %v5296, %v5251
        %v5303 = vld [vmem:[#allocation10] sm:$0xf]
        %v5304 = vld [vmem:[#allocation10 + $0x4] sm:$0xf]
        %v5305 = vld [vmem:[#allocation10 + $0x8] sm:$0xf]
        %v5306 = vld [vmem:[#allocation10 + $0xc] sm:$0xf]
        %v5307 = vpack.c.bf16 %v585, %v582
        %v5308 = vpack.c.bf16 %v593, %v590
        %v5309 = vld [vmem:[#allocation11] sm:$0xf]
        %v5310 = vld [vmem:[#allocation11 + $0x4] sm:$0xf]
        %v5311 = vld [vmem:[#allocation11 + $0x8] sm:$0xf]
        %v5312 = vld [vmem:[#allocation11 + $0xc] sm:$0xf]
        %v5317 = vunpack.c.l.b16 %v5309
        %v5318 = vunpack.c.l.b16 %v5310
        %v5319 = vunpack.c.l.b16 %v5311
        %v5320 = vunpack.c.l.b16 %v5312
        %v5321 = vpack.c.b16 %v5318, %v5317
        %v5322 = vpack.c.b16 %v5320, %v5319
        %v5326 = vsel %vm540, %v5307, 0
        %v5329 = vsel %vm540, %v5308, 0
        %5331 = vmatprep.subr.bf16.mxu0 0
        %5332 = vmatpush1.bf16.msra.mxu0 0
        %5333 = vmatprep.subr.bf16.mxu0 0
        %5334 = vmatpush1.bf16.msra.mxu0 0
        %5335 = vmatprep.subr.bf16.mxu0 0
        %5336 = vmatpush1.bf16.msra.mxu0 0
        %5337 = vmatprep.subr.bf16.mxu0 0
        %5338 = vmatpush1.bf16.msra.mxu0 0
        %5339 = vmatprep.subr.bf16.mxu0 0
        %5340 = vmatpush1.bf16.msra.mxu0 0
        %5341 = vmatprep.subr.bf16.mxu0 0
        %5342 = vmatpush1.bf16.msra.mxu0 0
        %5343 = vmatprep.subr.bf16.mxu0 0
        %5344 = vmatpush1.bf16.msra.mxu0 %v5322
        %5345 = vmatprep.subr.bf16.mxu0 0
        %5346 = vmatpush1.bf16.msra.mxu0 %v5321
        %5347 = vmatprep.subr.bf16.mxu0 0
        %5348 = vmatpush2.bf16.msra.mxu0 0
        %5349 = vmatprep.subr.bf16.mxu0 0
        %5350 = vmatpush2.bf16.msra.mxu0 0
        %5351 = vmatprep.subr.bf16.mxu0 0
        %5352 = vmatpush2.bf16.msra.mxu0 0
        %5353 = vmatprep.subr.bf16.mxu0 0
        %5354 = vmatpush2.bf16.msra.mxu0 0
        %5355 = vmatprep.subr.bf16.mxu0 0
        %5356 = vmatpush2.bf16.msra.mxu0 0
        %5357 = vmatprep.subr.bf16.mxu0 0
        %5358 = vmatpush2.bf16.msra.mxu0 0
        %5359 = vmatprep.subr.bf16.mxu0 0
        %5360 = vmatpush2.bf16.msra.mxu0 0
        %5361 = vmatprep.subr.bf16.mxu0 0
        %5362 = vmatpush2.bf16.msra.mxu0 0
        %5363 = vmatprep.mubr.bf16.mxu0 0
        %5364 = vmatmul.mubr.bf16.gmra.mxu0 %v5326
        %v5365 = vpop.f32.mrf.mxu0
        %v5366 = vadd.f32 0.0, %v5365
        %v5367 = vpop.f32.mrf.mxu0
        %v5368 = vpop.f32.mrf.mxu0
        %v5369 = vadd.f32 0.0, %v5368
        %v5370 = vpop.f32.mrf.mxu0
        %5371 = vmatprep.mubr.bf16.mxu0 0
        %5372 = vmatmul.mubr.bf16.gmra.mxu0 %v5329
        %v5373 = vpop.f32.mrf.mxu0
        %v5374 = vadd.f32 0.0, %v5373
        %v5375 = vpop.f32.mrf.mxu0
        %v5376 = vpop.f32.mrf.mxu0
        %v5377 = vadd.f32 0.0, %v5376
        %v5378 = vpop.f32.mrf.mxu0
        %5379 = vdwg.mxu0
        %v5384 = vunpack.c.l.b16 %v5303
        %v5385 = vunpack.c.l.b16 %v5304
        %v5386 = vunpack.c.l.b16 %v5305
        %v5387 = vunpack.c.l.b16 %v5306
        %v5388 = vpack.c.b16 %v5385, %v5384
        %v5389 = vpack.c.b16 %v5387, %v5386
        %v5393 = vsel %vm540, %v5301, 0
        %v5396 = vsel %vm540, %v5302, 0
        %5398 = vmatprep.subr.bf16.mxu0 0
        %5399 = vmatpush1.bf16.msra.mxu0 0
        %5400 = vmatprep.subr.bf16.mxu0 0
        %5401 = vmatpush1.bf16.msra.mxu0 0
        %5402 = vmatprep.subr.bf16.mxu0 0
        %5403 = vmatpush1.bf16.msra.mxu0 0
        %5404 = vmatprep.subr.bf16.mxu0 0
        %5405 = vmatpush1.bf16.msra.mxu0 0
        %5406 = vmatprep.subr.bf16.mxu0 0
        %5407 = vmatpush1.bf16.msra.mxu0 0
        %5408 = vmatprep.subr.bf16.mxu0 0
        %5409 = vmatpush1.bf16.msra.mxu0 0
        %5410 = vmatprep.subr.bf16.mxu0 0
        %5411 = vmatpush1.bf16.msra.mxu0 %v5389
        %5412 = vmatprep.subr.bf16.mxu0 0
        %5413 = vmatpush1.bf16.msra.mxu0 %v5388
        %5414 = vmatprep.subr.bf16.mxu0 0
        %5415 = vmatpush2.bf16.msra.mxu0 0
        %5416 = vmatprep.subr.bf16.mxu0 0
        %5417 = vmatpush2.bf16.msra.mxu0 0
        %5418 = vmatprep.subr.bf16.mxu0 0
        %5419 = vmatpush2.bf16.msra.mxu0 0
        %5420 = vmatprep.subr.bf16.mxu0 0
        %5421 = vmatpush2.bf16.msra.mxu0 0
        %5422 = vmatprep.subr.bf16.mxu0 0
        %5423 = vmatpush2.bf16.msra.mxu0 0
        %5424 = vmatprep.subr.bf16.mxu0 0
        %5425 = vmatpush2.bf16.msra.mxu0 0
        %5426 = vmatprep.subr.bf16.mxu0 0
        %5427 = vmatpush2.bf16.msra.mxu0 0
        %5428 = vmatprep.subr.bf16.mxu0 0
        %5429 = vmatpush2.bf16.msra.mxu0 0
        %5430 = vmatprep.mubr.bf16.mxu0 0
        %5431 = vmatmul.mubr.bf16.gmra.mxu0 %v5393
        %v5432 = vpop.f32.mrf.mxu0
        %v5433 = vadd.f32 %v5366, %v5432
        %v5434 = vpop.f32.mrf.mxu0
        %v5435 = vpop.f32.mrf.mxu0
        %v5436 = vadd.f32 %v5369, %v5435
        %v5437 = vpop.f32.mrf.mxu0
        %5438 = vmatprep.mubr.bf16.mxu0 0
        %5439 = vmatmul.mubr.bf16.gmra.mxu0 %v5396
        %v5440 = vpop.f32.mrf.mxu0
        %v5441 = vadd.f32 %v5374, %v5440
        %v5442 = vpop.f32.mrf.mxu0
        %v5443 = vpop.f32.mrf.mxu0
        %v5444 = vadd.f32 %v5377, %v5443
        %v5445 = vpop.f32.mrf.mxu0
        %5446 = vdwg.mxu0
        %v5447 = vld [vmem:[%s8] sm:$0x1]
        %v5449 = vlaneseq
        %v5450 = vshrl.u32 %v5449, 7
        %v5451 = vsub.s32 0, %v5450
        %v5452 = vrot.slane %v5447, %v5451
        %v5454 = vadd.f32 %v5433, %v5452
        %v5455 = vadd.f32 %v5436, %v5452
        %v5456 = vadd.f32 %v5441, %v5452
        %v5457 = vadd.f32 %v5444, %v5452
        %v5458 = vxor.u32 %v5454, 2147483648
        %v5459 = vxor.u32 %v5455, 2147483648
        %v5460 = vxor.u32 %v5456, 2147483648
        %v5461 = vxor.u32 %v5457, 2147483648
        %v5462 = vmul.f32 %v5458, 1.442695
        %v5463 = vpow.pop %v5462
        %v5464 = vmul.f32 %v5459, 1.442695
        %v5465 = vpow.pop %v5464
        %v5466 = vmul.f32 %v5460, 1.442695
        %v5467 = vpow.pop %v5466
        %v5468 = vmul.f32 %v5461, 1.442695
        %v5469 = vpow.pop %v5468
        %v5470 = vadd.f32 %v5463, 1.0
        %v5471 = vadd.f32 %v5465, 1.0
        %v5472 = vadd.f32 %v5467, 1.0
        %v5473 = vadd.f32 %v5469, 1.0
        %v5474 = vrcp.pop %v5470
        %v5475 = vmul.f32 1.0, %v5474
        %v5476 = vrcp.pop %v5471
        %v5477 = vmul.f32 1.0, %v5476
        %v5478 = vrcp.pop %v5472
        %v5479 = vmul.f32 1.0, %v5478
        %v5480 = vrcp.pop %v5473
        %v5481 = vmul.f32 1.0, %v5480
        %5486 = vrot.lane.b32.xlu0 %v5454, 96
        %v5487 = vpop.permute.xlu0 %5486
        %5488 = vrot.lane.b32.xlu0 %v5455, 96
        %v5489 = vpop.permute.xlu0 %5488
        %5490 = vrot.lane.b32.xlu0 %v5456, 96
        %v5491 = vpop.permute.xlu0 %5490
        %5492 = vrot.lane.b32.xlu0 %v5457, 96
        %v5493 = vpop.permute.xlu0 %5492
        %v5498 = vmul.f32 %v5475, %v5487
        %v5499 = vmul.f32 %v5477, %v5489
        %v5500 = vmul.f32 %v5479, %v5491
        %v5501 = vmul.f32 %v5481, %v5493
        %v5502 = vadd.f32 %v5498, %v511
        %v5503 = vadd.f32 %v5499, %v512
        %v5504 = vadd.f32 %v5500, %v513
        %v5505 = vadd.f32 %v5501, %v514
        %v5506 = vsel %vm540, %v5502, 0.0
        %5507 = vadd.xlane.f32.xlu0 %v5506
        %v5508 = vpop.xlane.xlu0 %5507
        %v5509 = vsel %vm540, %v5503, 0.0
        %5510 = vadd.xlane.f32.xlu0 %v5509
        %v5511 = vpop.xlane.xlu0 %5510
        %v5512 = vsel %vm540, %v5504, 0.0
        %5513 = vadd.xlane.f32.xlu0 %v5512
        %v5514 = vpop.xlane.xlu0 %5513
        %v5515 = vsel %vm540, %v5505, 0.0
        %5516 = vadd.xlane.f32.xlu0 %v5515
        %v5517 = vpop.xlane.xlu0 %5516
        %v5518 = vrcp.pop 32.0
        %v5519 = vmul.f32 %v5508, %v5518
        %v5520 = vmul.f32 %v5511, %v5518
        %v5521 = vmul.f32 %v5514, %v5518
        %v5522 = vmul.f32 %v5517, %v5518
        %v5523 = vsub.f32 %v5502, %v5519
        %v5524 = vsub.f32 %v5503, %v5520
        %v5525 = vsub.f32 %v5504, %v5521
        %v5526 = vsub.f32 %v5505, %v5522
        %v5527 = vmul.f32 %v5523, %v5523
        %v5528 = vmul.f32 %v5524, %v5524
        %v5529 = vmul.f32 %v5525, %v5525
        %v5530 = vmul.f32 %v5526, %v5526
        %v5531 = vsel %vm540, %v5527, 0.0
        %5532 = vadd.xlane.f32.xlu0 %v5531
        %v5533 = vpop.xlane.xlu0 %5532
        %v5534 = vsel %vm540, %v5528, 0.0
        %5535 = vadd.xlane.f32.xlu0 %v5534
        %v5536 = vpop.xlane.xlu0 %5535
        %v5537 = vsel %vm540, %v5529, 0.0
        %5538 = vadd.xlane.f32.xlu0 %v5537
        %v5539 = vpop.xlane.xlu0 %5538
        %v5540 = vsel %vm540, %v5530, 0.0
        %5541 = vadd.xlane.f32.xlu0 %v5540
        %v5542 = vpop.xlane.xlu0 %5541
        %v5543 = vmul.f32 %v5533, %v5518
        %v5544 = vmul.f32 %v5536, %v5518
        %v5545 = vmul.f32 %v5539, %v5518
        %v5546 = vmul.f32 %v5542, %v5518
        %v5547 = vadd.f32 %v5543, 1e-05
        %v5548 = vadd.f32 %v5544, 1e-05
        %v5549 = vadd.f32 %v5545, 1e-05
        %v5550 = vadd.f32 %v5546, 1e-05
        %v5551 = vrsqrt.pop %v5547
        %v5552 = vrsqrt.pop %v5548
        %v5553 = vrsqrt.pop %v5549
        %v5554 = vrsqrt.pop %v5550
        %v5555 = vmul.f32 %v5523, %v5551
        %v5556 = vmul.f32 %v5524, %v5552
        %v5557 = vmul.f32 %v5525, %v5553
        %v5558 = vmul.f32 %v5526, %v5554
        %v5559 = vld [vmem:[%s9] sm:$0x1]
        %v5561 = vlaneseq
        %v5562 = vshrl.u32 %v5561, 7
        %v5563 = vsub.s32 0, %v5562
        %v5564 = vrot.slane %v5559, %v5563
        %v5566 = vmul.f32 %v5555, %v5564
        %v5567 = vmul.f32 %v5556, %v5564
        %v5568 = vmul.f32 %v5557, %v5564
        %v5569 = vmul.f32 %v5558, %v5564
        %v5570 = vld [vmem:[%s10] sm:$0x1]
        %v5572 = vlaneseq
        %v5573 = vshrl.u32 %v5572, 7
        %v5574 = vsub.s32 0, %v5573
        %v5575 = vrot.slane %v5570, %v5574
        %v5577 = vadd.f32 %v5566, %v5575
        %v5578 = vadd.f32 %v5567, %v5575
        %v5579 = vadd.f32 %v5568, %v5575
        %v5580 = vadd.f32 %v5569, %v5575
        %5581 = vst.msk [vmem:[%s502] sm:$0xff] %vm540, %v5577
        %5582 = vst.msk [vmem:[%s502 + $0x8] sm:$0xff] %vm540, %v5578
        %5583 = vst.msk [vmem:[%s502 + $0x10] sm:$0xff] %vm540, %v5579
        %5584 = vst.msk [vmem:[%s502 + $0x18] sm:$0xff] %vm540, %v5580
        %s5585 = sand.u32 %s282, 1
        %s5586 = scalar_lea.sflag [#allocation4], %s5585
        %s5587 = sand.u32 %s282, 1
        %s5588 = smul.addr %s5587, 32
        %s5589 = scalar_lea.vmem [#allocation13], %s5588
        // Predicated region
        $region89: #{tpu_custom_call.1} parent=63 // pred_check
          %p5590 = pneg %p292
        $region90: #{tpu_custom_call.1} parent=63 // pred_check_branch
          %5592 = sbr.rel (%p5590) target = $region92
        $region91: #{tpu_custom_call.1} parent=63 // pred_region
          %s5593 = smul.u32 4, %s33
          %s5595 = ssub.s32 512, 512
          %5596 = vsyncadd %s5586, %s5595
          %s5597 = smul.addr %s5593, 128
          %s5598 = scalar_lea.hbm %s11, %s5597
          %s5599 = sshll.u32 %s5589, 4
          %s5600 = int_to_ptr.vmem [resolvable:$true] %s5599
          %5605 = dma.vmem_to_hbm [thread:$0]  %s5600, 512, %s5598, %s5586, 128, 128, 8
        $region92: #{tpu_custom_call.1} parent=63 // pred_fallthru
          _
      $region64: #{tpu_custom_call.1} parent=5 // pred_fallthru
        _
      %p5606 = scmp.le.s32.totalorder 2, %s28
      // Predicated region
      $region93: #{tpu_custom_call.1} parent=5 // pred_check
        %p5607 = pneg %p5606
      $region94: #{tpu_custom_call.1} parent=5 // pred_check_branch
        %5609 = sbr.rel (%p5607) target = $region96
      $region95: #{tpu_custom_call.1} parent=5 // pred_region
        %s5610 = ssub.s32 %s28, 2
        // Predicated region
        $region97: #{tpu_custom_call.1} parent=95 // pred_check
          %p5611 = pneg %p298
        $region98: #{tpu_custom_call.1} parent=95 // pred_check_branch
          %5613 = sbr.rel (%p5611) target = $region100
        $region99: #{tpu_custom_call.1} parent=95 // pred_region
          %s5614 = sand.u32 %s283, 1
          %s5615 = scalar_lea.sflag [#allocation4], %s5614
          %s5616 = sand.u32 %s283, 1
          %s5617 = smul.addr %s5616, 32
          %s5618 = scalar_lea.vmem [#allocation13], %s5617
          %5619 = dma.done %s5615, 512
        $region100: #{tpu_custom_call.1} parent=95 // pred_fallthru
          _
      $region96: #{tpu_custom_call.1} parent=5 // pred_fallthru
        _
    $region6: #{tpu_custom_call.1} parent=1 // loop_footer
      %s32 = sadd.s32 1, %s28
    $region7: #{tpu_custom_call.1} parent=1 // loop_footer_branch
      %27 = sbr.rel target = $region3
    $region8: #{tpu_custom_call.1} parent=1 // loop_exit
      _
    %5620 = vsyncpa [#allocation3], 1
    %s5621 = scalar_lea.sflag [#allocation3], 1
    %5622 = vsyncpa %s5621, 1
    %5623 = vsyncpa [#allocation6], 1
    %s5624 = scalar_lea.sflag [#allocation6], 1
    %5625 = vsyncpa %s5624, 1
    %5626 = vsyncpa [#allocation9], 1
    %5627 = vsyncpa [#allocation12], 1
    %5628 = vsyncpa [#allocation4], 1
    %s5629 = scalar_lea.sflag [#allocation4], 1
    %5630 = vsyncpa %s5629, 1

</llo_original>
